<compile_context>
chip_gen: v7x
topology: tpu7x:2x2x1
jax: 0.10.0
libtpu: 0.0.40
codegen_flags: <defaults>
</compile_context>

<pallas_src>
import jax
import jax.numpy as jnp
from jax.experimental import pallas as pl
from jax.experimental.pallas import tpu as pltpu


def ggca_kernel(x3_ref, x2_ref, ph_ref, pw_ref, eh_ref, ew_ref,
                w1_ref, b1_ref, w2_ref, b2_ref, o_ref):
    # x3_ref: (N, H, W)      N = bg_tile * group_channels   (max pools)
    # x2_ref: (N, H*W)       lane-dense view of the same data (avg pools + output)
    # ph_ref: (H*W, H)       avg-over-W matrix (entries 1/W)
    # pw_ref: (H*W, W)       avg-over-H matrix (entries 1/H)
    # eh_ref: (H, H*W)       expansion indicator: att_h -> per-pixel
    # ew_ref: (W, H*W)       expansion indicator: att_w -> per-pixel
    # w1_ref: (2*bg_tile*mid, 2*bg_tile*gc)   block-diagonal conv1 (BN folded)
    # b1_ref: (2*bg_tile*mid, 1)
    # w2_ref: (2*bg_tile*gc, 2*bg_tile*mid)   block-diagonal conv2
    # b2_ref: (2*bg_tile*gc, 1)
    x3 = x3_ref[...].astype(jnp.float32)          # (N, H, W)
    x2 = x2_ref[...].astype(jnp.float32)          # (N, H*W)
    n = x2.shape[0]

    # --- pooling ---
    # Avg pools as MXU matmuls on the lane-dense view (MXU is otherwise idle).
    h_avg = jnp.dot(x2, ph_ref[...], preferred_element_type=jnp.float32)   # (N, H)
    w_avg = jnp.dot(x2, pw_ref[...], preferred_element_type=jnp.float32)   # (N, W)
    # Max pools have no matmul form: VPU/XLU reductions on the 3-D view.
    h_max = jnp.max(x3, axis=2)                                            # (N, H)
    w_max = jnp.max(x3, axis=1)                                            # (N, W)

    # --- shared 1x1-conv MLP ---
    # Row-stack {avg, max} for all slices in this tile; the block-diagonal
    # weights apply the per-slice channel contraction in ONE matmul pair.
    def shared(v):                                # v: (2N, L)
        y = jnp.dot(w1_ref[...], v, preferred_element_type=jnp.float32) + b1_ref[...]
        y = jnp.maximum(y, 0.0)                   # ReLU
        return jnp.dot(w2_ref[...], y, preferred_element_type=jnp.float32) + b2_ref[...]

    y_h = shared(jnp.concatenate([h_avg, h_max], axis=0))   # (2N, H)
    y_w = shared(jnp.concatenate([w_avg, w_max], axis=0))   # (2N, W)
    att_h = jax.nn.sigmoid(y_h[:n] + y_h[n:])               # (N, H)
    att_w = jax.nn.sigmoid(y_w[:n] + y_w[n:])               # (N, W)

    # --- expand attention to per-pixel maps (MXU) and multiply lane-dense ---
    att_he = jnp.dot(att_h, eh_ref[...], preferred_element_type=jnp.float32)  # (N, H*W)
    att_we = jnp.dot(att_w, ew_ref[...], preferred_element_type=jnp.float32)  # (N, H*W)
    o_ref[...] = (x2 * att_he * att_we).astype(o_ref.dtype)


def ggca_forward(x, params, num_groups, bg_tile=None):
    B, C, H, W = x.shape
    assert C % num_groups == 0
    gc = C // num_groups
    BG = B * num_groups
    HW = H * W
    w1, b1, bns, bnt, w2, b2 = params
    mid = w1.shape[0]

    if bg_tile is None:
        # Two grid steps by default so v7x's two TensorCores can split the work;
        # at large H*W / gc shrink bg_tile so 2x(in3d + in2d + out) stays in VMEM.
        bg_tile = BG // 2 if (BG % 2 == 0 and BG >= 2) else BG
    assert BG % bg_tile == 0
    n_steps = BG // bg_tile
    N = bg_tile * gc

    f32 = jnp.float32

    # Fold eval-mode BatchNorm into conv1:  bns*(w1@v + b1) + bnt == (bns*w1)@v + (bns*b1 + bnt)
    w1f = (bns * w1).astype(f32)                       # (mid, gc)
    b1f = (bns * b1 + bnt).astype(f32)                 # (mid, 1)

    # Block-diagonal weights: 2*bg_tile identical blocks -> one matmul covers the
    # {avg, max} row-stack of every (batch, group) slice in the tile.
    blocks = 2 * bg_tile
    eye = jnp.eye(blocks, dtype=f32)
    w1bd = jnp.kron(eye, w1f)                          # (blocks*mid, blocks*gc)
    w2bd = jnp.kron(eye, w2.astype(f32))               # (blocks*gc, blocks*mid)
    b1bd = jnp.tile(b1f, (blocks, 1))                  # (blocks*mid, 1)
    b2bd = jnp.tile(b2.astype(f32), (blocks, 1))       # (blocks*gc, 1)

    # Constant pooling / expansion matrices (0/1 selection patterns).
    l = jnp.arange(HW)
    sel_h = (l[:, None] // W == jnp.arange(H)[None, :]).astype(f32)   # (HW, H)
    sel_w = (l[:, None] % W == jnp.arange(W)[None, :]).astype(f32)    # (HW, W)
    ph = sel_h / W                                     # avg over W
    pw = sel_w / H                                     # avg over H
    eh = sel_h.T                                       # (H, HW) expansion
    ew = sel_w.T                                       # (W, HW) expansion

    # Free reshapes (row-major contiguity preserved): two views of the same data.
    x3 = x.reshape(BG * gc, H, W)
    x2 = x.reshape(BG * gc, HW)

    def const_spec(shape):
        zeros = (0,) * len(shape)
        return pl.BlockSpec(shape, lambda i, _z=zeros: _z)

    out_flat = pl.pallas_call(
        ggca_kernel,
        out_shape=jax.ShapeDtypeStruct((BG * gc, HW), x.dtype),
        grid_spec=pltpu.PrefetchScalarGridSpec(
            num_scalar_prefetch=0,
            grid=(n_steps,),
            in_specs=[
                pl.BlockSpec((N, H, W), lambda i: (i, 0, 0)),   # x3 tile
                pl.BlockSpec((N, HW), lambda i: (i, 0)),        # x2 tile (lane-dense)
                const_spec((HW, H)),                            # ph
                const_spec((HW, W)),                            # pw
                const_spec((H, HW)),                            # eh
                const_spec((W, HW)),                            # ew
                const_spec((blocks * mid, blocks * gc)),        # w1 block-diag
                const_spec((blocks * mid, 1)),                  # b1
                const_spec((blocks * gc, blocks * mid)),        # w2 block-diag
                const_spec((blocks * gc, 1)),                   # b2
            ],
            out_specs=pl.BlockSpec((N, HW), lambda i: (i, 0)),
        ),
        compiler_params=pltpu.CompilerParams(
            dimension_semantics=("parallel",)),
    )(x3, x2, ph, pw, eh, ew, w1bd, b1bd, w2bd, b2bd)

    return out_flat.reshape(B, C, H, W)


def ggca_ref(x, params, num_groups):
    """Pure-JAX reference mirroring the PyTorch forward (eval-mode BN)."""
    B, C, H, W = x.shape
    gc = C // num_groups
    w1, b1, bns, bnt, w2, b2 = params
    xg = x.reshape(B * num_groups, gc, H, W).astype(jnp.float32)
    h_avg = xg.mean(axis=3)   # (BG, gc, H)
    h_max = xg.max(axis=3)
    w_avg = xg.mean(axis=2)   # (BG, gc, W)
    w_max = xg.max(axis=2)

    def shared(v):            # (BG, gc, L)
        y = jnp.einsum('mc,bcl->bml', w1, v) + b1[None]
        y = y * bns[None] + bnt[None]
        y = jnp.maximum(y, 0.0)
        y = jnp.einsum('cm,bml->bcl', w2, y) + b2[None]
        return y

    att_h = jax.nn.sigmoid(shared(h_avg) + shared(h_max))   # (BG, gc, H)
    att_w = jax.nn.sigmoid(shared(w_avg) + shared(w_max))   # (BG, gc, W)
    out = xg * att_h[:, :, :, None] * att_w[:, :, None, :]
    return out.reshape(B, C, H, W).astype(x.dtype)


if __name__ == "__main__":
    key = jax.random.PRNGKey(0)
    # GGCA(channel=64, h=16, w=16, reduction=4, num_groups=4)
    B, C, H, W = 2, 64, 16, 16
    num_groups, reduction = 4, 4
    gc = C // num_groups
    mid = gc // reduction

    kx, k1, k2, k3, k4 = jax.random.split(key, 5)
    x = jax.random.normal(kx, (B, C, H, W), dtype=jnp.float32)

    # Deterministic parameter init (1x1 Conv2d weights stored as (out, in)).
    w1 = jax.random.normal(k1, (mid, gc), dtype=jnp.float32) * (1.0 / jnp.sqrt(gc))
    b1 = jax.random.normal(k2, (mid, 1), dtype=jnp.float32) * 0.1
    w2 = jax.random.normal(k3, (gc, mid), dtype=jnp.float32) * (1.0 / jnp.sqrt(mid))
    b2 = jax.random.normal(k4, (gc, 1), dtype=jnp.float32) * 0.1

    # BatchNorm2d parameters / running stats (eval-mode semantics), deterministic.
    gamma = 1.0 + 0.05 * jnp.arange(mid, dtype=jnp.float32).reshape(mid, 1)
    beta = 0.02 * jnp.arange(mid, dtype=jnp.float32).reshape(mid, 1)
    run_mean = 0.01 * jnp.arange(mid, dtype=jnp.float32).reshape(mid, 1)
    run_var = 1.0 + 0.1 * jnp.arange(mid, dtype=jnp.float32).reshape(mid, 1)
    eps = 1e-5
    bns = gamma / jnp.sqrt(run_var + eps)        # scale
    bnt = beta - run_mean * bns                  # shift

    params = (w1, b1, bns, bnt, w2, b2)

    out = ggca_forward(x, params, num_groups)
    out = jax.block_until_ready(out)

    ref = ggca_ref(x, params, num_groups)
    assert out.shape == (B, C, H, W)
    assert jnp.allclose(out, ref, atol=1e-5, rtol=1e-5), "Pallas output != JAX reference"

    print("KERNEL_OK")
</pallas_src>

<mosaic_0001>
module attributes {stable_mosaic.version = 11 : i64} {
  func.func @ggca_kernel(%arg0: i32, %arg1: memref<64x16x16xf32, #tpu.memory_space<vmem>>, %arg2: memref<64x256xf32, #tpu.memory_space<vmem>>, %arg3: memref<256x16xf32, #tpu.memory_space<vmem>>, %arg4: memref<256x16xf32, #tpu.memory_space<vmem>>, %arg5: memref<16x256xf32, #tpu.memory_space<vmem>>, %arg6: memref<16x256xf32, #tpu.memory_space<vmem>>, %arg7: memref<32x128xf32, #tpu.memory_space<vmem>>, %arg8: memref<32x1xf32, #tpu.memory_space<vmem>>, %arg9: memref<128x32xf32, #tpu.memory_space<vmem>>, %arg10: memref<128x1xf32, #tpu.memory_space<vmem>>, %arg11: memref<64x256xf32, #tpu.memory_space<vmem>>) attributes {dimension_semantics = [#tpu.dimension_semantics<parallel>], iteration_bounds = array<i64: 2>, scalar_prefetch = 0 : i64, scratch_operands = 0 : i64, tpu.core_type = #tpu.core_type<tc>, window_params = [{transform_indices = @transform_0, window_bounds = array<i64: 64, 16, 16>}, {transform_indices = @transform_1, window_bounds = array<i64: 64, 256>}, {pipeline_mode = #tpu.pipeline_mode<synchronous>, transform_indices = @transform_2, window_bounds = array<i64: 256, 16>}, {pipeline_mode = #tpu.pipeline_mode<synchronous>, transform_indices = @transform_3, window_bounds = array<i64: 256, 16>}, {pipeline_mode = #tpu.pipeline_mode<synchronous>, transform_indices = @transform_4, window_bounds = array<i64: 16, 256>}, {pipeline_mode = #tpu.pipeline_mode<synchronous>, transform_indices = @transform_5, window_bounds = array<i64: 16, 256>}, {pipeline_mode = #tpu.pipeline_mode<synchronous>, transform_indices = @transform_6, window_bounds = array<i64: 32, 128>}, {pipeline_mode = #tpu.pipeline_mode<synchronous>, transform_indices = @transform_7, window_bounds = array<i64: 32, 1>}, {pipeline_mode = #tpu.pipeline_mode<synchronous>, transform_indices = @transform_8, window_bounds = array<i64: 128, 32>}, {pipeline_mode = #tpu.pipeline_mode<synchronous>, transform_indices = @transform_9, window_bounds = array<i64: 128, 1>}, {transform_indices = @transform_10, window_bounds = array<i64: 64, 256>}]} {
    %c0 = arith.constant 0 : index
    %c0_0 = arith.constant 0 : index
    %c0_1 = arith.constant 0 : index
    %0 = vector.load %arg1[%c0, %c0_0, %c0_1] : memref<64x16x16xf32, #tpu.memory_space<vmem>>, vector<64x16x16xf32>
    %c0_2 = arith.constant 0 : index
    %c0_3 = arith.constant 0 : index
    %1 = vector.load %arg2[%c0_2, %c0_3] : memref<64x256xf32, #tpu.memory_space<vmem>>, vector<64x256xf32>
    %c0_4 = arith.constant 0 : index
    %c0_5 = arith.constant 0 : index
    %2 = vector.load %arg3[%c0_4, %c0_5] : memref<256x16xf32, #tpu.memory_space<vmem>>, vector<256x16xf32>
    %cst = arith.constant dense<0.000000e+00> : vector<64x16xf32>
    %3 = tpu.matmul %1, %2, %cst {dimension_numbers = #tpu.dot_dimension_numbers<[1], [0], [0], [1], [0, 0, 1, 1], [], []>} : vector<64x256xf32>, vector<256x16xf32>, vector<64x16xf32> -> vector<64x16xf32>
    %c0_6 = arith.constant 0 : index
    %c0_7 = arith.constant 0 : index
    %4 = vector.load %arg4[%c0_6, %c0_7] : memref<256x16xf32, #tpu.memory_space<vmem>>, vector<256x16xf32>
    %cst_8 = arith.constant dense<0.000000e+00> : vector<64x16xf32>
    %5 = tpu.matmul %1, %4, %cst_8 {dimension_numbers = #tpu.dot_dimension_numbers<[1], [0], [0], [1], [0, 0, 1, 1], [], []>} : vector<64x256xf32>, vector<256x16xf32>, vector<64x16xf32> -> vector<64x16xf32>
    %cst_9 = arith.constant dense<0xFF800000> : vector<64x16xf32>
    %6 = vector.multi_reduction <maximumf>, %0, %cst_9 [2] : vector<64x16x16xf32> to vector<64x16xf32>
    %cst_10 = arith.constant dense<0xFF800000> : vector<64x16xf32>
    %7 = vector.multi_reduction <maximumf>, %0, %cst_10 [1] : vector<64x16x16xf32> to vector<64x16xf32>
    %8 = tpu.concatenate %3, %6 in 0 : vector<64x16xf32>, vector<64x16xf32> -> vector<128x16xf32>
    %c0_11 = arith.constant 0 : index
    %c0_12 = arith.constant 0 : index
    %9 = vector.load %arg7[%c0_11, %c0_12] : memref<32x128xf32, #tpu.memory_space<vmem>>, vector<32x128xf32>
    %cst_13 = arith.constant dense<0.000000e+00> : vector<32x16xf32>
    %10 = tpu.matmul %9, %8, %cst_13 {dimension_numbers = #tpu.dot_dimension_numbers<[1], [0], [0], [1], [0, 0, 1, 1], [], []>} : vector<32x128xf32>, vector<128x16xf32>, vector<32x16xf32> -> vector<32x16xf32>
    %c0_14 = arith.constant 0 : index
    %c0_15 = arith.constant 0 : index
    %11 = vector.load %arg8[%c0_14, %c0_15] : memref<32x1xf32, #tpu.memory_space<vmem>>, vector<32x1xf32>
    %12 = vector.broadcast %11 : vector<32x1xf32> to vector<32x16xf32>
    %13 = arith.addf %10, %12 : vector<32x16xf32>
    %cst_16 = arith.constant 0.000000e+00 : f32
    %14 = vector.broadcast %cst_16 : f32 to vector<32x16xf32>
    %15 = arith.maximumf %13, %14 : vector<32x16xf32>
    %c0_17 = arith.constant 0 : index
    %c0_18 = arith.constant 0 : index
    %16 = vector.load %arg9[%c0_17, %c0_18] : memref<128x32xf32, #tpu.memory_space<vmem>>, vector<128x32xf32>
    %cst_19 = arith.constant dense<0.000000e+00> : vector<128x16xf32>
    %17 = tpu.matmul %16, %15, %cst_19 {dimension_numbers = #tpu.dot_dimension_numbers<[1], [0], [0], [1], [0, 0, 1, 1], [], []>} : vector<128x32xf32>, vector<32x16xf32>, vector<128x16xf32> -> vector<128x16xf32>
    %c0_20 = arith.constant 0 : index
    %c0_21 = arith.constant 0 : index
    %18 = vector.load %arg10[%c0_20, %c0_21] : memref<128x1xf32, #tpu.memory_space<vmem>>, vector<128x1xf32>
    %19 = vector.broadcast %18 : vector<128x1xf32> to vector<128x16xf32>
    %20 = arith.addf %17, %19 : vector<128x16xf32>
    %21 = tpu.concatenate %5, %7 in 0 : vector<64x16xf32>, vector<64x16xf32> -> vector<128x16xf32>
    %c0_22 = arith.constant 0 : index
    %c0_23 = arith.constant 0 : index
    %22 = vector.load %arg7[%c0_22, %c0_23] : memref<32x128xf32, #tpu.memory_space<vmem>>, vector<32x128xf32>
    %cst_24 = arith.constant dense<0.000000e+00> : vector<32x16xf32>
    %23 = tpu.matmul %22, %21, %cst_24 {dimension_numbers = #tpu.dot_dimension_numbers<[1], [0], [0], [1], [0, 0, 1, 1], [], []>} : vector<32x128xf32>, vector<128x16xf32>, vector<32x16xf32> -> vector<32x16xf32>
    %c0_25 = arith.constant 0 : index
    %c0_26 = arith.constant 0 : index
    %24 = vector.load %arg8[%c0_25, %c0_26] : memref<32x1xf32, #tpu.memory_space<vmem>>, vector<32x1xf32>
    %25 = vector.broadcast %24 : vector<32x1xf32> to vector<32x16xf32>
    %26 = arith.addf %23, %25 : vector<32x16xf32>
    %cst_27 = arith.constant 0.000000e+00 : f32
    %27 = vector.broadcast %cst_27 : f32 to vector<32x16xf32>
    %28 = arith.maximumf %26, %27 : vector<32x16xf32>
    %c0_28 = arith.constant 0 : index
    %c0_29 = arith.constant 0 : index
    %29 = vector.load %arg9[%c0_28, %c0_29] : memref<128x32xf32, #tpu.memory_space<vmem>>, vector<128x32xf32>
    %cst_30 = arith.constant dense<0.000000e+00> : vector<128x16xf32>
    %30 = tpu.matmul %29, %28, %cst_30 {dimension_numbers = #tpu.dot_dimension_numbers<[1], [0], [0], [1], [0, 0, 1, 1], [], []>} : vector<128x32xf32>, vector<32x16xf32>, vector<128x16xf32> -> vector<128x16xf32>
    %c0_31 = arith.constant 0 : index
    %c0_32 = arith.constant 0 : index
    %31 = vector.load %arg10[%c0_31, %c0_32] : memref<128x1xf32, #tpu.memory_space<vmem>>, vector<128x1xf32>
    %32 = vector.broadcast %31 : vector<128x1xf32> to vector<128x16xf32>
    %33 = arith.addf %30, %32 : vector<128x16xf32>
    %34 = vector.extract_strided_slice %20 {offsets = [0, 0], sizes = [64, 16], strides = [1, 1]} : vector<128x16xf32> to vector<64x16xf32>
    %35 = vector.extract_strided_slice %20 {offsets = [64, 0], sizes = [64, 16], strides = [1, 1]} : vector<128x16xf32> to vector<64x16xf32>
    %36 = arith.addf %34, %35 : vector<64x16xf32>
    %37 = arith.negf %36 : vector<64x16xf32>
    %38 = math.exp %37 : vector<64x16xf32>
    %cst_33 = arith.constant 1.000000e+00 : f32
    %39 = vector.broadcast %cst_33 : f32 to vector<64x16xf32>
    %40 = arith.addf %39, %38 : vector<64x16xf32>
    %41 = arith.divf %39, %40 : vector<64x16xf32>
    %42 = vector.extract_strided_slice %33 {offsets = [0, 0], sizes = [64, 16], strides = [1, 1]} : vector<128x16xf32> to vector<64x16xf32>
    %43 = vector.extract_strided_slice %33 {offsets = [64, 0], sizes = [64, 16], strides = [1, 1]} : vector<128x16xf32> to vector<64x16xf32>
    %44 = arith.addf %42, %43 : vector<64x16xf32>
    %45 = arith.negf %44 : vector<64x16xf32>
    %46 = math.exp %45 : vector<64x16xf32>
    %cst_34 = arith.constant 1.000000e+00 : f32
    %47 = vector.broadcast %cst_34 : f32 to vector<64x16xf32>
    %48 = arith.addf %47, %46 : vector<64x16xf32>
    %49 = arith.divf %47, %48 : vector<64x16xf32>
    %c0_35 = arith.constant 0 : index
    %c0_36 = arith.constant 0 : index
    %50 = vector.load %arg5[%c0_35, %c0_36] : memref<16x256xf32, #tpu.memory_space<vmem>>, vector<16x256xf32>
    %cst_37 = arith.constant dense<0.000000e+00> : vector<64x256xf32>
    %51 = tpu.matmul %41, %50, %cst_37 {dimension_numbers = #tpu.dot_dimension_numbers<[1], [0], [0], [1], [0, 0, 1, 1], [], []>} : vector<64x16xf32>, vector<16x256xf32>, vector<64x256xf32> -> vector<64x256xf32>
    %c0_38 = arith.constant 0 : index
    %c0_39 = arith.constant 0 : index
    %52 = vector.load %arg6[%c0_38, %c0_39] : memref<16x256xf32, #tpu.memory_space<vmem>>, vector<16x256xf32>
    %cst_40 = arith.constant dense<0.000000e+00> : vector<64x256xf32>
    %53 = tpu.matmul %49, %52, %cst_40 {dimension_numbers = #tpu.dot_dimension_numbers<[1], [0], [0], [1], [0, 0, 1, 1], [], []>} : vector<64x16xf32>, vector<16x256xf32>, vector<64x256xf32> -> vector<64x256xf32>
    %54 = arith.mulf %1, %51 : vector<64x256xf32>
    %55 = arith.mulf %54, %53 : vector<64x256xf32>
    %c0_41 = arith.constant 0 : index
    %c0_42 = arith.constant 0 : index
    %56 = vector.load %arg11[%c0_41, %c0_42] : memref<64x256xf32, #tpu.memory_space<vmem>>, vector<64x256xf32>
    tpu.vector_store %arg11[%c0_41, %c0_42], %55 {strides = array<i32>} : memref<64x256xf32, #tpu.memory_space<vmem>>, vector<64x256xf32>,
    return
  }
  func.func @transform_0(%arg0: i32) -> (i32, i32, i32) {
    %c0_i32 = arith.constant 0 : i32
    %c0_i32_0 = arith.constant 0 : i32
    %c0_i32_1 = arith.constant 0 : i32
    return %arg0, %c0_i32, %c0_i32_0 : i32, i32, i32
  }
  func.func @transform_1(%arg0: i32) -> (i32, i32) {
    %c0_i32 = arith.constant 0 : i32
    %c0_i32_0 = arith.constant 0 : i32
    return %arg0, %c0_i32 : i32, i32
  }
  func.func @transform_2(%arg0: i32) -> (i32, i32) {
    %c0_i32 = arith.constant 0 : i32
    %c0_i32_0 = arith.constant 0 : i32
    %c0_i32_1 = arith.constant 0 : i32
    return %c0_i32, %c0_i32_0 : i32, i32
  }
  func.func @transform_3(%arg0: i32) -> (i32, i32) {
    %c0_i32 = arith.constant 0 : i32
    %c0_i32_0 = arith.constant 0 : i32
    %c0_i32_1 = arith.constant 0 : i32
    return %c0_i32, %c0_i32_0 : i32, i32
  }
  func.func @transform_4(%arg0: i32) -> (i32, i32) {
    %c0_i32 = arith.constant 0 : i32
    %c0_i32_0 = arith.constant 0 : i32
    %c0_i32_1 = arith.constant 0 : i32
    return %c0_i32, %c0_i32_0 : i32, i32
  }
  func.func @transform_5(%arg0: i32) -> (i32, i32) {
    %c0_i32 = arith.constant 0 : i32
    %c0_i32_0 = arith.constant 0 : i32
    %c0_i32_1 = arith.constant 0 : i32
    return %c0_i32, %c0_i32_0 : i32, i32
  }
  func.func @transform_6(%arg0: i32) -> (i32, i32) {
    %c0_i32 = arith.constant 0 : i32
    %c0_i32_0 = arith.constant 0 : i32
    %c0_i32_1 = arith.constant 0 : i32
    return %c0_i32, %c0_i32_0 : i32, i32
  }
  func.func @transform_7(%arg0: i32) -> (i32, i32) {
    %c0_i32 = arith.constant 0 : i32
    %c0_i32_0 = arith.constant 0 : i32
    %c0_i32_1 = arith.constant 0 : i32
    return %c0_i32, %c0_i32_0 : i32, i32
  }
  func.func @transform_8(%arg0: i32) -> (i32, i32) {
    %c0_i32 = arith.constant 0 : i32
    %c0_i32_0 = arith.constant 0 : i32
    %c0_i32_1 = arith.constant 0 : i32
    return %c0_i32, %c0_i32_0 : i32, i32
  }
  func.func @transform_9(%arg0: i32) -> (i32, i32) {
    %c0_i32 = arith.constant 0 : i32
    %c0_i32_0 = arith.constant 0 : i32
    %c0_i32_1 = arith.constant 0 : i32
    return %c0_i32, %c0_i32_0 : i32, i32
  }
  func.func @transform_10(%arg0: i32) -> (i32, i32) {
    %c0_i32 = arith.constant 0 : i32
    %c0_i32_0 = arith.constant 0 : i32
    return %arg0, %c0_i32 : i32, i32
  }
}

</mosaic_0001>

<llo_original>
// kernel: tpu_custom_call.1
$region0: #{tpu_custom_call.1}
  #allocation0 [shape = 'u32[]', space=smem, size = 0x4, offset = 0x4, fixed_abs, tag = 'smem constant byte address 0x4 - core index']
  #allocation1 [shape = 'u32[144,128]{1,0:T(1,128)}', space=vmem, size = 0x12000, scoped, tag = 'internal scratch']
  %s0 = inlined_call_operand.vmem [shape: f32[128,16,16], index: 0, kind: input, shape index: {}]
  %s1 = inlined_call_operand.vmem [shape: f32[128,256], index: 1, kind: input, shape index: {}]
  %s2 = inlined_call_operand.vmem [shape: f32[256,16], index: 2, kind: input, shape index: {}]
  %s3 = inlined_call_operand.vmem [shape: f32[256,16], index: 3, kind: input, shape index: {}]
  %s4 = inlined_call_operand.vmem [shape: f32[16,256], index: 4, kind: input, shape index: {}]
  %s5 = inlined_call_operand.vmem [shape: f32[16,256], index: 5, kind: input, shape index: {}]
  %s6 = inlined_call_operand.vmem [shape: f32[32,128], index: 6, kind: input, shape index: {}]
  %s7 = inlined_call_operand.vmem [shape: f32[32,1], index: 7, kind: input, shape index: {}]
  %s8 = inlined_call_operand.vmem [shape: f32[128,32], index: 8, kind: input, shape index: {}]
  %s9 = inlined_call_operand.vmem [shape: f32[128,1], index: 9, kind: input, shape index: {}]
  %s10 = inlined_call_operand.hbm [shape: f32[128,256], index: 10, kind: output, shape index: {}]
  %s11 = sld [smem:[#allocation0]]
  $region73: #{tpu_custom_call.1} parent=0
    _
  %s13 = ssub.s32 1, %s11
  %s14 = scalar_select 0, %s13, %s11
  $region1: #{tpu_custom_call.1} parent=0
    #allocation2 [shape = 'u8[131072]{0}', space=vmem, size = 0x20000, scoped, tag = 'output window, operand 0']
    #allocation3 [shape = 's32[2]{0}', space=sflag, size = 0x8, scoped, tag = 'scoped memory for tpu_custom_call.1']
    %15 = vsyncpa [#allocation3], 0
    %s16 = scalar_lea.sflag [#allocation3], 1
    %17 = vsyncpa %s16, 0
    loop: start=0, step=1, limit=4
    $region2: #{tpu_custom_call.1} parent=1 // loop_pre_header
      _
    $region3: #{tpu_custom_call.1} parent=1 // loop_header
      %s19 = sphi 0, %s23
      %p20 = scmp.ge.s32.totalorder %s19, 4
      %s29 = sphi 0, %s31
      %s32 = sphi 0, %s29
      %s33 = sphi 0, %s32
      %s49 = sphi 0, %s33
      %s55 = sphi 0, %s57
      %s58 = sphi 0, %s55
      %s59 = sphi 0, %s58
      %s75 = sphi 0, %s59
      %s79 = sphi 0, %s79
      %s81 = sphi 0, %s79
      %s82 = sphi 0, %s81
      %s96 = sphi 0, %s82
      %s100 = sphi 0, %s100
      %s102 = sphi 0, %s100
      %s103 = sphi 0, %s102
      %s117 = sphi 0, %s103
      %s121 = sphi 0, %s121
      %s123 = sphi 0, %s121
      %s124 = sphi 0, %s123
      %s138 = sphi 0, %s124
      %s142 = sphi 0, %s142
      %s144 = sphi 0, %s142
      %s145 = sphi 0, %s144
      %s159 = sphi 0, %s145
      %s163 = sphi 0, %s163
      %s165 = sphi 0, %s163
      %s166 = sphi 0, %s165
      %s180 = sphi 0, %s166
      %s184 = sphi 0, %s184
      %s186 = sphi 0, %s184
      %s187 = sphi 0, %s186
      %s201 = sphi 0, %s187
      %s205 = sphi 0, %s205
      %s207 = sphi 0, %s205
      %s208 = sphi 0, %s207
      %s222 = sphi 0, %s208
      %s226 = sphi 0, %s226
      %s228 = sphi 0, %s226
      %s229 = sphi 0, %s228
      %s243 = sphi 0, %s229
      %s249 = sphi 0, %s251
      %s252 = sphi 0, %s249
      %s253 = sphi 0, %s252
      %s269 = sphi 0, %s253
    $region4: #{tpu_custom_call.1} parent=1 // loop_header_branch
      %22 = sbr.rel (%p20) target = $region8
    $region5: #{tpu_custom_call.1} parent=1 // loop_body
      %s24 = ssub.s32 %s19, 1
      %s25 = ssub.s32 %s19, 2
      %s26 = sadd.s32 %s19, 1
      %s27 = ssub.s32 %s19, %s26
      %p28 = scmp.eq.s32.totalorder %s27, 0
      %s30 = sadd.s32 %s29, 1
      %s31 = scalar_select %p28, %s29, %s30
      %p34 = pneg %p28
      %p35 = scmp.eq.s32.totalorder %s19, 1
      %p36 = por %p34, %p35
      %p37 = scmp.ne.s32.totalorder %s29, %s32
      %p38 = scmp.eq.s32.totalorder %s19, 0
      %p39 = por %p37, %p38
      %p40 = scmp.ne.s32.totalorder %s29, %s32
      %p41 = scmp.eq.s32.totalorder %s24, 1
      %p42 = por %p40, %p41
      %p43 = scmp.ne.s32.totalorder %s32, %s33
      %p44 = scmp.eq.s32.totalorder %s24, 0
      %p45 = por %p43, %p44
      %p46 = scmp.ne.s32.totalorder %s32, %s33
      %p47 = scmp.eq.s32.totalorder %s25, 1
      %p48 = por %p46, %p47
      %p50 = scmp.ne.s32.totalorder %s33, %s49
      %p51 = scmp.eq.s32.totalorder %s25, 0
      %p52 = por %p50, %p51
      %s53 = ssub.s32 %s19, %s26
      %p54 = scmp.eq.s32.totalorder %s53, 0
      %s56 = sadd.s32 %s55, 1
      %s57 = scalar_select %p54, %s55, %s56
      %p60 = pneg %p54
      %p61 = scmp.eq.s32.totalorder %s19, 1
      %p62 = por %p60, %p61
      %p63 = scmp.ne.s32.totalorder %s55, %s58
      %p64 = scmp.eq.s32.totalorder %s19, 0
      %p65 = por %p63, %p64
      %p66 = scmp.ne.s32.totalorder %s55, %s58
      %p67 = scmp.eq.s32.totalorder %s24, 1
      %p68 = por %p66, %p67
      %p69 = scmp.ne.s32.totalorder %s58, %s59
      %p70 = scmp.eq.s32.totalorder %s24, 0
      %p71 = por %p69, %p70
      %p72 = scmp.ne.s32.totalorder %s58, %s59
      %p73 = scmp.eq.s32.totalorder %s25, 1
      %p74 = por %p72, %p73
      %p76 = scmp.ne.s32.totalorder %s59, %s75
      %p77 = scmp.eq.s32.totalorder %s25, 0
      %p78 = por %p76, %p77
      %s80 = sadd.s32 %s79, 1
      %p83 = scmp.eq.s32.totalorder %s19, 1
      %p84 = scmp.ne.s32.totalorder %s79, %s81
      %p85 = scmp.eq.s32.totalorder %s19, 0
      %p86 = por %p84, %p85
      %p87 = scmp.ne.s32.totalorder %s79, %s81
      %p88 = scmp.eq.s32.totalorder %s24, 1
      %p89 = por %p87, %p88
      %p90 = scmp.ne.s32.totalorder %s81, %s82
      %p91 = scmp.eq.s32.totalorder %s24, 0
      %p92 = por %p90, %p91
      %p93 = scmp.ne.s32.totalorder %s81, %s82
      %p94 = scmp.eq.s32.totalorder %s25, 1
      %p95 = por %p93, %p94
      %p97 = scmp.ne.s32.totalorder %s82, %s96
      %p98 = scmp.eq.s32.totalorder %s25, 0
      %p99 = por %p97, %p98
      %s101 = sadd.s32 %s100, 1
      %p104 = scmp.eq.s32.totalorder %s19, 1
      %p105 = scmp.ne.s32.totalorder %s100, %s102
      %p106 = scmp.eq.s32.totalorder %s19, 0
      %p107 = por %p105, %p106
      %p108 = scmp.ne.s32.totalorder %s100, %s102
      %p109 = scmp.eq.s32.totalorder %s24, 1
      %p110 = por %p108, %p109
      %p111 = scmp.ne.s32.totalorder %s102, %s103
      %p112 = scmp.eq.s32.totalorder %s24, 0
      %p113 = por %p111, %p112
      %p114 = scmp.ne.s32.totalorder %s102, %s103
      %p115 = scmp.eq.s32.totalorder %s25, 1
      %p116 = por %p114, %p115
      %p118 = scmp.ne.s32.totalorder %s103, %s117
      %p119 = scmp.eq.s32.totalorder %s25, 0
      %p120 = por %p118, %p119
      %s122 = sadd.s32 %s121, 1
      %p125 = scmp.eq.s32.totalorder %s19, 1
      %p126 = scmp.ne.s32.totalorder %s121, %s123
      %p127 = scmp.eq.s32.totalorder %s19, 0
      %p128 = por %p126, %p127
      %p129 = scmp.ne.s32.totalorder %s121, %s123
      %p130 = scmp.eq.s32.totalorder %s24, 1
      %p131 = por %p129, %p130
      %p132 = scmp.ne.s32.totalorder %s123, %s124
      %p133 = scmp.eq.s32.totalorder %s24, 0
      %p134 = por %p132, %p133
      %p135 = scmp.ne.s32.totalorder %s123, %s124
      %p136 = scmp.eq.s32.totalorder %s25, 1
      %p137 = por %p135, %p136
      %p139 = scmp.ne.s32.totalorder %s124, %s138
      %p140 = scmp.eq.s32.totalorder %s25, 0
      %p141 = por %p139, %p140
      %s143 = sadd.s32 %s142, 1
      %p146 = scmp.eq.s32.totalorder %s19, 1
      %p147 = scmp.ne.s32.totalorder %s142, %s144
      %p148 = scmp.eq.s32.totalorder %s19, 0
      %p149 = por %p147, %p148
      %p150 = scmp.ne.s32.totalorder %s142, %s144
      %p151 = scmp.eq.s32.totalorder %s24, 1
      %p152 = por %p150, %p151
      %p153 = scmp.ne.s32.totalorder %s144, %s145
      %p154 = scmp.eq.s32.totalorder %s24, 0
      %p155 = por %p153, %p154
      %p156 = scmp.ne.s32.totalorder %s144, %s145
      %p157 = scmp.eq.s32.totalorder %s25, 1
      %p158 = por %p156, %p157
      %p160 = scmp.ne.s32.totalorder %s145, %s159
      %p161 = scmp.eq.s32.totalorder %s25, 0
      %p162 = por %p160, %p161
      %s164 = sadd.s32 %s163, 1
      %p167 = scmp.eq.s32.totalorder %s19, 1
      %p168 = scmp.ne.s32.totalorder %s163, %s165
      %p169 = scmp.eq.s32.totalorder %s19, 0
      %p170 = por %p168, %p169
      %p171 = scmp.ne.s32.totalorder %s163, %s165
      %p172 = scmp.eq.s32.totalorder %s24, 1
      %p173 = por %p171, %p172
      %p174 = scmp.ne.s32.totalorder %s165, %s166
      %p175 = scmp.eq.s32.totalorder %s24, 0
      %p176 = por %p174, %p175
      %p177 = scmp.ne.s32.totalorder %s165, %s166
      %p178 = scmp.eq.s32.totalorder %s25, 1
      %p179 = por %p177, %p178
      %p181 = scmp.ne.s32.totalorder %s166, %s180
      %p182 = scmp.eq.s32.totalorder %s25, 0
      %p183 = por %p181, %p182
      %s185 = sadd.s32 %s184, 1
      %p188 = scmp.eq.s32.totalorder %s19, 1
      %p189 = scmp.ne.s32.totalorder %s184, %s186
      %p190 = scmp.eq.s32.totalorder %s19, 0
      %p191 = por %p189, %p190
      %p192 = scmp.ne.s32.totalorder %s184, %s186
      %p193 = scmp.eq.s32.totalorder %s24, 1
      %p194 = por %p192, %p193
      %p195 = scmp.ne.s32.totalorder %s186, %s187
      %p196 = scmp.eq.s32.totalorder %s24, 0
      %p197 = por %p195, %p196
      %p198 = scmp.ne.s32.totalorder %s186, %s187
      %p199 = scmp.eq.s32.totalorder %s25, 1
      %p200 = por %p198, %p199
      %p202 = scmp.ne.s32.totalorder %s187, %s201
      %p203 = scmp.eq.s32.totalorder %s25, 0
      %p204 = por %p202, %p203
      %s206 = sadd.s32 %s205, 1
      %p209 = scmp.eq.s32.totalorder %s19, 1
      %p210 = scmp.ne.s32.totalorder %s205, %s207
      %p211 = scmp.eq.s32.totalorder %s19, 0
      %p212 = por %p210, %p211
      %p213 = scmp.ne.s32.totalorder %s205, %s207
      %p214 = scmp.eq.s32.totalorder %s24, 1
      %p215 = por %p213, %p214
      %p216 = scmp.ne.s32.totalorder %s207, %s208
      %p217 = scmp.eq.s32.totalorder %s24, 0
      %p218 = por %p216, %p217
      %p219 = scmp.ne.s32.totalorder %s207, %s208
      %p220 = scmp.eq.s32.totalorder %s25, 1
      %p221 = por %p219, %p220
      %p223 = scmp.ne.s32.totalorder %s208, %s222
      %p224 = scmp.eq.s32.totalorder %s25, 0
      %p225 = por %p223, %p224
      %s227 = sadd.s32 %s226, 1
      %p230 = scmp.eq.s32.totalorder %s19, 1
      %p231 = scmp.ne.s32.totalorder %s226, %s228
      %p232 = scmp.eq.s32.totalorder %s19, 0
      %p233 = por %p231, %p232
      %p234 = scmp.ne.s32.totalorder %s226, %s228
      %p235 = scmp.eq.s32.totalorder %s24, 1
      %p236 = por %p234, %p235
      %p237 = scmp.ne.s32.totalorder %s228, %s229
      %p238 = scmp.eq.s32.totalorder %s24, 0
      %p239 = por %p237, %p238
      %p240 = scmp.ne.s32.totalorder %s228, %s229
      %p241 = scmp.eq.s32.totalorder %s25, 1
      %p242 = por %p240, %p241
      %p244 = scmp.ne.s32.totalorder %s229, %s243
      %p245 = scmp.eq.s32.totalorder %s25, 0
      %p246 = por %p244, %p245
      %s247 = ssub.s32 %s19, %s26
      %p248 = scmp.eq.s32.totalorder %s247, 0
      %s250 = sadd.s32 %s249, 1
      %s251 = scalar_select %p248, %s249, %s250
      %p254 = pneg %p248
      %p255 = scmp.eq.s32.totalorder %s19, 1
      %p256 = por %p254, %p255
      %p257 = scmp.ne.s32.totalorder %s249, %s252
      %p258 = scmp.eq.s32.totalorder %s19, 0
      %p259 = por %p257, %p258
      %p260 = scmp.ne.s32.totalorder %s249, %s252
      %p261 = scmp.eq.s32.totalorder %s24, 1
      %p262 = por %p260, %p261
      %p263 = scmp.ne.s32.totalorder %s252, %s253
      %p264 = scmp.eq.s32.totalorder %s24, 0
      %p265 = por %p263, %p264
      %p266 = scmp.ne.s32.totalorder %s252, %s253
      %p267 = scmp.eq.s32.totalorder %s25, 1
      %p268 = por %p266, %p267
      %p270 = scmp.ne.s32.totalorder %s253, %s269
      %p271 = scmp.eq.s32.totalorder %s25, 0
      %p272 = por %p270, %p271
      %p273 = scmp.le.s32.totalorder 1, %s19
      %p274 = scmp.lt.s32.totalorder %s19, 3
      %p275 = pnand %p273, %p274
      %p276 = pneg %p275
      // Predicated region
      $region9: #{tpu_custom_call.1} parent=5 // pred_check
        _
      $region10: #{tpu_custom_call.1} parent=5 // pred_check_branch
        %278 = sbr.rel (%p275) target = $region12
      $region11: #{tpu_custom_call.1} parent=5 // pred_region
        %s279 = ssub.s32 %s19, 1
        // Predicated region
        $region13: #{tpu_custom_call.1} parent=11 // pred_check
          %p280 = pneg %p92
        $region14: #{tpu_custom_call.1} parent=11 // pred_check_branch
          %282 = sbr.rel (%p280) target = $region16
        $region15: #{tpu_custom_call.1} parent=11 // pred_region
          _
        $region16: #{tpu_custom_call.1} parent=11 // pred_fallthru
          _
        // Predicated region
        $region17: #{tpu_custom_call.1} parent=11 // pred_check
          %p283 = pneg %p113
        $region18: #{tpu_custom_call.1} parent=11 // pred_check_branch
          %285 = sbr.rel (%p283) target = $region20
        $region19: #{tpu_custom_call.1} parent=11 // pred_region
          _
        $region20: #{tpu_custom_call.1} parent=11 // pred_fallthru
          _
        // Predicated region
        $region21: #{tpu_custom_call.1} parent=11 // pred_check
          %p286 = pneg %p134
        $region22: #{tpu_custom_call.1} parent=11 // pred_check_branch
          %288 = sbr.rel (%p286) target = $region24
        $region23: #{tpu_custom_call.1} parent=11 // pred_region
          _
        $region24: #{tpu_custom_call.1} parent=11 // pred_fallthru
          _
        // Predicated region
        $region25: #{tpu_custom_call.1} parent=11 // pred_check
          %p289 = pneg %p155
        $region26: #{tpu_custom_call.1} parent=11 // pred_check_branch
          %291 = sbr.rel (%p289) target = $region28
        $region27: #{tpu_custom_call.1} parent=11 // pred_region
          _
        $region28: #{tpu_custom_call.1} parent=11 // pred_fallthru
          _
        // Predicated region
        $region29: #{tpu_custom_call.1} parent=11 // pred_check
          %p292 = pneg %p176
        $region30: #{tpu_custom_call.1} parent=11 // pred_check_branch
          %294 = sbr.rel (%p292) target = $region32
        $region31: #{tpu_custom_call.1} parent=11 // pred_region
          _
        $region32: #{tpu_custom_call.1} parent=11 // pred_fallthru
          _
        // Predicated region
        $region33: #{tpu_custom_call.1} parent=11 // pred_check
          %p295 = pneg %p197
        $region34: #{tpu_custom_call.1} parent=11 // pred_check_branch
          %297 = sbr.rel (%p295) target = $region36
        $region35: #{tpu_custom_call.1} parent=11 // pred_region
          _
        $region36: #{tpu_custom_call.1} parent=11 // pred_fallthru
          _
        // Predicated region
        $region37: #{tpu_custom_call.1} parent=11 // pred_check
          %p298 = pneg %p218
        $region38: #{tpu_custom_call.1} parent=11 // pred_check_branch
          %300 = sbr.rel (%p298) target = $region40
        $region39: #{tpu_custom_call.1} parent=11 // pred_region
          _
        $region40: #{tpu_custom_call.1} parent=11 // pred_fallthru
          _
        // Predicated region
        $region41: #{tpu_custom_call.1} parent=11 // pred_check
          %p301 = pneg %p239
        $region42: #{tpu_custom_call.1} parent=11 // pred_check_branch
          %303 = sbr.rel (%p301) target = $region44
        $region43: #{tpu_custom_call.1} parent=11 // pred_region
          _
        $region44: #{tpu_custom_call.1} parent=11 // pred_fallthru
          _
      $region12: #{tpu_custom_call.1} parent=5 // pred_fallthru
        _
      %p304 = scmp.lt.s32.totalorder %s19, 2
      // Predicated region
      $region45: #{tpu_custom_call.1} parent=5 // pred_check
        %p305 = pneg %p304
      $region46: #{tpu_custom_call.1} parent=5 // pred_check_branch
        %307 = sbr.rel (%p305) target = $region48
      $region47: #{tpu_custom_call.1} parent=5 // pred_region
        // Predicated region
        $region49: #{tpu_custom_call.1} parent=47 // pred_check
          %p308 = pneg %p39
        $region50: #{tpu_custom_call.1} parent=47 // pred_check_branch
          %310 = sbr.rel (%p308) target = $region52
        $region51: #{tpu_custom_call.1} parent=47 // pred_region
          %s311 = smul.u32 64, %s19
          %p312 = scmp.lt.s32.totalorder %s311, 127
          %s313 = scalar_select %p312, %s311, 127
          %s314 = smul.addr %s313, 2
          %s315 = smul.addr %s314, 8
          %s316 = scalar_lea.vmem %s0, %s315
          %s317 = smul.u32 64, %s19
        $region52: #{tpu_custom_call.1} parent=47 // pred_fallthru
          _
        // Predicated region
        $region53: #{tpu_custom_call.1} parent=47 // pred_check
          %p318 = pneg %p65
        $region54: #{tpu_custom_call.1} parent=47 // pred_check_branch
          %320 = sbr.rel (%p318) target = $region56
        $region55: #{tpu_custom_call.1} parent=47 // pred_region
          %s321 = smul.u32 8, %s19
          %p322 = scmp.lt.s32.totalorder %s321, 15
          %s323 = scalar_select %p322, %s321, 15
          %s324 = smul.addr %s323, 2
          %s325 = smul.addr %s324, 8
          %s326 = scalar_lea.vmem %s1, %s325
          %s327 = smul.u32 8, %s19
        $region56: #{tpu_custom_call.1} parent=47 // pred_fallthru
          _
      $region48: #{tpu_custom_call.1} parent=5 // pred_fallthru
        _
      %p328 = scmp.le.s32.totalorder 1, %s19
      %p329 = scmp.lt.s32.totalorder %s19, 3
      %p330 = pnand %p328, %p329
      %p331 = pneg %p330
      // Predicated region
      $region57: #{tpu_custom_call.1} parent=5 // pred_check
        _
      $region58: #{tpu_custom_call.1} parent=5 // pred_check_branch
        %333 = sbr.rel (%p330) target = $region60
      $region59: #{tpu_custom_call.1} parent=5 // pred_region
        %s334 = ssub.s32 %s19, 1
        %s335 = smul.u32 64, %s24
        %p336 = scmp.lt.s32.totalorder %s335, 127
        %s337 = scalar_select %p336, %s335, 127
        %s338 = smul.addr %s337, 2
        %s339 = smul.addr %s338, 8
        %s340 = scalar_lea.vmem %s0, %s339
        %p341 = pneg %p45
        %p342 = pneg %p42
        %s343 = smul.u32 8, %s24
        %p344 = scmp.lt.s32.totalorder %s343, 15
        %s345 = scalar_select %p344, %s343, 15
        %s346 = smul.addr %s345, 2
        %s347 = smul.addr %s346, 8
        %s348 = scalar_lea.vmem %s1, %s347
        %p349 = pneg %p71
        %p350 = pneg %p68
        %p351 = pneg %p92
        %p352 = pneg %p89
        %p353 = pneg %p113
        %p354 = pneg %p110
        %p355 = pneg %p134
        %p356 = pneg %p131
        %p357 = pneg %p155
        %p358 = pneg %p152
        %p359 = pneg %p176
        %p360 = pneg %p173
        %p361 = pneg %p197
        %p362 = pneg %p194
        %p363 = pneg %p218
        %p364 = pneg %p215
        %p365 = pneg %p239
        %p366 = pneg %p236
        %p367 = pneg %p265
        %p368 = pneg %p262
        %s369 = sand.u32 %s252, 1
        %s370 = scalar_lea.sflag [#allocation3], %s369
        %s371 = sand.u32 %s252, 1
        %s372 = smul.addr %s371, 128
        %s373 = scalar_lea.vmem [#allocation2], %s372
        %s374 = smul.u32 64, %s24
        %p375 = scmp.lt.s32.totalorder %s374, 127
        %s376 = scalar_select %p375, %s374, 127
        %s377 = smul.addr %s376, 2
        %s378 = smul.addr %s377, 8
        %s379 = scalar_lea.vmem %s0, %s378
        %s380 = smul.u32 64, %s24
        %s381 = smul.u32 8, %s24
        %p382 = scmp.lt.s32.totalorder %s381, 15
        %s383 = scalar_select %p382, %s381, 15
        %s384 = smul.addr %s383, 2
        %s385 = smul.addr %s384, 8
        %s386 = scalar_lea.vmem %s1, %s385
        %s387 = smul.u32 8, %s24
        %s388 = smul.u32 8, %s24
        %v389 = vld [vmem:[%s379] sm:$0xff]
        %v390 = vld [vmem:[%s379 + $0x8] sm:$0xff]
        %v391 = vld [vmem:[%s379 + $0x10] sm:$0xff]
        %v392 = vld [vmem:[%s379 + $0x18] sm:$0xff]
        %v393 = vld [vmem:[%s379 + $0x20] sm:$0xff]
        %v394 = vld [vmem:[%s379 + $0x28] sm:$0xff]
        %v395 = vld [vmem:[%s379 + $0x30] sm:$0xff]
        %v396 = vld [vmem:[%s379 + $0x38] sm:$0xff]
        %v397 = vld [vmem:[%s379 + $0x40] sm:$0xff]
        %v398 = vld [vmem:[%s379 + $0x48] sm:$0xff]
        %v399 = vld [vmem:[%s379 + $0x50] sm:$0xff]
        %v400 = vld [vmem:[%s379 + $0x58] sm:$0xff]
        %v401 = vld [vmem:[%s379 + $0x60] sm:$0xff]
        %v402 = vld [vmem:[%s379 + $0x68] sm:$0xff]
        %v403 = vld [vmem:[%s379 + $0x70] sm:$0xff]
        %v404 = vld [vmem:[%s379 + $0x78] sm:$0xff]
        %v405 = vld [vmem:[%s379 + $0x80] sm:$0xff]
        %v406 = vld [vmem:[%s379 + $0x88] sm:$0xff]
        %v407 = vld [vmem:[%s379 + $0x90] sm:$0xff]
        %v408 = vld [vmem:[%s379 + $0x98] sm:$0xff]
        %v409 = vld [vmem:[%s379 + $0xa0] sm:$0xff]
        %v410 = vld [vmem:[%s379 + $0xa8] sm:$0xff]
        %v411 = vld [vmem:[%s379 + $0xb0] sm:$0xff]
        %v412 = vld [vmem:[%s379 + $0xb8] sm:$0xff]
        %v413 = vld [vmem:[%s379 + $0xc0] sm:$0xff]
        %v414 = vld [vmem:[%s379 + $0xc8] sm:$0xff]
        %v415 = vld [vmem:[%s379 + $0xd0] sm:$0xff]
        %v416 = vld [vmem:[%s379 + $0xd8] sm:$0xff]
        %v417 = vld [vmem:[%s379 + $0xe0] sm:$0xff]
        %v418 = vld [vmem:[%s379 + $0xe8] sm:$0xff]
        %v419 = vld [vmem:[%s379 + $0xf0] sm:$0xff]
        %v420 = vld [vmem:[%s379 + $0xf8] sm:$0xff]
        %v421 = vld [vmem:[%s379 + $0x100] sm:$0xff]
        %v422 = vld [vmem:[%s379 + $0x108] sm:$0xff]
        %v423 = vld [vmem:[%s379 + $0x110] sm:$0xff]
        %v424 = vld [vmem:[%s379 + $0x118] sm:$0xff]
        %v425 = vld [vmem:[%s379 + $0x120] sm:$0xff]
        %v426 = vld [vmem:[%s379 + $0x128] sm:$0xff]
        %v427 = vld [vmem:[%s379 + $0x130] sm:$0xff]
        %v428 = vld [vmem:[%s379 + $0x138] sm:$0xff]
        %v429 = vld [vmem:[%s379 + $0x140] sm:$0xff]
        %v430 = vld [vmem:[%s379 + $0x148] sm:$0xff]
        %v431 = vld [vmem:[%s379 + $0x150] sm:$0xff]
        %v432 = vld [vmem:[%s379 + $0x158] sm:$0xff]
        %v433 = vld [vmem:[%s379 + $0x160] sm:$0xff]
        %v434 = vld [vmem:[%s379 + $0x168] sm:$0xff]
        %v435 = vld [vmem:[%s379 + $0x170] sm:$0xff]
        %v436 = vld [vmem:[%s379 + $0x178] sm:$0xff]
        %v437 = vld [vmem:[%s379 + $0x180] sm:$0xff]
        %v438 = vld [vmem:[%s379 + $0x188] sm:$0xff]
        %v439 = vld [vmem:[%s379 + $0x190] sm:$0xff]
        %v440 = vld [vmem:[%s379 + $0x198] sm:$0xff]
        %v441 = vld [vmem:[%s379 + $0x1a0] sm:$0xff]
        %v442 = vld [vmem:[%s379 + $0x1a8] sm:$0xff]
        %v443 = vld [vmem:[%s379 + $0x1b0] sm:$0xff]
        %v444 = vld [vmem:[%s379 + $0x1b8] sm:$0xff]
        %v445 = vld [vmem:[%s379 + $0x1c0] sm:$0xff]
        %v446 = vld [vmem:[%s379 + $0x1c8] sm:$0xff]
        %v447 = vld [vmem:[%s379 + $0x1d0] sm:$0xff]
        %v448 = vld [vmem:[%s379 + $0x1d8] sm:$0xff]
        %v449 = vld [vmem:[%s379 + $0x1e0] sm:$0xff]
        %v450 = vld [vmem:[%s379 + $0x1e8] sm:$0xff]
        %v451 = vld [vmem:[%s379 + $0x1f0] sm:$0xff]
        %v452 = vld [vmem:[%s379 + $0x1f8] sm:$0xff]
        %v453 = vld [vmem:[%s379 + $0x200] sm:$0xff]
        %v454 = vld [vmem:[%s379 + $0x208] sm:$0xff]
        %v455 = vld [vmem:[%s379 + $0x210] sm:$0xff]
        %v456 = vld [vmem:[%s379 + $0x218] sm:$0xff]
        %v457 = vld [vmem:[%s379 + $0x220] sm:$0xff]
        %v458 = vld [vmem:[%s379 + $0x228] sm:$0xff]
        %v459 = vld [vmem:[%s379 + $0x230] sm:$0xff]
        %v460 = vld [vmem:[%s379 + $0x238] sm:$0xff]
        %v461 = vld [vmem:[%s379 + $0x240] sm:$0xff]
        %v462 = vld [vmem:[%s379 + $0x248] sm:$0xff]
        %v463 = vld [vmem:[%s379 + $0x250] sm:$0xff]
        %v464 = vld [vmem:[%s379 + $0x258] sm:$0xff]
        %v465 = vld [vmem:[%s379 + $0x260] sm:$0xff]
        %v466 = vld [vmem:[%s379 + $0x268] sm:$0xff]
        %v467 = vld [vmem:[%s379 + $0x270] sm:$0xff]
        %v468 = vld [vmem:[%s379 + $0x278] sm:$0xff]
        %v469 = vld [vmem:[%s379 + $0x280] sm:$0xff]
        %v470 = vld [vmem:[%s379 + $0x288] sm:$0xff]
        %v471 = vld [vmem:[%s379 + $0x290] sm:$0xff]
        %v472 = vld [vmem:[%s379 + $0x298] sm:$0xff]
        %v473 = vld [vmem:[%s379 + $0x2a0] sm:$0xff]
        %v474 = vld [vmem:[%s379 + $0x2a8] sm:$0xff]
        %v475 = vld [vmem:[%s379 + $0x2b0] sm:$0xff]
        %v476 = vld [vmem:[%s379 + $0x2b8] sm:$0xff]
        %v477 = vld [vmem:[%s379 + $0x2c0] sm:$0xff]
        %v478 = vld [vmem:[%s379 + $0x2c8] sm:$0xff]
        %v479 = vld [vmem:[%s379 + $0x2d0] sm:$0xff]
        %v480 = vld [vmem:[%s379 + $0x2d8] sm:$0xff]
        %v481 = vld [vmem:[%s379 + $0x2e0] sm:$0xff]
        %v482 = vld [vmem:[%s379 + $0x2e8] sm:$0xff]
        %v483 = vld [vmem:[%s379 + $0x2f0] sm:$0xff]
        %v484 = vld [vmem:[%s379 + $0x2f8] sm:$0xff]
        %v485 = vld [vmem:[%s379 + $0x300] sm:$0xff]
        %v486 = vld [vmem:[%s379 + $0x308] sm:$0xff]
        %v487 = vld [vmem:[%s379 + $0x310] sm:$0xff]
        %v488 = vld [vmem:[%s379 + $0x318] sm:$0xff]
        %v489 = vld [vmem:[%s379 + $0x320] sm:$0xff]
        %v490 = vld [vmem:[%s379 + $0x328] sm:$0xff]
        %v491 = vld [vmem:[%s379 + $0x330] sm:$0xff]
        %v492 = vld [vmem:[%s379 + $0x338] sm:$0xff]
        %v493 = vld [vmem:[%s379 + $0x340] sm:$0xff]
        %v494 = vld [vmem:[%s379 + $0x348] sm:$0xff]
        %v495 = vld [vmem:[%s379 + $0x350] sm:$0xff]
        %v496 = vld [vmem:[%s379 + $0x358] sm:$0xff]
        %v497 = vld [vmem:[%s379 + $0x360] sm:$0xff]
        %v498 = vld [vmem:[%s379 + $0x368] sm:$0xff]
        %v499 = vld [vmem:[%s379 + $0x370] sm:$0xff]
        %v500 = vld [vmem:[%s379 + $0x378] sm:$0xff]
        %v501 = vld [vmem:[%s379 + $0x380] sm:$0xff]
        %v502 = vld [vmem:[%s379 + $0x388] sm:$0xff]
        %v503 = vld [vmem:[%s379 + $0x390] sm:$0xff]
        %v504 = vld [vmem:[%s379 + $0x398] sm:$0xff]
        %v505 = vld [vmem:[%s379 + $0x3a0] sm:$0xff]
        %v506 = vld [vmem:[%s379 + $0x3a8] sm:$0xff]
        %v507 = vld [vmem:[%s379 + $0x3b0] sm:$0xff]
        %v508 = vld [vmem:[%s379 + $0x3b8] sm:$0xff]
        %v509 = vld [vmem:[%s379 + $0x3c0] sm:$0xff]
        %v510 = vld [vmem:[%s379 + $0x3c8] sm:$0xff]
        %v511 = vld [vmem:[%s379 + $0x3d0] sm:$0xff]
        %v512 = vld [vmem:[%s379 + $0x3d8] sm:$0xff]
        %v513 = vld [vmem:[%s379 + $0x3e0] sm:$0xff]
        %v514 = vld [vmem:[%s379 + $0x3e8] sm:$0xff]
        %v515 = vld [vmem:[%s379 + $0x3f0] sm:$0xff]
        %v516 = vld [vmem:[%s379 + $0x3f8] sm:$0xff]
        %v517 = vld [vmem:[%s386] sm:$0xff]
        %v518 = vld [vmem:[%s386 + $0x8] sm:$0xff]
        %v519 = vld [vmem:[%s386 + $0x10] sm:$0xff]
        %v520 = vld [vmem:[%s386 + $0x18] sm:$0xff]
        %v521 = vld [vmem:[%s386 + $0x20] sm:$0xff]
        %v522 = vld [vmem:[%s386 + $0x28] sm:$0xff]
        %v523 = vld [vmem:[%s386 + $0x30] sm:$0xff]
        %v524 = vld [vmem:[%s386 + $0x38] sm:$0xff]
        %v525 = vld [vmem:[%s386 + $0x40] sm:$0xff]
        %v526 = vld [vmem:[%s386 + $0x48] sm:$0xff]
        %v527 = vld [vmem:[%s386 + $0x50] sm:$0xff]
        %v528 = vld [vmem:[%s386 + $0x58] sm:$0xff]
        %v529 = vld [vmem:[%s386 + $0x60] sm:$0xff]
        %v530 = vld [vmem:[%s386 + $0x68] sm:$0xff]
        %v531 = vld [vmem:[%s386 + $0x70] sm:$0xff]
        %v532 = vld [vmem:[%s386 + $0x78] sm:$0xff]
        %v533 = vld [vmem:[%s2] sm:$0xff]
        %v534 = vld [vmem:[%s2 + $0x8] sm:$0xff]
        %v535 = vld [vmem:[%s2 + $0x10] sm:$0xff]
        %v536 = vld [vmem:[%s2 + $0x18] sm:$0xff]
        %v537 = vld [vmem:[%s2 + $0x20] sm:$0xff]
        %v538 = vld [vmem:[%s2 + $0x28] sm:$0xff]
        %v539 = vld [vmem:[%s2 + $0x30] sm:$0xff]
        %v540 = vld [vmem:[%s2 + $0x38] sm:$0xff]
        %v541 = vld [vmem:[%s2 + $0x40] sm:$0xff]
        %v542 = vld [vmem:[%s2 + $0x48] sm:$0xff]
        %v543 = vld [vmem:[%s2 + $0x50] sm:$0xff]
        %v544 = vld [vmem:[%s2 + $0x58] sm:$0xff]
        %v545 = vld [vmem:[%s2 + $0x60] sm:$0xff]
        %v546 = vld [vmem:[%s2 + $0x68] sm:$0xff]
        %v547 = vld [vmem:[%s2 + $0x70] sm:$0xff]
        %v548 = vld [vmem:[%s2 + $0x78] sm:$0xff]
        %v549 = vld [vmem:[%s2 + $0x80] sm:$0xff]
        %v550 = vld [vmem:[%s2 + $0x88] sm:$0xff]
        %v551 = vld [vmem:[%s2 + $0x90] sm:$0xff]
        %v552 = vld [vmem:[%s2 + $0x98] sm:$0xff]
        %v553 = vld [vmem:[%s2 + $0xa0] sm:$0xff]
        %v554 = vld [vmem:[%s2 + $0xa8] sm:$0xff]
        %v555 = vld [vmem:[%s2 + $0xb0] sm:$0xff]
        %v556 = vld [vmem:[%s2 + $0xb8] sm:$0xff]
        %v557 = vld [vmem:[%s2 + $0xc0] sm:$0xff]
        %v558 = vld [vmem:[%s2 + $0xc8] sm:$0xff]
        %v559 = vld [vmem:[%s2 + $0xd0] sm:$0xff]
        %v560 = vld [vmem:[%s2 + $0xd8] sm:$0xff]
        %v561 = vld [vmem:[%s2 + $0xe0] sm:$0xff]
        %v562 = vld [vmem:[%s2 + $0xe8] sm:$0xff]
        %v563 = vld [vmem:[%s2 + $0xf0] sm:$0xff]
        %v564 = vld [vmem:[%s2 + $0xf8] sm:$0xff]
        %565 = vmatprep.subr.mxu0 0.0
        %566 = vmatpush1.msra.mxu0 %v533
        %567 = vmatprep.subr.mxu0 0.0
        %568 = vmatpush1.msra.mxu0 %v534
        %569 = vmatprep.subr.mxu0 0.0
        %570 = vmatpush1.msra.mxu0 %v535
        %571 = vmatprep.subr.mxu0 0.0
        %572 = vmatpush1.msra.mxu0 %v536
        %573 = vmatprep.subr.mxu0 0.0
        %574 = vmatpush1.msra.mxu0 %v537
        %575 = vmatprep.subr.mxu0 0.0
        %576 = vmatpush1.msra.mxu0 %v538
        %577 = vmatprep.subr.mxu0 0.0
        %578 = vmatpush1.msra.mxu0 %v539
        %579 = vmatprep.subr.mxu0 0.0
        %580 = vmatpush1.msra.mxu0 %v540
        %581 = vmatprep.subr.mxu0 0.0
        %582 = vmatpush1.msra.mxu0 %v541
        %583 = vmatprep.subr.mxu0 0.0
        %584 = vmatpush1.msra.mxu0 %v542
        %585 = vmatprep.subr.mxu0 0.0
        %586 = vmatpush1.msra.mxu0 %v543
        %587 = vmatprep.subr.mxu0 0.0
        %588 = vmatpush1.msra.mxu0 %v544
        %589 = vmatprep.subr.mxu0 0.0
        %590 = vmatpush1.msra.mxu0 %v545
        %591 = vmatprep.subr.mxu0 0.0
        %592 = vmatpush1.msra.mxu0 %v546
        %593 = vmatprep.subr.mxu0 0.0
        %594 = vmatpush1.msra.mxu0 %v547
        %595 = vmatprep.subr.mxu0 0.0
        %596 = vmatpush1.msra.mxu0 %v548
        %597 = vmatprep.subr.mxu0 0.0
        %598 = vmatpush1.msra.mxu0 %v549
        %599 = vmatprep.subr.mxu0 0.0
        %600 = vmatpush1.msra.mxu0 %v550
        %601 = vmatprep.subr.mxu0 0.0
        %602 = vmatpush1.msra.mxu0 %v551
        %603 = vmatprep.subr.mxu0 0.0
        %604 = vmatpush1.msra.mxu0 %v552
        %605 = vmatprep.subr.mxu0 0.0
        %606 = vmatpush1.msra.mxu0 %v553
        %607 = vmatprep.subr.mxu0 0.0
        %608 = vmatpush1.msra.mxu0 %v554
        %609 = vmatprep.subr.mxu0 0.0
        %610 = vmatpush1.msra.mxu0 %v555
        %611 = vmatprep.subr.mxu0 0.0
        %612 = vmatpush1.msra.mxu0 %v556
        %613 = vmatprep.subr.mxu0 0.0
        %614 = vmatpush1.msra.mxu0 %v557
        %615 = vmatprep.subr.mxu0 0.0
        %616 = vmatpush1.msra.mxu0 %v558
        %617 = vmatprep.subr.mxu0 0.0
        %618 = vmatpush1.msra.mxu0 %v559
        %619 = vmatprep.subr.mxu0 0.0
        %620 = vmatpush1.msra.mxu0 %v560
        %621 = vmatprep.subr.mxu0 0.0
        %622 = vmatpush1.msra.mxu0 %v561
        %623 = vmatprep.subr.mxu0 0.0
        %624 = vmatpush1.msra.mxu0 %v562
        %625 = vmatprep.subr.mxu0 0.0
        %626 = vmatpush1.msra.mxu0 %v563
        %627 = vmatprep.subr.mxu0 0.0
        %628 = vmatpush1.msra.mxu0 %v564
        %629 = vmatprep.mubr.f32.mxu0 %v518
        %630 = vmatmul.mubr.f32.gmra.mrb[0].mxu0 %v517
        %v631 = vpop.f32.mrb[0].mxu0
        %v632 = vadd.f32 0.0, %v631
        %v633 = vpop.f32.mrb[0].mxu0
        %634 = vmatprep.mubr.f32.mxu0 %v520
        %635 = vmatmul.mubr.f32.gmra.mrb[0].mxu0 %v519
        %v636 = vpop.f32.mrb[0].mxu0
        %v637 = vadd.f32 0.0, %v636
        %v638 = vpop.f32.mrb[0].mxu0
        %639 = vmatprep.mubr.f32.mxu0 %v522
        %640 = vmatmul.mubr.f32.gmra.mrb[0].mxu0 %v521
        %v641 = vpop.f32.mrb[0].mxu0
        %v642 = vadd.f32 0.0, %v641
        %v643 = vpop.f32.mrb[0].mxu0
        %644 = vmatprep.mubr.f32.mxu0 %v524
        %645 = vmatmul.mubr.f32.gmra.mrb[0].mxu0 %v523
        %v646 = vpop.f32.mrb[0].mxu0
        %v647 = vadd.f32 0.0, %v646
        %v648 = vpop.f32.mrb[0].mxu0
        %649 = vmatprep.mubr.f32.mxu0 %v526
        %650 = vmatmul.mubr.f32.gmra.mrb[0].mxu0 %v525
        %v651 = vpop.f32.mrb[0].mxu0
        %v652 = vadd.f32 0.0, %v651
        %v653 = vpop.f32.mrb[0].mxu0
        %654 = vmatprep.mubr.f32.mxu0 %v528
        %655 = vmatmul.mubr.f32.gmra.mrb[0].mxu0 %v527
        %v656 = vpop.f32.mrb[0].mxu0
        %v657 = vadd.f32 0.0, %v656
        %v658 = vpop.f32.mrb[0].mxu0
        %659 = vmatprep.mubr.f32.mxu0 %v530
        %660 = vmatmul.mubr.f32.gmra.mrb[0].mxu0 %v529
        %v661 = vpop.f32.mrb[0].mxu0
        %v662 = vadd.f32 0.0, %v661
        %v663 = vpop.f32.mrb[0].mxu0
        %664 = vmatprep.mubr.f32.mxu0 %v532
        %665 = vmatmul.mubr.f32.gmra.mrb[0].mxu0 %v531
        %v666 = vpop.f32.mrb[0].mxu0
        %v667 = vadd.f32 0.0, %v666
        %v668 = vpop.f32.mrb[0].mxu0
        %669 = vdwg.mxu0
        %v670 = vld [vmem:[%s3] sm:$0xff]
        %v671 = vld [vmem:[%s3 + $0x8] sm:$0xff]
        %v672 = vld [vmem:[%s3 + $0x10] sm:$0xff]
        %v673 = vld [vmem:[%s3 + $0x18] sm:$0xff]
        %v674 = vld [vmem:[%s3 + $0x20] sm:$0xff]
        %v675 = vld [vmem:[%s3 + $0x28] sm:$0xff]
        %v676 = vld [vmem:[%s3 + $0x30] sm:$0xff]
        %v677 = vld [vmem:[%s3 + $0x38] sm:$0xff]
        %v678 = vld [vmem:[%s3 + $0x40] sm:$0xff]
        %v679 = vld [vmem:[%s3 + $0x48] sm:$0xff]
        %v680 = vld [vmem:[%s3 + $0x50] sm:$0xff]
        %v681 = vld [vmem:[%s3 + $0x58] sm:$0xff]
        %v682 = vld [vmem:[%s3 + $0x60] sm:$0xff]
        %v683 = vld [vmem:[%s3 + $0x68] sm:$0xff]
        %v684 = vld [vmem:[%s3 + $0x70] sm:$0xff]
        %v685 = vld [vmem:[%s3 + $0x78] sm:$0xff]
        %v686 = vld [vmem:[%s3 + $0x80] sm:$0xff]
        %v687 = vld [vmem:[%s3 + $0x88] sm:$0xff]
        %v688 = vld [vmem:[%s3 + $0x90] sm:$0xff]
        %v689 = vld [vmem:[%s3 + $0x98] sm:$0xff]
        %v690 = vld [vmem:[%s3 + $0xa0] sm:$0xff]
        %v691 = vld [vmem:[%s3 + $0xa8] sm:$0xff]
        %v692 = vld [vmem:[%s3 + $0xb0] sm:$0xff]
        %v693 = vld [vmem:[%s3 + $0xb8] sm:$0xff]
        %v694 = vld [vmem:[%s3 + $0xc0] sm:$0xff]
        %v695 = vld [vmem:[%s3 + $0xc8] sm:$0xff]
        %v696 = vld [vmem:[%s3 + $0xd0] sm:$0xff]
        %v697 = vld [vmem:[%s3 + $0xd8] sm:$0xff]
        %v698 = vld [vmem:[%s3 + $0xe0] sm:$0xff]
        %v699 = vld [vmem:[%s3 + $0xe8] sm:$0xff]
        %v700 = vld [vmem:[%s3 + $0xf0] sm:$0xff]
        %v701 = vld [vmem:[%s3 + $0xf8] sm:$0xff]
        %702 = vmatprep.subr.mxu0 0.0
        %703 = vmatpush1.msra.mxu0 %v670
        %704 = vmatprep.subr.mxu0 0.0
        %705 = vmatpush1.msra.mxu0 %v671
        %706 = vmatprep.subr.mxu0 0.0
        %707 = vmatpush1.msra.mxu0 %v672
        %708 = vmatprep.subr.mxu0 0.0
        %709 = vmatpush1.msra.mxu0 %v673
        %710 = vmatprep.subr.mxu0 0.0
        %711 = vmatpush1.msra.mxu0 %v674
        %712 = vmatprep.subr.mxu0 0.0
        %713 = vmatpush1.msra.mxu0 %v675
        %714 = vmatprep.subr.mxu0 0.0
        %715 = vmatpush1.msra.mxu0 %v676
        %716 = vmatprep.subr.mxu0 0.0
        %717 = vmatpush1.msra.mxu0 %v677
        %718 = vmatprep.subr.mxu0 0.0
        %719 = vmatpush1.msra.mxu0 %v678
        %720 = vmatprep.subr.mxu0 0.0
        %721 = vmatpush1.msra.mxu0 %v679
        %722 = vmatprep.subr.mxu0 0.0
        %723 = vmatpush1.msra.mxu0 %v680
        %724 = vmatprep.subr.mxu0 0.0
        %725 = vmatpush1.msra.mxu0 %v681
        %726 = vmatprep.subr.mxu0 0.0
        %727 = vmatpush1.msra.mxu0 %v682
        %728 = vmatprep.subr.mxu0 0.0
        %729 = vmatpush1.msra.mxu0 %v683
        %730 = vmatprep.subr.mxu0 0.0
        %731 = vmatpush1.msra.mxu0 %v684
        %732 = vmatprep.subr.mxu0 0.0
        %733 = vmatpush1.msra.mxu0 %v685
        %734 = vmatprep.subr.mxu0 0.0
        %735 = vmatpush1.msra.mxu0 %v686
        %736 = vmatprep.subr.mxu0 0.0
        %737 = vmatpush1.msra.mxu0 %v687
        %738 = vmatprep.subr.mxu0 0.0
        %739 = vmatpush1.msra.mxu0 %v688
        %740 = vmatprep.subr.mxu0 0.0
        %741 = vmatpush1.msra.mxu0 %v689
        %742 = vmatprep.subr.mxu0 0.0
        %743 = vmatpush1.msra.mxu0 %v690
        %744 = vmatprep.subr.mxu0 0.0
        %745 = vmatpush1.msra.mxu0 %v691
        %746 = vmatprep.subr.mxu0 0.0
        %747 = vmatpush1.msra.mxu0 %v692
        %748 = vmatprep.subr.mxu0 0.0
        %749 = vmatpush1.msra.mxu0 %v693
        %750 = vmatprep.subr.mxu0 0.0
        %751 = vmatpush1.msra.mxu0 %v694
        %752 = vmatprep.subr.mxu0 0.0
        %753 = vmatpush1.msra.mxu0 %v695
        %754 = vmatprep.subr.mxu0 0.0
        %755 = vmatpush1.msra.mxu0 %v696
        %756 = vmatprep.subr.mxu0 0.0
        %757 = vmatpush1.msra.mxu0 %v697
        %758 = vmatprep.subr.mxu0 0.0
        %759 = vmatpush1.msra.mxu0 %v698
        %760 = vmatprep.subr.mxu0 0.0
        %761 = vmatpush1.msra.mxu0 %v699
        %762 = vmatprep.subr.mxu0 0.0
        %763 = vmatpush1.msra.mxu0 %v700
        %764 = vmatprep.subr.mxu0 0.0
        %765 = vmatpush1.msra.mxu0 %v701
        %766 = vmatprep.mubr.f32.mxu0 %v518
        %767 = vmatmul.mubr.f32.gmra.mrb[0].mxu0 %v517
        %v768 = vpop.f32.mrb[0].mxu0
        %v769 = vadd.f32 0.0, %v768
        %v770 = vpop.f32.mrb[0].mxu0
        %771 = vmatprep.mubr.f32.mxu0 %v520
        %772 = vmatmul.mubr.f32.gmra.mrb[0].mxu0 %v519
        %v773 = vpop.f32.mrb[0].mxu0
        %v774 = vadd.f32 0.0, %v773
        %v775 = vpop.f32.mrb[0].mxu0
        %776 = vmatprep.mubr.f32.mxu0 %v522
        %777 = vmatmul.mubr.f32.gmra.mrb[0].mxu0 %v521
        %v778 = vpop.f32.mrb[0].mxu0
        %v779 = vadd.f32 0.0, %v778
        %v780 = vpop.f32.mrb[0].mxu0
        %781 = vmatprep.mubr.f32.mxu0 %v524
        %782 = vmatmul.mubr.f32.gmra.mrb[0].mxu0 %v523
        %v783 = vpop.f32.mrb[0].mxu0
        %v784 = vadd.f32 0.0, %v783
        %v785 = vpop.f32.mrb[0].mxu0
        %786 = vmatprep.mubr.f32.mxu0 %v526
        %787 = vmatmul.mubr.f32.gmra.mrb[0].mxu0 %v525
        %v788 = vpop.f32.mrb[0].mxu0
        %v789 = vadd.f32 0.0, %v788
        %v790 = vpop.f32.mrb[0].mxu0
        %791 = vmatprep.mubr.f32.mxu0 %v528
        %792 = vmatmul.mubr.f32.gmra.mrb[0].mxu0 %v527
        %v793 = vpop.f32.mrb[0].mxu0
        %v794 = vadd.f32 0.0, %v793
        %v795 = vpop.f32.mrb[0].mxu0
        %796 = vmatprep.mubr.f32.mxu0 %v530
        %797 = vmatmul.mubr.f32.gmra.mrb[0].mxu0 %v529
        %v798 = vpop.f32.mrb[0].mxu0
        %v799 = vadd.f32 0.0, %v798
        %v800 = vpop.f32.mrb[0].mxu0
        %801 = vmatprep.mubr.f32.mxu0 %v532
        %802 = vmatmul.mubr.f32.gmra.mrb[0].mxu0 %v531
        %v803 = vpop.f32.mrb[0].mxu0
        %v804 = vadd.f32 0.0, %v803
        %v805 = vpop.f32.mrb[0].mxu0
        %806 = vdwg.mxu0
        %vm807 = vcmask 130048
        %v808 = vsel %vm807, %v389, -inf
        %809 = vmax.xlane.f32.xlu0 %v808
        %v810 = vpop.xlane.xlu0 %809
        %v811 = vsel %vm807, %v390, -inf
        %812 = vmax.xlane.f32.xlu0 %v811
        %v813 = vpop.xlane.xlu0 %812
        %v814 = vsel %vm807, %v391, -inf
        %815 = vmax.xlane.f32.xlu0 %v814
        %v816 = vpop.xlane.xlu0 %815
        %v817 = vsel %vm807, %v392, -inf
        %818 = vmax.xlane.f32.xlu0 %v817
        %v819 = vpop.xlane.xlu0 %818
        %v820 = vsel %vm807, %v393, -inf
        %821 = vmax.xlane.f32.xlu0 %v820
        %v822 = vpop.xlane.xlu0 %821
        %v823 = vsel %vm807, %v394, -inf
        %824 = vmax.xlane.f32.xlu0 %v823
        %v825 = vpop.xlane.xlu0 %824
        %v826 = vsel %vm807, %v395, -inf
        %827 = vmax.xlane.f32.xlu0 %v826
        %v828 = vpop.xlane.xlu0 %827
        %v829 = vsel %vm807, %v396, -inf
        %830 = vmax.xlane.f32.xlu0 %v829
        %v831 = vpop.xlane.xlu0 %830
        %v832 = vsel %vm807, %v397, -inf
        %833 = vmax.xlane.f32.xlu0 %v832
        %v834 = vpop.xlane.xlu0 %833
        %v835 = vsel %vm807, %v398, -inf
        %836 = vmax.xlane.f32.xlu0 %v835
        %v837 = vpop.xlane.xlu0 %836
        %v838 = vsel %vm807, %v399, -inf
        %839 = vmax.xlane.f32.xlu0 %v838
        %v840 = vpop.xlane.xlu0 %839
        %v841 = vsel %vm807, %v400, -inf
        %842 = vmax.xlane.f32.xlu0 %v841
        %v843 = vpop.xlane.xlu0 %842
        %v844 = vsel %vm807, %v401, -inf
        %845 = vmax.xlane.f32.xlu0 %v844
        %v846 = vpop.xlane.xlu0 %845
        %v847 = vsel %vm807, %v402, -inf
        %848 = vmax.xlane.f32.xlu0 %v847
        %v849 = vpop.xlane.xlu0 %848
        %v850 = vsel %vm807, %v403, -inf
        %851 = vmax.xlane.f32.xlu0 %v850
        %v852 = vpop.xlane.xlu0 %851
        %v853 = vsel %vm807, %v404, -inf
        %854 = vmax.xlane.f32.xlu0 %v853
        %v855 = vpop.xlane.xlu0 %854
        %v856 = vsel %vm807, %v405, -inf
        %857 = vmax.xlane.f32.xlu0 %v856
        %v858 = vpop.xlane.xlu0 %857
        %v859 = vsel %vm807, %v406, -inf
        %860 = vmax.xlane.f32.xlu0 %v859
        %v861 = vpop.xlane.xlu0 %860
        %v862 = vsel %vm807, %v407, -inf
        %863 = vmax.xlane.f32.xlu0 %v862
        %v864 = vpop.xlane.xlu0 %863
        %v865 = vsel %vm807, %v408, -inf
        %866 = vmax.xlane.f32.xlu0 %v865
        %v867 = vpop.xlane.xlu0 %866
        %v868 = vsel %vm807, %v409, -inf
        %869 = vmax.xlane.f32.xlu0 %v868
        %v870 = vpop.xlane.xlu0 %869
        %v871 = vsel %vm807, %v410, -inf
        %872 = vmax.xlane.f32.xlu0 %v871
        %v873 = vpop.xlane.xlu0 %872
        %v874 = vsel %vm807, %v411, -inf
        %875 = vmax.xlane.f32.xlu0 %v874
        %v876 = vpop.xlane.xlu0 %875
        %v877 = vsel %vm807, %v412, -inf
        %878 = vmax.xlane.f32.xlu0 %v877
        %v879 = vpop.xlane.xlu0 %878
        %v880 = vsel %vm807, %v413, -inf
        %881 = vmax.xlane.f32.xlu0 %v880
        %v882 = vpop.xlane.xlu0 %881
        %v883 = vsel %vm807, %v414, -inf
        %884 = vmax.xlane.f32.xlu0 %v883
        %v885 = vpop.xlane.xlu0 %884
        %v886 = vsel %vm807, %v415, -inf
        %887 = vmax.xlane.f32.xlu0 %v886
        %v888 = vpop.xlane.xlu0 %887
        %v889 = vsel %vm807, %v416, -inf
        %890 = vmax.xlane.f32.xlu0 %v889
        %v891 = vpop.xlane.xlu0 %890
        %v892 = vsel %vm807, %v417, -inf
        %893 = vmax.xlane.f32.xlu0 %v892
        %v894 = vpop.xlane.xlu0 %893
        %v895 = vsel %vm807, %v418, -inf
        %896 = vmax.xlane.f32.xlu0 %v895
        %v897 = vpop.xlane.xlu0 %896
        %v898 = vsel %vm807, %v419, -inf
        %899 = vmax.xlane.f32.xlu0 %v898
        %v900 = vpop.xlane.xlu0 %899
        %v901 = vsel %vm807, %v420, -inf
        %902 = vmax.xlane.f32.xlu0 %v901
        %v903 = vpop.xlane.xlu0 %902
        %v904 = vsel %vm807, %v421, -inf
        %905 = vmax.xlane.f32.xlu0 %v904
        %v906 = vpop.xlane.xlu0 %905
        %v907 = vsel %vm807, %v422, -inf
        %908 = vmax.xlane.f32.xlu0 %v907
        %v909 = vpop.xlane.xlu0 %908
        %v910 = vsel %vm807, %v423, -inf
        %911 = vmax.xlane.f32.xlu0 %v910
        %v912 = vpop.xlane.xlu0 %911
        %v913 = vsel %vm807, %v424, -inf
        %914 = vmax.xlane.f32.xlu0 %v913
        %v915 = vpop.xlane.xlu0 %914
        %v916 = vsel %vm807, %v425, -inf
        %917 = vmax.xlane.f32.xlu0 %v916
        %v918 = vpop.xlane.xlu0 %917
        %v919 = vsel %vm807, %v426, -inf
        %920 = vmax.xlane.f32.xlu0 %v919
        %v921 = vpop.xlane.xlu0 %920
        %v922 = vsel %vm807, %v427, -inf
        %923 = vmax.xlane.f32.xlu0 %v922
        %v924 = vpop.xlane.xlu0 %923
        %v925 = vsel %vm807, %v428, -inf
        %926 = vmax.xlane.f32.xlu0 %v925
        %v927 = vpop.xlane.xlu0 %926
        %v928 = vsel %vm807, %v429, -inf
        %929 = vmax.xlane.f32.xlu0 %v928
        %v930 = vpop.xlane.xlu0 %929
        %v931 = vsel %vm807, %v430, -inf
        %932 = vmax.xlane.f32.xlu0 %v931
        %v933 = vpop.xlane.xlu0 %932
        %v934 = vsel %vm807, %v431, -inf
        %935 = vmax.xlane.f32.xlu0 %v934
        %v936 = vpop.xlane.xlu0 %935
        %v937 = vsel %vm807, %v432, -inf
        %938 = vmax.xlane.f32.xlu0 %v937
        %v939 = vpop.xlane.xlu0 %938
        %v940 = vsel %vm807, %v433, -inf
        %941 = vmax.xlane.f32.xlu0 %v940
        %v942 = vpop.xlane.xlu0 %941
        %v943 = vsel %vm807, %v434, -inf
        %944 = vmax.xlane.f32.xlu0 %v943
        %v945 = vpop.xlane.xlu0 %944
        %v946 = vsel %vm807, %v435, -inf
        %947 = vmax.xlane.f32.xlu0 %v946
        %v948 = vpop.xlane.xlu0 %947
        %v949 = vsel %vm807, %v436, -inf
        %950 = vmax.xlane.f32.xlu0 %v949
        %v951 = vpop.xlane.xlu0 %950
        %v952 = vsel %vm807, %v437, -inf
        %953 = vmax.xlane.f32.xlu0 %v952
        %v954 = vpop.xlane.xlu0 %953
        %v955 = vsel %vm807, %v438, -inf
        %956 = vmax.xlane.f32.xlu0 %v955
        %v957 = vpop.xlane.xlu0 %956
        %v958 = vsel %vm807, %v439, -inf
        %959 = vmax.xlane.f32.xlu0 %v958
        %v960 = vpop.xlane.xlu0 %959
        %v961 = vsel %vm807, %v440, -inf
        %962 = vmax.xlane.f32.xlu0 %v961
        %v963 = vpop.xlane.xlu0 %962
        %v964 = vsel %vm807, %v441, -inf
        %965 = vmax.xlane.f32.xlu0 %v964
        %v966 = vpop.xlane.xlu0 %965
        %v967 = vsel %vm807, %v442, -inf
        %968 = vmax.xlane.f32.xlu0 %v967
        %v969 = vpop.xlane.xlu0 %968
        %v970 = vsel %vm807, %v443, -inf
        %971 = vmax.xlane.f32.xlu0 %v970
        %v972 = vpop.xlane.xlu0 %971
        %v973 = vsel %vm807, %v444, -inf
        %974 = vmax.xlane.f32.xlu0 %v973
        %v975 = vpop.xlane.xlu0 %974
        %v976 = vsel %vm807, %v445, -inf
        %977 = vmax.xlane.f32.xlu0 %v976
        %v978 = vpop.xlane.xlu0 %977
        %v979 = vsel %vm807, %v446, -inf
        %980 = vmax.xlane.f32.xlu0 %v979
        %v981 = vpop.xlane.xlu0 %980
        %v982 = vsel %vm807, %v447, -inf
        %983 = vmax.xlane.f32.xlu0 %v982
        %v984 = vpop.xlane.xlu0 %983
        %v985 = vsel %vm807, %v448, -inf
        %986 = vmax.xlane.f32.xlu0 %v985
        %v987 = vpop.xlane.xlu0 %986
        %v988 = vsel %vm807, %v449, -inf
        %989 = vmax.xlane.f32.xlu0 %v988
        %v990 = vpop.xlane.xlu0 %989
        %v991 = vsel %vm807, %v450, -inf
        %992 = vmax.xlane.f32.xlu0 %v991
        %v993 = vpop.xlane.xlu0 %992
        %v994 = vsel %vm807, %v451, -inf
        %995 = vmax.xlane.f32.xlu0 %v994
        %v996 = vpop.xlane.xlu0 %995
        %v997 = vsel %vm807, %v452, -inf
        %998 = vmax.xlane.f32.xlu0 %v997
        %v999 = vpop.xlane.xlu0 %998
        %v1000 = vsel %vm807, %v453, -inf
        %1001 = vmax.xlane.f32.xlu0 %v1000
        %v1002 = vpop.xlane.xlu0 %1001
        %v1003 = vsel %vm807, %v454, -inf
        %1004 = vmax.xlane.f32.xlu0 %v1003
        %v1005 = vpop.xlane.xlu0 %1004
        %v1006 = vsel %vm807, %v455, -inf
        %1007 = vmax.xlane.f32.xlu0 %v1006
        %v1008 = vpop.xlane.xlu0 %1007
        %v1009 = vsel %vm807, %v456, -inf
        %1010 = vmax.xlane.f32.xlu0 %v1009
        %v1011 = vpop.xlane.xlu0 %1010
        %v1012 = vsel %vm807, %v457, -inf
        %1013 = vmax.xlane.f32.xlu0 %v1012
        %v1014 = vpop.xlane.xlu0 %1013
        %v1015 = vsel %vm807, %v458, -inf
        %1016 = vmax.xlane.f32.xlu0 %v1015
        %v1017 = vpop.xlane.xlu0 %1016
        %v1018 = vsel %vm807, %v459, -inf
        %1019 = vmax.xlane.f32.xlu0 %v1018
        %v1020 = vpop.xlane.xlu0 %1019
        %v1021 = vsel %vm807, %v460, -inf
        %1022 = vmax.xlane.f32.xlu0 %v1021
        %v1023 = vpop.xlane.xlu0 %1022
        %v1024 = vsel %vm807, %v461, -inf
        %1025 = vmax.xlane.f32.xlu0 %v1024
        %v1026 = vpop.xlane.xlu0 %1025
        %v1027 = vsel %vm807, %v462, -inf
        %1028 = vmax.xlane.f32.xlu0 %v1027
        %v1029 = vpop.xlane.xlu0 %1028
        %v1030 = vsel %vm807, %v463, -inf
        %1031 = vmax.xlane.f32.xlu0 %v1030
        %v1032 = vpop.xlane.xlu0 %1031
        %v1033 = vsel %vm807, %v464, -inf
        %1034 = vmax.xlane.f32.xlu0 %v1033
        %v1035 = vpop.xlane.xlu0 %1034
        %v1036 = vsel %vm807, %v465, -inf
        %1037 = vmax.xlane.f32.xlu0 %v1036
        %v1038 = vpop.xlane.xlu0 %1037
        %v1039 = vsel %vm807, %v466, -inf
        %1040 = vmax.xlane.f32.xlu0 %v1039
        %v1041 = vpop.xlane.xlu0 %1040
        %v1042 = vsel %vm807, %v467, -inf
        %1043 = vmax.xlane.f32.xlu0 %v1042
        %v1044 = vpop.xlane.xlu0 %1043
        %v1045 = vsel %vm807, %v468, -inf
        %1046 = vmax.xlane.f32.xlu0 %v1045
        %v1047 = vpop.xlane.xlu0 %1046
        %v1048 = vsel %vm807, %v469, -inf
        %1049 = vmax.xlane.f32.xlu0 %v1048
        %v1050 = vpop.xlane.xlu0 %1049
        %v1051 = vsel %vm807, %v470, -inf
        %1052 = vmax.xlane.f32.xlu0 %v1051
        %v1053 = vpop.xlane.xlu0 %1052
        %v1054 = vsel %vm807, %v471, -inf
        %1055 = vmax.xlane.f32.xlu0 %v1054
        %v1056 = vpop.xlane.xlu0 %1055
        %v1057 = vsel %vm807, %v472, -inf
        %1058 = vmax.xlane.f32.xlu0 %v1057
        %v1059 = vpop.xlane.xlu0 %1058
        %v1060 = vsel %vm807, %v473, -inf
        %1061 = vmax.xlane.f32.xlu0 %v1060
        %v1062 = vpop.xlane.xlu0 %1061
        %v1063 = vsel %vm807, %v474, -inf
        %1064 = vmax.xlane.f32.xlu0 %v1063
        %v1065 = vpop.xlane.xlu0 %1064
        %v1066 = vsel %vm807, %v475, -inf
        %1067 = vmax.xlane.f32.xlu0 %v1066
        %v1068 = vpop.xlane.xlu0 %1067
        %v1069 = vsel %vm807, %v476, -inf
        %1070 = vmax.xlane.f32.xlu0 %v1069
        %v1071 = vpop.xlane.xlu0 %1070
        %v1072 = vsel %vm807, %v477, -inf
        %1073 = vmax.xlane.f32.xlu0 %v1072
        %v1074 = vpop.xlane.xlu0 %1073
        %v1075 = vsel %vm807, %v478, -inf
        %1076 = vmax.xlane.f32.xlu0 %v1075
        %v1077 = vpop.xlane.xlu0 %1076
        %v1078 = vsel %vm807, %v479, -inf
        %1079 = vmax.xlane.f32.xlu0 %v1078
        %v1080 = vpop.xlane.xlu0 %1079
        %v1081 = vsel %vm807, %v480, -inf
        %1082 = vmax.xlane.f32.xlu0 %v1081
        %v1083 = vpop.xlane.xlu0 %1082
        %v1084 = vsel %vm807, %v481, -inf
        %1085 = vmax.xlane.f32.xlu0 %v1084
        %v1086 = vpop.xlane.xlu0 %1085
        %v1087 = vsel %vm807, %v482, -inf
        %1088 = vmax.xlane.f32.xlu0 %v1087
        %v1089 = vpop.xlane.xlu0 %1088
        %v1090 = vsel %vm807, %v483, -inf
        %1091 = vmax.xlane.f32.xlu0 %v1090
        %v1092 = vpop.xlane.xlu0 %1091
        %v1093 = vsel %vm807, %v484, -inf
        %1094 = vmax.xlane.f32.xlu0 %v1093
        %v1095 = vpop.xlane.xlu0 %1094
        %v1096 = vsel %vm807, %v485, -inf
        %1097 = vmax.xlane.f32.xlu0 %v1096
        %v1098 = vpop.xlane.xlu0 %1097
        %v1099 = vsel %vm807, %v486, -inf
        %1100 = vmax.xlane.f32.xlu0 %v1099
        %v1101 = vpop.xlane.xlu0 %1100
        %v1102 = vsel %vm807, %v487, -inf
        %1103 = vmax.xlane.f32.xlu0 %v1102
        %v1104 = vpop.xlane.xlu0 %1103
        %v1105 = vsel %vm807, %v488, -inf
        %1106 = vmax.xlane.f32.xlu0 %v1105
        %v1107 = vpop.xlane.xlu0 %1106
        %v1108 = vsel %vm807, %v489, -inf
        %1109 = vmax.xlane.f32.xlu0 %v1108
        %v1110 = vpop.xlane.xlu0 %1109
        %v1111 = vsel %vm807, %v490, -inf
        %1112 = vmax.xlane.f32.xlu0 %v1111
        %v1113 = vpop.xlane.xlu0 %1112
        %v1114 = vsel %vm807, %v491, -inf
        %1115 = vmax.xlane.f32.xlu0 %v1114
        %v1116 = vpop.xlane.xlu0 %1115
        %v1117 = vsel %vm807, %v492, -inf
        %1118 = vmax.xlane.f32.xlu0 %v1117
        %v1119 = vpop.xlane.xlu0 %1118
        %v1120 = vsel %vm807, %v493, -inf
        %1121 = vmax.xlane.f32.xlu0 %v1120
        %v1122 = vpop.xlane.xlu0 %1121
        %v1123 = vsel %vm807, %v494, -inf
        %1124 = vmax.xlane.f32.xlu0 %v1123
        %v1125 = vpop.xlane.xlu0 %1124
        %v1126 = vsel %vm807, %v495, -inf
        %1127 = vmax.xlane.f32.xlu0 %v1126
        %v1128 = vpop.xlane.xlu0 %1127
        %v1129 = vsel %vm807, %v496, -inf
        %1130 = vmax.xlane.f32.xlu0 %v1129
        %v1131 = vpop.xlane.xlu0 %1130
        %v1132 = vsel %vm807, %v497, -inf
        %1133 = vmax.xlane.f32.xlu0 %v1132
        %v1134 = vpop.xlane.xlu0 %1133
        %v1135 = vsel %vm807, %v498, -inf
        %1136 = vmax.xlane.f32.xlu0 %v1135
        %v1137 = vpop.xlane.xlu0 %1136
        %v1138 = vsel %vm807, %v499, -inf
        %1139 = vmax.xlane.f32.xlu0 %v1138
        %v1140 = vpop.xlane.xlu0 %1139
        %v1141 = vsel %vm807, %v500, -inf
        %1142 = vmax.xlane.f32.xlu0 %v1141
        %v1143 = vpop.xlane.xlu0 %1142
        %v1144 = vsel %vm807, %v501, -inf
        %1145 = vmax.xlane.f32.xlu0 %v1144
        %v1146 = vpop.xlane.xlu0 %1145
        %v1147 = vsel %vm807, %v502, -inf
        %1148 = vmax.xlane.f32.xlu0 %v1147
        %v1149 = vpop.xlane.xlu0 %1148
        %v1150 = vsel %vm807, %v503, -inf
        %1151 = vmax.xlane.f32.xlu0 %v1150
        %v1152 = vpop.xlane.xlu0 %1151
        %v1153 = vsel %vm807, %v504, -inf
        %1154 = vmax.xlane.f32.xlu0 %v1153
        %v1155 = vpop.xlane.xlu0 %1154
        %v1156 = vsel %vm807, %v505, -inf
        %1157 = vmax.xlane.f32.xlu0 %v1156
        %v1158 = vpop.xlane.xlu0 %1157
        %v1159 = vsel %vm807, %v506, -inf
        %1160 = vmax.xlane.f32.xlu0 %v1159
        %v1161 = vpop.xlane.xlu0 %1160
        %v1162 = vsel %vm807, %v507, -inf
        %1163 = vmax.xlane.f32.xlu0 %v1162
        %v1164 = vpop.xlane.xlu0 %1163
        %v1165 = vsel %vm807, %v508, -inf
        %1166 = vmax.xlane.f32.xlu0 %v1165
        %v1167 = vpop.xlane.xlu0 %1166
        %v1168 = vsel %vm807, %v509, -inf
        %1169 = vmax.xlane.f32.xlu0 %v1168
        %v1170 = vpop.xlane.xlu0 %1169
        %v1171 = vsel %vm807, %v510, -inf
        %1172 = vmax.xlane.f32.xlu0 %v1171
        %v1173 = vpop.xlane.xlu0 %1172
        %v1174 = vsel %vm807, %v511, -inf
        %1175 = vmax.xlane.f32.xlu0 %v1174
        %v1176 = vpop.xlane.xlu0 %1175
        %v1177 = vsel %vm807, %v512, -inf
        %1178 = vmax.xlane.f32.xlu0 %v1177
        %v1179 = vpop.xlane.xlu0 %1178
        %v1180 = vsel %vm807, %v513, -inf
        %1181 = vmax.xlane.f32.xlu0 %v1180
        %v1182 = vpop.xlane.xlu0 %1181
        %v1183 = vsel %vm807, %v514, -inf
        %1184 = vmax.xlane.f32.xlu0 %v1183
        %v1185 = vpop.xlane.xlu0 %1184
        %v1186 = vsel %vm807, %v515, -inf
        %1187 = vmax.xlane.f32.xlu0 %v1186
        %v1188 = vpop.xlane.xlu0 %1187
        %v1189 = vsel %vm807, %v516, -inf
        %1190 = vmax.xlane.f32.xlu0 %v1189
        %v1191 = vpop.xlane.xlu0 %1190
        %v1192 = vmax.f32 %v808, %v811
        %v1193 = vrot.slane %v1192, 4
        %v1194 = vmax.f32 %v1192, %v1193
        %v1195 = vrot.slane %v1194, 2
        %v1196 = vmax.f32 %v1194, %v1195
        %v1197 = vrot.slane %v1196, 1
        %v1198 = vmax.f32 %v1196, %v1197
        %v1199 = vmax.f32 %v814, %v817
        %v1200 = vrot.slane %v1199, 4
        %v1201 = vmax.f32 %v1199, %v1200
        %v1202 = vrot.slane %v1201, 2
        %v1203 = vmax.f32 %v1201, %v1202
        %v1204 = vrot.slane %v1203, 1
        %v1205 = vmax.f32 %v1203, %v1204
        %v1206 = vmax.f32 %v820, %v823
        %v1207 = vrot.slane %v1206, 4
        %v1208 = vmax.f32 %v1206, %v1207
        %v1209 = vrot.slane %v1208, 2
        %v1210 = vmax.f32 %v1208, %v1209
        %v1211 = vrot.slane %v1210, 1
        %v1212 = vmax.f32 %v1210, %v1211
        %v1213 = vmax.f32 %v826, %v829
        %v1214 = vrot.slane %v1213, 4
        %v1215 = vmax.f32 %v1213, %v1214
        %v1216 = vrot.slane %v1215, 2
        %v1217 = vmax.f32 %v1215, %v1216
        %v1218 = vrot.slane %v1217, 1
        %v1219 = vmax.f32 %v1217, %v1218
        %v1220 = vmax.f32 %v832, %v835
        %v1221 = vrot.slane %v1220, 4
        %v1222 = vmax.f32 %v1220, %v1221
        %v1223 = vrot.slane %v1222, 2
        %v1224 = vmax.f32 %v1222, %v1223
        %v1225 = vrot.slane %v1224, 1
        %v1226 = vmax.f32 %v1224, %v1225
        %v1227 = vmax.f32 %v838, %v841
        %v1228 = vrot.slane %v1227, 4
        %v1229 = vmax.f32 %v1227, %v1228
        %v1230 = vrot.slane %v1229, 2
        %v1231 = vmax.f32 %v1229, %v1230
        %v1232 = vrot.slane %v1231, 1
        %v1233 = vmax.f32 %v1231, %v1232
        %v1234 = vmax.f32 %v844, %v847
        %v1235 = vrot.slane %v1234, 4
        %v1236 = vmax.f32 %v1234, %v1235
        %v1237 = vrot.slane %v1236, 2
        %v1238 = vmax.f32 %v1236, %v1237
        %v1239 = vrot.slane %v1238, 1
        %v1240 = vmax.f32 %v1238, %v1239
        %v1241 = vmax.f32 %v850, %v853
        %v1242 = vrot.slane %v1241, 4
        %v1243 = vmax.f32 %v1241, %v1242
        %v1244 = vrot.slane %v1243, 2
        %v1245 = vmax.f32 %v1243, %v1244
        %v1246 = vrot.slane %v1245, 1
        %v1247 = vmax.f32 %v1245, %v1246
        %v1248 = vmax.f32 %v856, %v859
        %v1249 = vrot.slane %v1248, 4
        %v1250 = vmax.f32 %v1248, %v1249
        %v1251 = vrot.slane %v1250, 2
        %v1252 = vmax.f32 %v1250, %v1251
        %v1253 = vrot.slane %v1252, 1
        %v1254 = vmax.f32 %v1252, %v1253
        %v1255 = vmax.f32 %v862, %v865
        %v1256 = vrot.slane %v1255, 4
        %v1257 = vmax.f32 %v1255, %v1256
        %v1258 = vrot.slane %v1257, 2
        %v1259 = vmax.f32 %v1257, %v1258
        %v1260 = vrot.slane %v1259, 1
        %v1261 = vmax.f32 %v1259, %v1260
        %v1262 = vmax.f32 %v868, %v871
        %v1263 = vrot.slane %v1262, 4
        %v1264 = vmax.f32 %v1262, %v1263
        %v1265 = vrot.slane %v1264, 2
        %v1266 = vmax.f32 %v1264, %v1265
        %v1267 = vrot.slane %v1266, 1
        %v1268 = vmax.f32 %v1266, %v1267
        %v1269 = vmax.f32 %v874, %v877
        %v1270 = vrot.slane %v1269, 4
        %v1271 = vmax.f32 %v1269, %v1270
        %v1272 = vrot.slane %v1271, 2
        %v1273 = vmax.f32 %v1271, %v1272
        %v1274 = vrot.slane %v1273, 1
        %v1275 = vmax.f32 %v1273, %v1274
        %v1276 = vmax.f32 %v880, %v883
        %v1277 = vrot.slane %v1276, 4
        %v1278 = vmax.f32 %v1276, %v1277
        %v1279 = vrot.slane %v1278, 2
        %v1280 = vmax.f32 %v1278, %v1279
        %v1281 = vrot.slane %v1280, 1
        %v1282 = vmax.f32 %v1280, %v1281
        %v1283 = vmax.f32 %v886, %v889
        %v1284 = vrot.slane %v1283, 4
        %v1285 = vmax.f32 %v1283, %v1284
        %v1286 = vrot.slane %v1285, 2
        %v1287 = vmax.f32 %v1285, %v1286
        %v1288 = vrot.slane %v1287, 1
        %v1289 = vmax.f32 %v1287, %v1288
        %v1290 = vmax.f32 %v892, %v895
        %v1291 = vrot.slane %v1290, 4
        %v1292 = vmax.f32 %v1290, %v1291
        %v1293 = vrot.slane %v1292, 2
        %v1294 = vmax.f32 %v1292, %v1293
        %v1295 = vrot.slane %v1294, 1
        %v1296 = vmax.f32 %v1294, %v1295
        %v1297 = vmax.f32 %v898, %v901
        %v1298 = vrot.slane %v1297, 4
        %v1299 = vmax.f32 %v1297, %v1298
        %v1300 = vrot.slane %v1299, 2
        %v1301 = vmax.f32 %v1299, %v1300
        %v1302 = vrot.slane %v1301, 1
        %v1303 = vmax.f32 %v1301, %v1302
        %v1304 = vmax.f32 %v904, %v907
        %v1305 = vrot.slane %v1304, 4
        %v1306 = vmax.f32 %v1304, %v1305
        %v1307 = vrot.slane %v1306, 2
        %v1308 = vmax.f32 %v1306, %v1307
        %v1309 = vrot.slane %v1308, 1
        %v1310 = vmax.f32 %v1308, %v1309
        %v1311 = vmax.f32 %v910, %v913
        %v1312 = vrot.slane %v1311, 4
        %v1313 = vmax.f32 %v1311, %v1312
        %v1314 = vrot.slane %v1313, 2
        %v1315 = vmax.f32 %v1313, %v1314
        %v1316 = vrot.slane %v1315, 1
        %v1317 = vmax.f32 %v1315, %v1316
        %v1318 = vmax.f32 %v916, %v919
        %v1319 = vrot.slane %v1318, 4
        %v1320 = vmax.f32 %v1318, %v1319
        %v1321 = vrot.slane %v1320, 2
        %v1322 = vmax.f32 %v1320, %v1321
        %v1323 = vrot.slane %v1322, 1
        %v1324 = vmax.f32 %v1322, %v1323
        %v1325 = vmax.f32 %v922, %v925
        %v1326 = vrot.slane %v1325, 4
        %v1327 = vmax.f32 %v1325, %v1326
        %v1328 = vrot.slane %v1327, 2
        %v1329 = vmax.f32 %v1327, %v1328
        %v1330 = vrot.slane %v1329, 1
        %v1331 = vmax.f32 %v1329, %v1330
        %v1332 = vmax.f32 %v928, %v931
        %v1333 = vrot.slane %v1332, 4
        %v1334 = vmax.f32 %v1332, %v1333
        %v1335 = vrot.slane %v1334, 2
        %v1336 = vmax.f32 %v1334, %v1335
        %v1337 = vrot.slane %v1336, 1
        %v1338 = vmax.f32 %v1336, %v1337
        %v1339 = vmax.f32 %v934, %v937
        %v1340 = vrot.slane %v1339, 4
        %v1341 = vmax.f32 %v1339, %v1340
        %v1342 = vrot.slane %v1341, 2
        %v1343 = vmax.f32 %v1341, %v1342
        %v1344 = vrot.slane %v1343, 1
        %v1345 = vmax.f32 %v1343, %v1344
        %v1346 = vmax.f32 %v940, %v943
        %v1347 = vrot.slane %v1346, 4
        %v1348 = vmax.f32 %v1346, %v1347
        %v1349 = vrot.slane %v1348, 2
        %v1350 = vmax.f32 %v1348, %v1349
        %v1351 = vrot.slane %v1350, 1
        %v1352 = vmax.f32 %v1350, %v1351
        %v1353 = vmax.f32 %v946, %v949
        %v1354 = vrot.slane %v1353, 4
        %v1355 = vmax.f32 %v1353, %v1354
        %v1356 = vrot.slane %v1355, 2
        %v1357 = vmax.f32 %v1355, %v1356
        %v1358 = vrot.slane %v1357, 1
        %v1359 = vmax.f32 %v1357, %v1358
        %v1360 = vmax.f32 %v952, %v955
        %v1361 = vrot.slane %v1360, 4
        %v1362 = vmax.f32 %v1360, %v1361
        %v1363 = vrot.slane %v1362, 2
        %v1364 = vmax.f32 %v1362, %v1363
        %v1365 = vrot.slane %v1364, 1
        %v1366 = vmax.f32 %v1364, %v1365
        %v1367 = vmax.f32 %v958, %v961
        %v1368 = vrot.slane %v1367, 4
        %v1369 = vmax.f32 %v1367, %v1368
        %v1370 = vrot.slane %v1369, 2
        %v1371 = vmax.f32 %v1369, %v1370
        %v1372 = vrot.slane %v1371, 1
        %v1373 = vmax.f32 %v1371, %v1372
        %v1374 = vmax.f32 %v964, %v967
        %v1375 = vrot.slane %v1374, 4
        %v1376 = vmax.f32 %v1374, %v1375
        %v1377 = vrot.slane %v1376, 2
        %v1378 = vmax.f32 %v1376, %v1377
        %v1379 = vrot.slane %v1378, 1
        %v1380 = vmax.f32 %v1378, %v1379
        %v1381 = vmax.f32 %v970, %v973
        %v1382 = vrot.slane %v1381, 4
        %v1383 = vmax.f32 %v1381, %v1382
        %v1384 = vrot.slane %v1383, 2
        %v1385 = vmax.f32 %v1383, %v1384
        %v1386 = vrot.slane %v1385, 1
        %v1387 = vmax.f32 %v1385, %v1386
        %v1388 = vmax.f32 %v976, %v979
        %v1389 = vrot.slane %v1388, 4
        %v1390 = vmax.f32 %v1388, %v1389
        %v1391 = vrot.slane %v1390, 2
        %v1392 = vmax.f32 %v1390, %v1391
        %v1393 = vrot.slane %v1392, 1
        %v1394 = vmax.f32 %v1392, %v1393
        %v1395 = vmax.f32 %v982, %v985
        %v1396 = vrot.slane %v1395, 4
        %v1397 = vmax.f32 %v1395, %v1396
        %v1398 = vrot.slane %v1397, 2
        %v1399 = vmax.f32 %v1397, %v1398
        %v1400 = vrot.slane %v1399, 1
        %v1401 = vmax.f32 %v1399, %v1400
        %v1402 = vmax.f32 %v988, %v991
        %v1403 = vrot.slane %v1402, 4
        %v1404 = vmax.f32 %v1402, %v1403
        %v1405 = vrot.slane %v1404, 2
        %v1406 = vmax.f32 %v1404, %v1405
        %v1407 = vrot.slane %v1406, 1
        %v1408 = vmax.f32 %v1406, %v1407
        %v1409 = vmax.f32 %v994, %v997
        %v1410 = vrot.slane %v1409, 4
        %v1411 = vmax.f32 %v1409, %v1410
        %v1412 = vrot.slane %v1411, 2
        %v1413 = vmax.f32 %v1411, %v1412
        %v1414 = vrot.slane %v1413, 1
        %v1415 = vmax.f32 %v1413, %v1414
        %v1416 = vmax.f32 %v1000, %v1003
        %v1417 = vrot.slane %v1416, 4
        %v1418 = vmax.f32 %v1416, %v1417
        %v1419 = vrot.slane %v1418, 2
        %v1420 = vmax.f32 %v1418, %v1419
        %v1421 = vrot.slane %v1420, 1
        %v1422 = vmax.f32 %v1420, %v1421
        %v1423 = vmax.f32 %v1006, %v1009
        %v1424 = vrot.slane %v1423, 4
        %v1425 = vmax.f32 %v1423, %v1424
        %v1426 = vrot.slane %v1425, 2
        %v1427 = vmax.f32 %v1425, %v1426
        %v1428 = vrot.slane %v1427, 1
        %v1429 = vmax.f32 %v1427, %v1428
        %v1430 = vmax.f32 %v1012, %v1015
        %v1431 = vrot.slane %v1430, 4
        %v1432 = vmax.f32 %v1430, %v1431
        %v1433 = vrot.slane %v1432, 2
        %v1434 = vmax.f32 %v1432, %v1433
        %v1435 = vrot.slane %v1434, 1
        %v1436 = vmax.f32 %v1434, %v1435
        %v1437 = vmax.f32 %v1018, %v1021
        %v1438 = vrot.slane %v1437, 4
        %v1439 = vmax.f32 %v1437, %v1438
        %v1440 = vrot.slane %v1439, 2
        %v1441 = vmax.f32 %v1439, %v1440
        %v1442 = vrot.slane %v1441, 1
        %v1443 = vmax.f32 %v1441, %v1442
        %v1444 = vmax.f32 %v1024, %v1027
        %v1445 = vrot.slane %v1444, 4
        %v1446 = vmax.f32 %v1444, %v1445
        %v1447 = vrot.slane %v1446, 2
        %v1448 = vmax.f32 %v1446, %v1447
        %v1449 = vrot.slane %v1448, 1
        %v1450 = vmax.f32 %v1448, %v1449
        %v1451 = vmax.f32 %v1030, %v1033
        %v1452 = vrot.slane %v1451, 4
        %v1453 = vmax.f32 %v1451, %v1452
        %v1454 = vrot.slane %v1453, 2
        %v1455 = vmax.f32 %v1453, %v1454
        %v1456 = vrot.slane %v1455, 1
        %v1457 = vmax.f32 %v1455, %v1456
        %v1458 = vmax.f32 %v1036, %v1039
        %v1459 = vrot.slane %v1458, 4
        %v1460 = vmax.f32 %v1458, %v1459
        %v1461 = vrot.slane %v1460, 2
        %v1462 = vmax.f32 %v1460, %v1461
        %v1463 = vrot.slane %v1462, 1
        %v1464 = vmax.f32 %v1462, %v1463
        %v1465 = vmax.f32 %v1042, %v1045
        %v1466 = vrot.slane %v1465, 4
        %v1467 = vmax.f32 %v1465, %v1466
        %v1468 = vrot.slane %v1467, 2
        %v1469 = vmax.f32 %v1467, %v1468
        %v1470 = vrot.slane %v1469, 1
        %v1471 = vmax.f32 %v1469, %v1470
        %v1472 = vmax.f32 %v1048, %v1051
        %v1473 = vrot.slane %v1472, 4
        %v1474 = vmax.f32 %v1472, %v1473
        %v1475 = vrot.slane %v1474, 2
        %v1476 = vmax.f32 %v1474, %v1475
        %v1477 = vrot.slane %v1476, 1
        %v1478 = vmax.f32 %v1476, %v1477
        %v1479 = vmax.f32 %v1054, %v1057
        %v1480 = vrot.slane %v1479, 4
        %v1481 = vmax.f32 %v1479, %v1480
        %v1482 = vrot.slane %v1481, 2
        %v1483 = vmax.f32 %v1481, %v1482
        %v1484 = vrot.slane %v1483, 1
        %v1485 = vmax.f32 %v1483, %v1484
        %v1486 = vmax.f32 %v1060, %v1063
        %v1487 = vrot.slane %v1486, 4
        %v1488 = vmax.f32 %v1486, %v1487
        %v1489 = vrot.slane %v1488, 2
        %v1490 = vmax.f32 %v1488, %v1489
        %v1491 = vrot.slane %v1490, 1
        %v1492 = vmax.f32 %v1490, %v1491
        %v1493 = vmax.f32 %v1066, %v1069
        %v1494 = vrot.slane %v1493, 4
        %v1495 = vmax.f32 %v1493, %v1494
        %v1496 = vrot.slane %v1495, 2
        %v1497 = vmax.f32 %v1495, %v1496
        %v1498 = vrot.slane %v1497, 1
        %v1499 = vmax.f32 %v1497, %v1498
        %v1500 = vmax.f32 %v1072, %v1075
        %v1501 = vrot.slane %v1500, 4
        %v1502 = vmax.f32 %v1500, %v1501
        %v1503 = vrot.slane %v1502, 2
        %v1504 = vmax.f32 %v1502, %v1503
        %v1505 = vrot.slane %v1504, 1
        %v1506 = vmax.f32 %v1504, %v1505
        %v1507 = vmax.f32 %v1078, %v1081
        %v1508 = vrot.slane %v1507, 4
        %v1509 = vmax.f32 %v1507, %v1508
        %v1510 = vrot.slane %v1509, 2
        %v1511 = vmax.f32 %v1509, %v1510
        %v1512 = vrot.slane %v1511, 1
        %v1513 = vmax.f32 %v1511, %v1512
        %v1514 = vmax.f32 %v1084, %v1087
        %v1515 = vrot.slane %v1514, 4
        %v1516 = vmax.f32 %v1514, %v1515
        %v1517 = vrot.slane %v1516, 2
        %v1518 = vmax.f32 %v1516, %v1517
        %v1519 = vrot.slane %v1518, 1
        %v1520 = vmax.f32 %v1518, %v1519
        %v1521 = vmax.f32 %v1090, %v1093
        %v1522 = vrot.slane %v1521, 4
        %v1523 = vmax.f32 %v1521, %v1522
        %v1524 = vrot.slane %v1523, 2
        %v1525 = vmax.f32 %v1523, %v1524
        %v1526 = vrot.slane %v1525, 1
        %v1527 = vmax.f32 %v1525, %v1526
        %v1528 = vmax.f32 %v1096, %v1099
        %v1529 = vrot.slane %v1528, 4
        %v1530 = vmax.f32 %v1528, %v1529
        %v1531 = vrot.slane %v1530, 2
        %v1532 = vmax.f32 %v1530, %v1531
        %v1533 = vrot.slane %v1532, 1
        %v1534 = vmax.f32 %v1532, %v1533
        %v1535 = vmax.f32 %v1102, %v1105
        %v1536 = vrot.slane %v1535, 4
        %v1537 = vmax.f32 %v1535, %v1536
        %v1538 = vrot.slane %v1537, 2
        %v1539 = vmax.f32 %v1537, %v1538
        %v1540 = vrot.slane %v1539, 1
        %v1541 = vmax.f32 %v1539, %v1540
        %v1542 = vmax.f32 %v1108, %v1111
        %v1543 = vrot.slane %v1542, 4
        %v1544 = vmax.f32 %v1542, %v1543
        %v1545 = vrot.slane %v1544, 2
        %v1546 = vmax.f32 %v1544, %v1545
        %v1547 = vrot.slane %v1546, 1
        %v1548 = vmax.f32 %v1546, %v1547
        %v1549 = vmax.f32 %v1114, %v1117
        %v1550 = vrot.slane %v1549, 4
        %v1551 = vmax.f32 %v1549, %v1550
        %v1552 = vrot.slane %v1551, 2
        %v1553 = vmax.f32 %v1551, %v1552
        %v1554 = vrot.slane %v1553, 1
        %v1555 = vmax.f32 %v1553, %v1554
        %v1556 = vmax.f32 %v1120, %v1123
        %v1557 = vrot.slane %v1556, 4
        %v1558 = vmax.f32 %v1556, %v1557
        %v1559 = vrot.slane %v1558, 2
        %v1560 = vmax.f32 %v1558, %v1559
        %v1561 = vrot.slane %v1560, 1
        %v1562 = vmax.f32 %v1560, %v1561
        %v1563 = vmax.f32 %v1126, %v1129
        %v1564 = vrot.slane %v1563, 4
        %v1565 = vmax.f32 %v1563, %v1564
        %v1566 = vrot.slane %v1565, 2
        %v1567 = vmax.f32 %v1565, %v1566
        %v1568 = vrot.slane %v1567, 1
        %v1569 = vmax.f32 %v1567, %v1568
        %v1570 = vmax.f32 %v1132, %v1135
        %v1571 = vrot.slane %v1570, 4
        %v1572 = vmax.f32 %v1570, %v1571
        %v1573 = vrot.slane %v1572, 2
        %v1574 = vmax.f32 %v1572, %v1573
        %v1575 = vrot.slane %v1574, 1
        %v1576 = vmax.f32 %v1574, %v1575
        %v1577 = vmax.f32 %v1138, %v1141
        %v1578 = vrot.slane %v1577, 4
        %v1579 = vmax.f32 %v1577, %v1578
        %v1580 = vrot.slane %v1579, 2
        %v1581 = vmax.f32 %v1579, %v1580
        %v1582 = vrot.slane %v1581, 1
        %v1583 = vmax.f32 %v1581, %v1582
        %v1584 = vmax.f32 %v1144, %v1147
        %v1585 = vrot.slane %v1584, 4
        %v1586 = vmax.f32 %v1584, %v1585
        %v1587 = vrot.slane %v1586, 2
        %v1588 = vmax.f32 %v1586, %v1587
        %v1589 = vrot.slane %v1588, 1
        %v1590 = vmax.f32 %v1588, %v1589
        %v1591 = vmax.f32 %v1150, %v1153
        %v1592 = vrot.slane %v1591, 4
        %v1593 = vmax.f32 %v1591, %v1592
        %v1594 = vrot.slane %v1593, 2
        %v1595 = vmax.f32 %v1593, %v1594
        %v1596 = vrot.slane %v1595, 1
        %v1597 = vmax.f32 %v1595, %v1596
        %v1598 = vmax.f32 %v1156, %v1159
        %v1599 = vrot.slane %v1598, 4
        %v1600 = vmax.f32 %v1598, %v1599
        %v1601 = vrot.slane %v1600, 2
        %v1602 = vmax.f32 %v1600, %v1601
        %v1603 = vrot.slane %v1602, 1
        %v1604 = vmax.f32 %v1602, %v1603
        %v1605 = vmax.f32 %v1162, %v1165
        %v1606 = vrot.slane %v1605, 4
        %v1607 = vmax.f32 %v1605, %v1606
        %v1608 = vrot.slane %v1607, 2
        %v1609 = vmax.f32 %v1607, %v1608
        %v1610 = vrot.slane %v1609, 1
        %v1611 = vmax.f32 %v1609, %v1610
        %v1612 = vmax.f32 %v1168, %v1171
        %v1613 = vrot.slane %v1612, 4
        %v1614 = vmax.f32 %v1612, %v1613
        %v1615 = vrot.slane %v1614, 2
        %v1616 = vmax.f32 %v1614, %v1615
        %v1617 = vrot.slane %v1616, 1
        %v1618 = vmax.f32 %v1616, %v1617
        %v1619 = vmax.f32 %v1174, %v1177
        %v1620 = vrot.slane %v1619, 4
        %v1621 = vmax.f32 %v1619, %v1620
        %v1622 = vrot.slane %v1621, 2
        %v1623 = vmax.f32 %v1621, %v1622
        %v1624 = vrot.slane %v1623, 1
        %v1625 = vmax.f32 %v1623, %v1624
        %v1626 = vmax.f32 %v1180, %v1183
        %v1627 = vrot.slane %v1626, 4
        %v1628 = vmax.f32 %v1626, %v1627
        %v1629 = vrot.slane %v1628, 2
        %v1630 = vmax.f32 %v1628, %v1629
        %v1631 = vrot.slane %v1630, 1
        %v1632 = vmax.f32 %v1630, %v1631
        %v1633 = vmax.f32 %v1186, %v1189
        %v1634 = vrot.slane %v1633, 4
        %v1635 = vmax.f32 %v1633, %v1634
        %v1636 = vrot.slane %v1635, 2
        %v1637 = vmax.f32 %v1635, %v1636
        %v1638 = vrot.slane %v1637, 1
        %v1639 = vmax.f32 %v1637, %v1638
        %v1768 = vlaneseq
        %v1769 = vand.u32 %v1768, 127
        %v1770 = vlaneseq
        %v1771 = vshrl.u32 %v1770, 7
        %v1772 = vsub.s32 %v1769, %v1771
        %v1773 = vrot.slane %v810, %v1772
        %v1774 = vadd.s32 %v1769, 4294967288
        %v1775 = vlaneseq
        %v1776 = vshrl.u32 %v1775, 7
        %v1777 = vsub.s32 %v1774, %v1776
        %v1778 = vrot.slane %v813, %v1777
        %vm1779 = vcmask 130112
        %v1780 = vsel %vm1779, %v1778, %v1773
        %v1781 = vlaneseq
        %v1782 = vshrl.u32 %v1781, 7
        %v1783 = vsub.s32 %v1769, %v1782
        %v1784 = vrot.slane %v816, %v1783
        %v1785 = vlaneseq
        %v1786 = vshrl.u32 %v1785, 7
        %v1787 = vsub.s32 %v1774, %v1786
        %v1788 = vrot.slane %v819, %v1787
        %v1789 = vsel %vm1779, %v1788, %v1784
        %v1790 = vlaneseq
        %v1791 = vshrl.u32 %v1790, 7
        %v1792 = vsub.s32 %v1769, %v1791
        %v1793 = vrot.slane %v822, %v1792
        %v1794 = vlaneseq
        %v1795 = vshrl.u32 %v1794, 7
        %v1796 = vsub.s32 %v1774, %v1795
        %v1797 = vrot.slane %v825, %v1796
        %v1798 = vsel %vm1779, %v1797, %v1793
        %v1799 = vlaneseq
        %v1800 = vshrl.u32 %v1799, 7
        %v1801 = vsub.s32 %v1769, %v1800
        %v1802 = vrot.slane %v828, %v1801
        %v1803 = vlaneseq
        %v1804 = vshrl.u32 %v1803, 7
        %v1805 = vsub.s32 %v1774, %v1804
        %v1806 = vrot.slane %v831, %v1805
        %v1807 = vsel %vm1779, %v1806, %v1802
        %v1808 = vlaneseq
        %v1809 = vshrl.u32 %v1808, 7
        %v1810 = vsub.s32 %v1769, %v1809
        %v1811 = vrot.slane %v834, %v1810
        %v1812 = vlaneseq
        %v1813 = vshrl.u32 %v1812, 7
        %v1814 = vsub.s32 %v1774, %v1813
        %v1815 = vrot.slane %v837, %v1814
        %v1816 = vsel %vm1779, %v1815, %v1811
        %v1817 = vlaneseq
        %v1818 = vshrl.u32 %v1817, 7
        %v1819 = vsub.s32 %v1769, %v1818
        %v1820 = vrot.slane %v840, %v1819
        %v1821 = vlaneseq
        %v1822 = vshrl.u32 %v1821, 7
        %v1823 = vsub.s32 %v1774, %v1822
        %v1824 = vrot.slane %v843, %v1823
        %v1825 = vsel %vm1779, %v1824, %v1820
        %v1826 = vlaneseq
        %v1827 = vshrl.u32 %v1826, 7
        %v1828 = vsub.s32 %v1769, %v1827
        %v1829 = vrot.slane %v846, %v1828
        %v1830 = vlaneseq
        %v1831 = vshrl.u32 %v1830, 7
        %v1832 = vsub.s32 %v1774, %v1831
        %v1833 = vrot.slane %v849, %v1832
        %v1834 = vsel %vm1779, %v1833, %v1829
        %v1835 = vlaneseq
        %v1836 = vshrl.u32 %v1835, 7
        %v1837 = vsub.s32 %v1769, %v1836
        %v1838 = vrot.slane %v852, %v1837
        %v1839 = vlaneseq
        %v1840 = vshrl.u32 %v1839, 7
        %v1841 = vsub.s32 %v1774, %v1840
        %v1842 = vrot.slane %v855, %v1841
        %v1843 = vsel %vm1779, %v1842, %v1838
        %v1844 = vlaneseq
        %v1845 = vshrl.u32 %v1844, 7
        %v1846 = vsub.s32 %v1769, %v1845
        %v1847 = vrot.slane %v858, %v1846
        %v1848 = vlaneseq
        %v1849 = vshrl.u32 %v1848, 7
        %v1850 = vsub.s32 %v1774, %v1849
        %v1851 = vrot.slane %v861, %v1850
        %v1852 = vsel %vm1779, %v1851, %v1847
        %v1853 = vlaneseq
        %v1854 = vshrl.u32 %v1853, 7
        %v1855 = vsub.s32 %v1769, %v1854
        %v1856 = vrot.slane %v864, %v1855
        %v1857 = vlaneseq
        %v1858 = vshrl.u32 %v1857, 7
        %v1859 = vsub.s32 %v1774, %v1858
        %v1860 = vrot.slane %v867, %v1859
        %v1861 = vsel %vm1779, %v1860, %v1856
        %v1862 = vlaneseq
        %v1863 = vshrl.u32 %v1862, 7
        %v1864 = vsub.s32 %v1769, %v1863
        %v1865 = vrot.slane %v870, %v1864
        %v1866 = vlaneseq
        %v1867 = vshrl.u32 %v1866, 7
        %v1868 = vsub.s32 %v1774, %v1867
        %v1869 = vrot.slane %v873, %v1868
        %v1870 = vsel %vm1779, %v1869, %v1865
        %v1871 = vlaneseq
        %v1872 = vshrl.u32 %v1871, 7
        %v1873 = vsub.s32 %v1769, %v1872
        %v1874 = vrot.slane %v876, %v1873
        %v1875 = vlaneseq
        %v1876 = vshrl.u32 %v1875, 7
        %v1877 = vsub.s32 %v1774, %v1876
        %v1878 = vrot.slane %v879, %v1877
        %v1879 = vsel %vm1779, %v1878, %v1874
        %v1880 = vlaneseq
        %v1881 = vshrl.u32 %v1880, 7
        %v1882 = vsub.s32 %v1769, %v1881
        %v1883 = vrot.slane %v882, %v1882
        %v1884 = vlaneseq
        %v1885 = vshrl.u32 %v1884, 7
        %v1886 = vsub.s32 %v1774, %v1885
        %v1887 = vrot.slane %v885, %v1886
        %v1888 = vsel %vm1779, %v1887, %v1883
        %v1889 = vlaneseq
        %v1890 = vshrl.u32 %v1889, 7
        %v1891 = vsub.s32 %v1769, %v1890
        %v1892 = vrot.slane %v888, %v1891
        %v1893 = vlaneseq
        %v1894 = vshrl.u32 %v1893, 7
        %v1895 = vsub.s32 %v1774, %v1894
        %v1896 = vrot.slane %v891, %v1895
        %v1897 = vsel %vm1779, %v1896, %v1892
        %v1898 = vlaneseq
        %v1899 = vshrl.u32 %v1898, 7
        %v1900 = vsub.s32 %v1769, %v1899
        %v1901 = vrot.slane %v894, %v1900
        %v1902 = vlaneseq
        %v1903 = vshrl.u32 %v1902, 7
        %v1904 = vsub.s32 %v1774, %v1903
        %v1905 = vrot.slane %v897, %v1904
        %v1906 = vsel %vm1779, %v1905, %v1901
        %v1907 = vlaneseq
        %v1908 = vshrl.u32 %v1907, 7
        %v1909 = vsub.s32 %v1769, %v1908
        %v1910 = vrot.slane %v900, %v1909
        %v1911 = vlaneseq
        %v1912 = vshrl.u32 %v1911, 7
        %v1913 = vsub.s32 %v1774, %v1912
        %v1914 = vrot.slane %v903, %v1913
        %v1915 = vsel %vm1779, %v1914, %v1910
        %v1916 = vlaneseq
        %v1917 = vshrl.u32 %v1916, 7
        %v1918 = vsub.s32 %v1769, %v1917
        %v1919 = vrot.slane %v906, %v1918
        %v1920 = vlaneseq
        %v1921 = vshrl.u32 %v1920, 7
        %v1922 = vsub.s32 %v1774, %v1921
        %v1923 = vrot.slane %v909, %v1922
        %v1924 = vsel %vm1779, %v1923, %v1919
        %v1925 = vlaneseq
        %v1926 = vshrl.u32 %v1925, 7
        %v1927 = vsub.s32 %v1769, %v1926
        %v1928 = vrot.slane %v912, %v1927
        %v1929 = vlaneseq
        %v1930 = vshrl.u32 %v1929, 7
        %v1931 = vsub.s32 %v1774, %v1930
        %v1932 = vrot.slane %v915, %v1931
        %v1933 = vsel %vm1779, %v1932, %v1928
        %v1934 = vlaneseq
        %v1935 = vshrl.u32 %v1934, 7
        %v1936 = vsub.s32 %v1769, %v1935
        %v1937 = vrot.slane %v918, %v1936
        %v1938 = vlaneseq
        %v1939 = vshrl.u32 %v1938, 7
        %v1940 = vsub.s32 %v1774, %v1939
        %v1941 = vrot.slane %v921, %v1940
        %v1942 = vsel %vm1779, %v1941, %v1937
        %v1943 = vlaneseq
        %v1944 = vshrl.u32 %v1943, 7
        %v1945 = vsub.s32 %v1769, %v1944
        %v1946 = vrot.slane %v924, %v1945
        %v1947 = vlaneseq
        %v1948 = vshrl.u32 %v1947, 7
        %v1949 = vsub.s32 %v1774, %v1948
        %v1950 = vrot.slane %v927, %v1949
        %v1951 = vsel %vm1779, %v1950, %v1946
        %v1952 = vlaneseq
        %v1953 = vshrl.u32 %v1952, 7
        %v1954 = vsub.s32 %v1769, %v1953
        %v1955 = vrot.slane %v930, %v1954
        %v1956 = vlaneseq
        %v1957 = vshrl.u32 %v1956, 7
        %v1958 = vsub.s32 %v1774, %v1957
        %v1959 = vrot.slane %v933, %v1958
        %v1960 = vsel %vm1779, %v1959, %v1955
        %v1961 = vlaneseq
        %v1962 = vshrl.u32 %v1961, 7
        %v1963 = vsub.s32 %v1769, %v1962
        %v1964 = vrot.slane %v936, %v1963
        %v1965 = vlaneseq
        %v1966 = vshrl.u32 %v1965, 7
        %v1967 = vsub.s32 %v1774, %v1966
        %v1968 = vrot.slane %v939, %v1967
        %v1969 = vsel %vm1779, %v1968, %v1964
        %v1970 = vlaneseq
        %v1971 = vshrl.u32 %v1970, 7
        %v1972 = vsub.s32 %v1769, %v1971
        %v1973 = vrot.slane %v942, %v1972
        %v1974 = vlaneseq
        %v1975 = vshrl.u32 %v1974, 7
        %v1976 = vsub.s32 %v1774, %v1975
        %v1977 = vrot.slane %v945, %v1976
        %v1978 = vsel %vm1779, %v1977, %v1973
        %v1979 = vlaneseq
        %v1980 = vshrl.u32 %v1979, 7
        %v1981 = vsub.s32 %v1769, %v1980
        %v1982 = vrot.slane %v948, %v1981
        %v1983 = vlaneseq
        %v1984 = vshrl.u32 %v1983, 7
        %v1985 = vsub.s32 %v1774, %v1984
        %v1986 = vrot.slane %v951, %v1985
        %v1987 = vsel %vm1779, %v1986, %v1982
        %v1988 = vlaneseq
        %v1989 = vshrl.u32 %v1988, 7
        %v1990 = vsub.s32 %v1769, %v1989
        %v1991 = vrot.slane %v954, %v1990
        %v1992 = vlaneseq
        %v1993 = vshrl.u32 %v1992, 7
        %v1994 = vsub.s32 %v1774, %v1993
        %v1995 = vrot.slane %v957, %v1994
        %v1996 = vsel %vm1779, %v1995, %v1991
        %v1997 = vlaneseq
        %v1998 = vshrl.u32 %v1997, 7
        %v1999 = vsub.s32 %v1769, %v1998
        %v2000 = vrot.slane %v960, %v1999
        %v2001 = vlaneseq
        %v2002 = vshrl.u32 %v2001, 7
        %v2003 = vsub.s32 %v1774, %v2002
        %v2004 = vrot.slane %v963, %v2003
        %v2005 = vsel %vm1779, %v2004, %v2000
        %v2006 = vlaneseq
        %v2007 = vshrl.u32 %v2006, 7
        %v2008 = vsub.s32 %v1769, %v2007
        %v2009 = vrot.slane %v966, %v2008
        %v2010 = vlaneseq
        %v2011 = vshrl.u32 %v2010, 7
        %v2012 = vsub.s32 %v1774, %v2011
        %v2013 = vrot.slane %v969, %v2012
        %v2014 = vsel %vm1779, %v2013, %v2009
        %v2015 = vlaneseq
        %v2016 = vshrl.u32 %v2015, 7
        %v2017 = vsub.s32 %v1769, %v2016
        %v2018 = vrot.slane %v972, %v2017
        %v2019 = vlaneseq
        %v2020 = vshrl.u32 %v2019, 7
        %v2021 = vsub.s32 %v1774, %v2020
        %v2022 = vrot.slane %v975, %v2021
        %v2023 = vsel %vm1779, %v2022, %v2018
        %v2024 = vlaneseq
        %v2025 = vshrl.u32 %v2024, 7
        %v2026 = vsub.s32 %v1769, %v2025
        %v2027 = vrot.slane %v978, %v2026
        %v2028 = vlaneseq
        %v2029 = vshrl.u32 %v2028, 7
        %v2030 = vsub.s32 %v1774, %v2029
        %v2031 = vrot.slane %v981, %v2030
        %v2032 = vsel %vm1779, %v2031, %v2027
        %v2033 = vlaneseq
        %v2034 = vshrl.u32 %v2033, 7
        %v2035 = vsub.s32 %v1769, %v2034
        %v2036 = vrot.slane %v984, %v2035
        %v2037 = vlaneseq
        %v2038 = vshrl.u32 %v2037, 7
        %v2039 = vsub.s32 %v1774, %v2038
        %v2040 = vrot.slane %v987, %v2039
        %v2041 = vsel %vm1779, %v2040, %v2036
        %v2042 = vlaneseq
        %v2043 = vshrl.u32 %v2042, 7
        %v2044 = vsub.s32 %v1769, %v2043
        %v2045 = vrot.slane %v990, %v2044
        %v2046 = vlaneseq
        %v2047 = vshrl.u32 %v2046, 7
        %v2048 = vsub.s32 %v1774, %v2047
        %v2049 = vrot.slane %v993, %v2048
        %v2050 = vsel %vm1779, %v2049, %v2045
        %v2051 = vlaneseq
        %v2052 = vshrl.u32 %v2051, 7
        %v2053 = vsub.s32 %v1769, %v2052
        %v2054 = vrot.slane %v996, %v2053
        %v2055 = vlaneseq
        %v2056 = vshrl.u32 %v2055, 7
        %v2057 = vsub.s32 %v1774, %v2056
        %v2058 = vrot.slane %v999, %v2057
        %v2059 = vsel %vm1779, %v2058, %v2054
        %v2060 = vlaneseq
        %v2061 = vshrl.u32 %v2060, 7
        %v2062 = vsub.s32 %v1769, %v2061
        %v2063 = vrot.slane %v1002, %v2062
        %v2064 = vlaneseq
        %v2065 = vshrl.u32 %v2064, 7
        %v2066 = vsub.s32 %v1774, %v2065
        %v2067 = vrot.slane %v1005, %v2066
        %v2068 = vsel %vm1779, %v2067, %v2063
        %v2069 = vlaneseq
        %v2070 = vshrl.u32 %v2069, 7
        %v2071 = vsub.s32 %v1769, %v2070
        %v2072 = vrot.slane %v1008, %v2071
        %v2073 = vlaneseq
        %v2074 = vshrl.u32 %v2073, 7
        %v2075 = vsub.s32 %v1774, %v2074
        %v2076 = vrot.slane %v1011, %v2075
        %v2077 = vsel %vm1779, %v2076, %v2072
        %v2078 = vlaneseq
        %v2079 = vshrl.u32 %v2078, 7
        %v2080 = vsub.s32 %v1769, %v2079
        %v2081 = vrot.slane %v1014, %v2080
        %v2082 = vlaneseq
        %v2083 = vshrl.u32 %v2082, 7
        %v2084 = vsub.s32 %v1774, %v2083
        %v2085 = vrot.slane %v1017, %v2084
        %v2086 = vsel %vm1779, %v2085, %v2081
        %v2087 = vlaneseq
        %v2088 = vshrl.u32 %v2087, 7
        %v2089 = vsub.s32 %v1769, %v2088
        %v2090 = vrot.slane %v1020, %v2089
        %v2091 = vlaneseq
        %v2092 = vshrl.u32 %v2091, 7
        %v2093 = vsub.s32 %v1774, %v2092
        %v2094 = vrot.slane %v1023, %v2093
        %v2095 = vsel %vm1779, %v2094, %v2090
        %v2096 = vlaneseq
        %v2097 = vshrl.u32 %v2096, 7
        %v2098 = vsub.s32 %v1769, %v2097
        %v2099 = vrot.slane %v1026, %v2098
        %v2100 = vlaneseq
        %v2101 = vshrl.u32 %v2100, 7
        %v2102 = vsub.s32 %v1774, %v2101
        %v2103 = vrot.slane %v1029, %v2102
        %v2104 = vsel %vm1779, %v2103, %v2099
        %v2105 = vlaneseq
        %v2106 = vshrl.u32 %v2105, 7
        %v2107 = vsub.s32 %v1769, %v2106
        %v2108 = vrot.slane %v1032, %v2107
        %v2109 = vlaneseq
        %v2110 = vshrl.u32 %v2109, 7
        %v2111 = vsub.s32 %v1774, %v2110
        %v2112 = vrot.slane %v1035, %v2111
        %v2113 = vsel %vm1779, %v2112, %v2108
        %v2114 = vlaneseq
        %v2115 = vshrl.u32 %v2114, 7
        %v2116 = vsub.s32 %v1769, %v2115
        %v2117 = vrot.slane %v1038, %v2116
        %v2118 = vlaneseq
        %v2119 = vshrl.u32 %v2118, 7
        %v2120 = vsub.s32 %v1774, %v2119
        %v2121 = vrot.slane %v1041, %v2120
        %v2122 = vsel %vm1779, %v2121, %v2117
        %v2123 = vlaneseq
        %v2124 = vshrl.u32 %v2123, 7
        %v2125 = vsub.s32 %v1769, %v2124
        %v2126 = vrot.slane %v1044, %v2125
        %v2127 = vlaneseq
        %v2128 = vshrl.u32 %v2127, 7
        %v2129 = vsub.s32 %v1774, %v2128
        %v2130 = vrot.slane %v1047, %v2129
        %v2131 = vsel %vm1779, %v2130, %v2126
        %v2132 = vlaneseq
        %v2133 = vshrl.u32 %v2132, 7
        %v2134 = vsub.s32 %v1769, %v2133
        %v2135 = vrot.slane %v1050, %v2134
        %v2136 = vlaneseq
        %v2137 = vshrl.u32 %v2136, 7
        %v2138 = vsub.s32 %v1774, %v2137
        %v2139 = vrot.slane %v1053, %v2138
        %v2140 = vsel %vm1779, %v2139, %v2135
        %v2141 = vlaneseq
        %v2142 = vshrl.u32 %v2141, 7
        %v2143 = vsub.s32 %v1769, %v2142
        %v2144 = vrot.slane %v1056, %v2143
        %v2145 = vlaneseq
        %v2146 = vshrl.u32 %v2145, 7
        %v2147 = vsub.s32 %v1774, %v2146
        %v2148 = vrot.slane %v1059, %v2147
        %v2149 = vsel %vm1779, %v2148, %v2144
        %v2150 = vlaneseq
        %v2151 = vshrl.u32 %v2150, 7
        %v2152 = vsub.s32 %v1769, %v2151
        %v2153 = vrot.slane %v1062, %v2152
        %v2154 = vlaneseq
        %v2155 = vshrl.u32 %v2154, 7
        %v2156 = vsub.s32 %v1774, %v2155
        %v2157 = vrot.slane %v1065, %v2156
        %v2158 = vsel %vm1779, %v2157, %v2153
        %v2159 = vlaneseq
        %v2160 = vshrl.u32 %v2159, 7
        %v2161 = vsub.s32 %v1769, %v2160
        %v2162 = vrot.slane %v1068, %v2161
        %v2163 = vlaneseq
        %v2164 = vshrl.u32 %v2163, 7
        %v2165 = vsub.s32 %v1774, %v2164
        %v2166 = vrot.slane %v1071, %v2165
        %v2167 = vsel %vm1779, %v2166, %v2162
        %v2168 = vlaneseq
        %v2169 = vshrl.u32 %v2168, 7
        %v2170 = vsub.s32 %v1769, %v2169
        %v2171 = vrot.slane %v1074, %v2170
        %v2172 = vlaneseq
        %v2173 = vshrl.u32 %v2172, 7
        %v2174 = vsub.s32 %v1774, %v2173
        %v2175 = vrot.slane %v1077, %v2174
        %v2176 = vsel %vm1779, %v2175, %v2171
        %v2177 = vlaneseq
        %v2178 = vshrl.u32 %v2177, 7
        %v2179 = vsub.s32 %v1769, %v2178
        %v2180 = vrot.slane %v1080, %v2179
        %v2181 = vlaneseq
        %v2182 = vshrl.u32 %v2181, 7
        %v2183 = vsub.s32 %v1774, %v2182
        %v2184 = vrot.slane %v1083, %v2183
        %v2185 = vsel %vm1779, %v2184, %v2180
        %v2186 = vlaneseq
        %v2187 = vshrl.u32 %v2186, 7
        %v2188 = vsub.s32 %v1769, %v2187
        %v2189 = vrot.slane %v1086, %v2188
        %v2190 = vlaneseq
        %v2191 = vshrl.u32 %v2190, 7
        %v2192 = vsub.s32 %v1774, %v2191
        %v2193 = vrot.slane %v1089, %v2192
        %v2194 = vsel %vm1779, %v2193, %v2189
        %v2195 = vlaneseq
        %v2196 = vshrl.u32 %v2195, 7
        %v2197 = vsub.s32 %v1769, %v2196
        %v2198 = vrot.slane %v1092, %v2197
        %v2199 = vlaneseq
        %v2200 = vshrl.u32 %v2199, 7
        %v2201 = vsub.s32 %v1774, %v2200
        %v2202 = vrot.slane %v1095, %v2201
        %v2203 = vsel %vm1779, %v2202, %v2198
        %v2204 = vlaneseq
        %v2205 = vshrl.u32 %v2204, 7
        %v2206 = vsub.s32 %v1769, %v2205
        %v2207 = vrot.slane %v1098, %v2206
        %v2208 = vlaneseq
        %v2209 = vshrl.u32 %v2208, 7
        %v2210 = vsub.s32 %v1774, %v2209
        %v2211 = vrot.slane %v1101, %v2210
        %v2212 = vsel %vm1779, %v2211, %v2207
        %v2213 = vlaneseq
        %v2214 = vshrl.u32 %v2213, 7
        %v2215 = vsub.s32 %v1769, %v2214
        %v2216 = vrot.slane %v1104, %v2215
        %v2217 = vlaneseq
        %v2218 = vshrl.u32 %v2217, 7
        %v2219 = vsub.s32 %v1774, %v2218
        %v2220 = vrot.slane %v1107, %v2219
        %v2221 = vsel %vm1779, %v2220, %v2216
        %v2222 = vlaneseq
        %v2223 = vshrl.u32 %v2222, 7
        %v2224 = vsub.s32 %v1769, %v2223
        %v2225 = vrot.slane %v1110, %v2224
        %v2226 = vlaneseq
        %v2227 = vshrl.u32 %v2226, 7
        %v2228 = vsub.s32 %v1774, %v2227
        %v2229 = vrot.slane %v1113, %v2228
        %v2230 = vsel %vm1779, %v2229, %v2225
        %v2231 = vlaneseq
        %v2232 = vshrl.u32 %v2231, 7
        %v2233 = vsub.s32 %v1769, %v2232
        %v2234 = vrot.slane %v1116, %v2233
        %v2235 = vlaneseq
        %v2236 = vshrl.u32 %v2235, 7
        %v2237 = vsub.s32 %v1774, %v2236
        %v2238 = vrot.slane %v1119, %v2237
        %v2239 = vsel %vm1779, %v2238, %v2234
        %v2240 = vlaneseq
        %v2241 = vshrl.u32 %v2240, 7
        %v2242 = vsub.s32 %v1769, %v2241
        %v2243 = vrot.slane %v1122, %v2242
        %v2244 = vlaneseq
        %v2245 = vshrl.u32 %v2244, 7
        %v2246 = vsub.s32 %v1774, %v2245
        %v2247 = vrot.slane %v1125, %v2246
        %v2248 = vsel %vm1779, %v2247, %v2243
        %v2249 = vlaneseq
        %v2250 = vshrl.u32 %v2249, 7
        %v2251 = vsub.s32 %v1769, %v2250
        %v2252 = vrot.slane %v1128, %v2251
        %v2253 = vlaneseq
        %v2254 = vshrl.u32 %v2253, 7
        %v2255 = vsub.s32 %v1774, %v2254
        %v2256 = vrot.slane %v1131, %v2255
        %v2257 = vsel %vm1779, %v2256, %v2252
        %v2258 = vlaneseq
        %v2259 = vshrl.u32 %v2258, 7
        %v2260 = vsub.s32 %v1769, %v2259
        %v2261 = vrot.slane %v1134, %v2260
        %v2262 = vlaneseq
        %v2263 = vshrl.u32 %v2262, 7
        %v2264 = vsub.s32 %v1774, %v2263
        %v2265 = vrot.slane %v1137, %v2264
        %v2266 = vsel %vm1779, %v2265, %v2261
        %v2267 = vlaneseq
        %v2268 = vshrl.u32 %v2267, 7
        %v2269 = vsub.s32 %v1769, %v2268
        %v2270 = vrot.slane %v1140, %v2269
        %v2271 = vlaneseq
        %v2272 = vshrl.u32 %v2271, 7
        %v2273 = vsub.s32 %v1774, %v2272
        %v2274 = vrot.slane %v1143, %v2273
        %v2275 = vsel %vm1779, %v2274, %v2270
        %v2276 = vlaneseq
        %v2277 = vshrl.u32 %v2276, 7
        %v2278 = vsub.s32 %v1769, %v2277
        %v2279 = vrot.slane %v1146, %v2278
        %v2280 = vlaneseq
        %v2281 = vshrl.u32 %v2280, 7
        %v2282 = vsub.s32 %v1774, %v2281
        %v2283 = vrot.slane %v1149, %v2282
        %v2284 = vsel %vm1779, %v2283, %v2279
        %v2285 = vlaneseq
        %v2286 = vshrl.u32 %v2285, 7
        %v2287 = vsub.s32 %v1769, %v2286
        %v2288 = vrot.slane %v1152, %v2287
        %v2289 = vlaneseq
        %v2290 = vshrl.u32 %v2289, 7
        %v2291 = vsub.s32 %v1774, %v2290
        %v2292 = vrot.slane %v1155, %v2291
        %v2293 = vsel %vm1779, %v2292, %v2288
        %v2294 = vlaneseq
        %v2295 = vshrl.u32 %v2294, 7
        %v2296 = vsub.s32 %v1769, %v2295
        %v2297 = vrot.slane %v1158, %v2296
        %v2298 = vlaneseq
        %v2299 = vshrl.u32 %v2298, 7
        %v2300 = vsub.s32 %v1774, %v2299
        %v2301 = vrot.slane %v1161, %v2300
        %v2302 = vsel %vm1779, %v2301, %v2297
        %v2303 = vlaneseq
        %v2304 = vshrl.u32 %v2303, 7
        %v2305 = vsub.s32 %v1769, %v2304
        %v2306 = vrot.slane %v1164, %v2305
        %v2307 = vlaneseq
        %v2308 = vshrl.u32 %v2307, 7
        %v2309 = vsub.s32 %v1774, %v2308
        %v2310 = vrot.slane %v1167, %v2309
        %v2311 = vsel %vm1779, %v2310, %v2306
        %v2312 = vlaneseq
        %v2313 = vshrl.u32 %v2312, 7
        %v2314 = vsub.s32 %v1769, %v2313
        %v2315 = vrot.slane %v1170, %v2314
        %v2316 = vlaneseq
        %v2317 = vshrl.u32 %v2316, 7
        %v2318 = vsub.s32 %v1774, %v2317
        %v2319 = vrot.slane %v1173, %v2318
        %v2320 = vsel %vm1779, %v2319, %v2315
        %v2321 = vlaneseq
        %v2322 = vshrl.u32 %v2321, 7
        %v2323 = vsub.s32 %v1769, %v2322
        %v2324 = vrot.slane %v1176, %v2323
        %v2325 = vlaneseq
        %v2326 = vshrl.u32 %v2325, 7
        %v2327 = vsub.s32 %v1774, %v2326
        %v2328 = vrot.slane %v1179, %v2327
        %v2329 = vsel %vm1779, %v2328, %v2324
        %v2330 = vlaneseq
        %v2331 = vshrl.u32 %v2330, 7
        %v2332 = vsub.s32 %v1769, %v2331
        %v2333 = vrot.slane %v1182, %v2332
        %v2334 = vlaneseq
        %v2335 = vshrl.u32 %v2334, 7
        %v2336 = vsub.s32 %v1774, %v2335
        %v2337 = vrot.slane %v1185, %v2336
        %v2338 = vsel %vm1779, %v2337, %v2333
        %v2339 = vlaneseq
        %v2340 = vshrl.u32 %v2339, 7
        %v2341 = vsub.s32 %v1769, %v2340
        %v2342 = vrot.slane %v1188, %v2341
        %v2343 = vlaneseq
        %v2344 = vshrl.u32 %v2343, 7
        %v2345 = vsub.s32 %v1774, %v2344
        %v2346 = vrot.slane %v1191, %v2345
        %v2347 = vsel %vm1779, %v2346, %v2342
        %vm2348 = vcmask 1041409
        %v2349 = vsel %vm2348, %v1789, %v1780
        %vm2350 = vcmask 1042434
        %v2351 = vsel %vm2350, %v1798, %v2349
        %vm2352 = vcmask 1043459
        %v2353 = vsel %vm2352, %v1807, %v2351
        %vm2354 = vcmask 1044484
        %v2355 = vsel %vm2354, %v1816, %v2353
        %vm2356 = vcmask 1045509
        %v2357 = vsel %vm2356, %v1825, %v2355
        %vm2358 = vcmask 1046534
        %v2359 = vsel %vm2358, %v1834, %v2357
        %vm2360 = vcmask 1047559
        %v2361 = vsel %vm2360, %v1843, %v2359
        %v2362 = vsel %vm2348, %v1861, %v1852
        %v2363 = vsel %vm2350, %v1870, %v2362
        %v2364 = vsel %vm2352, %v1879, %v2363
        %v2365 = vsel %vm2354, %v1888, %v2364
        %v2366 = vsel %vm2356, %v1897, %v2365
        %v2367 = vsel %vm2358, %v1906, %v2366
        %v2368 = vsel %vm2360, %v1915, %v2367
        %v2369 = vsel %vm2348, %v1933, %v1924
        %v2370 = vsel %vm2350, %v1942, %v2369
        %v2371 = vsel %vm2352, %v1951, %v2370
        %v2372 = vsel %vm2354, %v1960, %v2371
        %v2373 = vsel %vm2356, %v1969, %v2372
        %v2374 = vsel %vm2358, %v1978, %v2373
        %v2375 = vsel %vm2360, %v1987, %v2374
        %v2376 = vsel %vm2348, %v2005, %v1996
        %v2377 = vsel %vm2350, %v2014, %v2376
        %v2378 = vsel %vm2352, %v2023, %v2377
        %v2379 = vsel %vm2354, %v2032, %v2378
        %v2380 = vsel %vm2356, %v2041, %v2379
        %v2381 = vsel %vm2358, %v2050, %v2380
        %v2382 = vsel %vm2360, %v2059, %v2381
        %v2383 = vsel %vm2348, %v2077, %v2068
        %v2384 = vsel %vm2350, %v2086, %v2383
        %v2385 = vsel %vm2352, %v2095, %v2384
        %v2386 = vsel %vm2354, %v2104, %v2385
        %v2387 = vsel %vm2356, %v2113, %v2386
        %v2388 = vsel %vm2358, %v2122, %v2387
        %v2389 = vsel %vm2360, %v2131, %v2388
        %v2390 = vsel %vm2348, %v2149, %v2140
        %v2391 = vsel %vm2350, %v2158, %v2390
        %v2392 = vsel %vm2352, %v2167, %v2391
        %v2393 = vsel %vm2354, %v2176, %v2392
        %v2394 = vsel %vm2356, %v2185, %v2393
        %v2395 = vsel %vm2358, %v2194, %v2394
        %v2396 = vsel %vm2360, %v2203, %v2395
        %v2397 = vsel %vm2348, %v2221, %v2212
        %v2398 = vsel %vm2350, %v2230, %v2397
        %v2399 = vsel %vm2352, %v2239, %v2398
        %v2400 = vsel %vm2354, %v2248, %v2399
        %v2401 = vsel %vm2356, %v2257, %v2400
        %v2402 = vsel %vm2358, %v2266, %v2401
        %v2403 = vsel %vm2360, %v2275, %v2402
        %v2404 = vsel %vm2348, %v2293, %v2284
        %v2405 = vsel %vm2350, %v2302, %v2404
        %v2406 = vsel %vm2352, %v2311, %v2405
        %v2407 = vsel %vm2354, %v2320, %v2406
        %v2408 = vsel %vm2356, %v2329, %v2407
        %v2409 = vsel %vm2358, %v2338, %v2408
        %v2410 = vsel %vm2360, %v2347, %v2409
        %v2419 = vld [vmem:[%s6] sm:$0xff]
        %v2420 = vld [vmem:[%s6 + $0x8] sm:$0xff]
        %v2421 = vld [vmem:[%s6 + $0x10] sm:$0xff]
        %v2422 = vld [vmem:[%s6 + $0x18] sm:$0xff]
        %v2423 = vld [vmem:[%s7] sm:$0xff]
        %v2424 = vld [vmem:[%s7 + $0x8] sm:$0xff]
        %v2425 = vld [vmem:[%s7 + $0x10] sm:$0xff]
        %v2426 = vld [vmem:[%s7 + $0x18] sm:$0xff]
        %2428 = vset.pattern.permute.xlu0 0
        %2429 = vperm.xlu0 %2428, %v2423
        %v2430 = vpop.permute.xlu0 %2429
        %2433 = vset.pattern.permute.xlu0 0
        %2434 = vperm.xlu0 %2433, %v2424
        %v2435 = vpop.permute.xlu0 %2434
        %2438 = vset.pattern.permute.xlu0 0
        %2439 = vperm.xlu0 %2438, %v2425
        %v2440 = vpop.permute.xlu0 %2439
        %2443 = vset.pattern.permute.xlu0 0
        %2444 = vperm.xlu0 %2443, %v2426
        %v2445 = vpop.permute.xlu0 %2444
        %2447 = vmatprep.subr.mxu0 0.0
        %2448 = vmatpush1.msra.mxu0 %v632
        %2449 = vmatprep.subr.mxu0 0.0
        %2450 = vmatpush1.msra.mxu0 %v637
        %2451 = vmatprep.subr.mxu0 0.0
        %2452 = vmatpush1.msra.mxu0 %v642
        %2453 = vmatprep.subr.mxu0 0.0
        %2454 = vmatpush1.msra.mxu0 %v647
        %2455 = vmatprep.subr.mxu0 0.0
        %2456 = vmatpush1.msra.mxu0 %v652
        %2457 = vmatprep.subr.mxu0 0.0
        %2458 = vmatpush1.msra.mxu0 %v657
        %2459 = vmatprep.subr.mxu0 0.0
        %2460 = vmatpush1.msra.mxu0 %v662
        %2461 = vmatprep.subr.mxu0 0.0
        %2462 = vmatpush1.msra.mxu0 %v667
        %2463 = vmatprep.subr.mxu0 0.0
        %2464 = vmatpush1.msra.mxu0 %v2361
        %2465 = vmatprep.subr.mxu0 0.0
        %2466 = vmatpush1.msra.mxu0 %v2368
        %2467 = vmatprep.subr.mxu0 0.0
        %2468 = vmatpush1.msra.mxu0 %v2375
        %2469 = vmatprep.subr.mxu0 0.0
        %2470 = vmatpush1.msra.mxu0 %v2382
        %2471 = vmatprep.subr.mxu0 0.0
        %2472 = vmatpush1.msra.mxu0 %v2389
        %2473 = vmatprep.subr.mxu0 0.0
        %2474 = vmatpush1.msra.mxu0 %v2396
        %2475 = vmatprep.subr.mxu0 0.0
        %2476 = vmatpush1.msra.mxu0 %v2403
        %2477 = vmatprep.subr.mxu0 0.0
        %2478 = vmatpush1.msra.mxu0 %v2410
        %2479 = vmatprep.subr.mxu0 0.0
        %2480 = vmatpush1.msra.mxu0 0.0
        %2481 = vmatprep.subr.mxu0 0.0
        %2482 = vmatpush1.msra.mxu0 0.0
        %2483 = vmatprep.subr.mxu0 0.0
        %2484 = vmatpush1.msra.mxu0 0.0
        %2485 = vmatprep.subr.mxu0 0.0
        %2486 = vmatpush1.msra.mxu0 0.0
        %2487 = vmatprep.subr.mxu0 0.0
        %2488 = vmatpush1.msra.mxu0 0.0
        %2489 = vmatprep.subr.mxu0 0.0
        %2490 = vmatpush1.msra.mxu0 0.0
        %2491 = vmatprep.subr.mxu0 0.0
        %2492 = vmatpush1.msra.mxu0 0.0
        %2493 = vmatprep.subr.mxu0 0.0
        %2494 = vmatpush1.msra.mxu0 0.0
        %2495 = vmatprep.subr.mxu0 0.0
        %2496 = vmatpush1.msra.mxu0 0.0
        %2497 = vmatprep.subr.mxu0 0.0
        %2498 = vmatpush1.msra.mxu0 0.0
        %2499 = vmatprep.subr.mxu0 0.0
        %2500 = vmatpush1.msra.mxu0 0.0
        %2501 = vmatprep.subr.mxu0 0.0
        %2502 = vmatpush1.msra.mxu0 0.0
        %2503 = vmatprep.subr.mxu0 0.0
        %2504 = vmatpush1.msra.mxu0 0.0
        %2505 = vmatprep.subr.mxu0 0.0
        %2506 = vmatpush1.msra.mxu0 0.0
        %2507 = vmatprep.subr.mxu0 0.0
        %2508 = vmatpush1.msra.mxu0 0.0
        %2509 = vmatprep.subr.mxu0 0.0
        %2510 = vmatpush1.msra.mxu0 0.0
        %2511 = vmatprep.mubr.f32.mxu0 0.0
        %2512 = vmatmul.mubr.f32.gmra.mrb[0].mxu0 %v2419
        %v2513 = vpop.f32.mrb[0].mxu0
        %v2514 = vadd.f32 %v2430, %v2513
        %v2515 = vpop.f32.mrb[0].mxu0
        %2516 = vmatprep.mubr.f32.mxu0 0.0
        %2517 = vmatmul.mubr.f32.gmra.mrb[0].mxu0 %v2420
        %v2518 = vpop.f32.mrb[0].mxu0
        %v2519 = vadd.f32 %v2435, %v2518
        %v2520 = vpop.f32.mrb[0].mxu0
        %2521 = vmatprep.mubr.f32.mxu0 0.0
        %2522 = vmatmul.mubr.f32.gmra.mrb[0].mxu0 %v2421
        %v2523 = vpop.f32.mrb[0].mxu0
        %v2524 = vadd.f32 %v2440, %v2523
        %v2525 = vpop.f32.mrb[0].mxu0
        %2526 = vmatprep.mubr.f32.mxu0 0.0
        %2527 = vmatmul.mubr.f32.gmra.mrb[0].mxu0 %v2422
        %v2528 = vpop.f32.mrb[0].mxu0
        %v2529 = vadd.f32 %v2445, %v2528
        %v2530 = vpop.f32.mrb[0].mxu0
        %2531 = vdwg.mxu0
        %v2532 = vmax.f32 %v2514, 0.0
        %v2533 = vmax.f32 %v2519, 0.0
        %v2534 = vmax.f32 %v2524, 0.0
        %v2535 = vmax.f32 %v2529, 0.0
        %v2536 = vld [vmem:[%s8] sm:$0xff]
        %v2537 = vld [vmem:[%s8 + $0x8] sm:$0xff]
        %v2538 = vld [vmem:[%s8 + $0x10] sm:$0xff]
        %v2539 = vld [vmem:[%s8 + $0x18] sm:$0xff]
        %v2540 = vld [vmem:[%s8 + $0x20] sm:$0xff]
        %v2541 = vld [vmem:[%s8 + $0x28] sm:$0xff]
        %v2542 = vld [vmem:[%s8 + $0x30] sm:$0xff]
        %v2543 = vld [vmem:[%s8 + $0x38] sm:$0xff]
        %v2544 = vld [vmem:[%s8 + $0x40] sm:$0xff]
        %v2545 = vld [vmem:[%s8 + $0x48] sm:$0xff]
        %v2546 = vld [vmem:[%s8 + $0x50] sm:$0xff]
        %v2547 = vld [vmem:[%s8 + $0x58] sm:$0xff]
        %v2548 = vld [vmem:[%s8 + $0x60] sm:$0xff]
        %v2549 = vld [vmem:[%s8 + $0x68] sm:$0xff]
        %v2550 = vld [vmem:[%s8 + $0x70] sm:$0xff]
        %v2551 = vld [vmem:[%s8 + $0x78] sm:$0xff]
        %v2552 = vld [vmem:[%s9] sm:$0xff]
        %v2553 = vld [vmem:[%s9 + $0x8] sm:$0xff]
        %v2554 = vld [vmem:[%s9 + $0x10] sm:$0xff]
        %v2555 = vld [vmem:[%s9 + $0x18] sm:$0xff]
        %v2556 = vld [vmem:[%s9 + $0x20] sm:$0xff]
        %v2557 = vld [vmem:[%s9 + $0x28] sm:$0xff]
        %v2558 = vld [vmem:[%s9 + $0x30] sm:$0xff]
        %v2559 = vld [vmem:[%s9 + $0x38] sm:$0xff]
        %v2560 = vld [vmem:[%s9 + $0x40] sm:$0xff]
        %v2561 = vld [vmem:[%s9 + $0x48] sm:$0xff]
        %v2562 = vld [vmem:[%s9 + $0x50] sm:$0xff]
        %v2563 = vld [vmem:[%s9 + $0x58] sm:$0xff]
        %v2564 = vld [vmem:[%s9 + $0x60] sm:$0xff]
        %v2565 = vld [vmem:[%s9 + $0x68] sm:$0xff]
        %v2566 = vld [vmem:[%s9 + $0x70] sm:$0xff]
        %v2567 = vld [vmem:[%s9 + $0x78] sm:$0xff]
        %2569 = vset.pattern.permute.xlu0 0
        %2570 = vperm.xlu0 %2569, %v2552
        %v2571 = vpop.permute.xlu0 %2570
        %2574 = vset.pattern.permute.xlu0 0
        %2575 = vperm.xlu0 %2574, %v2553
        %v2576 = vpop.permute.xlu0 %2575
        %2579 = vset.pattern.permute.xlu0 0
        %2580 = vperm.xlu0 %2579, %v2554
        %v2581 = vpop.permute.xlu0 %2580
        %2584 = vset.pattern.permute.xlu0 0
        %2585 = vperm.xlu0 %2584, %v2555
        %v2586 = vpop.permute.xlu0 %2585
        %2589 = vset.pattern.permute.xlu0 0
        %2590 = vperm.xlu0 %2589, %v2556
        %v2591 = vpop.permute.xlu0 %2590
        %2594 = vset.pattern.permute.xlu0 0
        %2595 = vperm.xlu0 %2594, %v2557
        %v2596 = vpop.permute.xlu0 %2595
        %2599 = vset.pattern.permute.xlu0 0
        %2600 = vperm.xlu0 %2599, %v2558
        %v2601 = vpop.permute.xlu0 %2600
        %2604 = vset.pattern.permute.xlu0 0
        %2605 = vperm.xlu0 %2604, %v2559
        %v2606 = vpop.permute.xlu0 %2605
        %2609 = vset.pattern.permute.xlu0 0
        %2610 = vperm.xlu0 %2609, %v2560
        %v2611 = vpop.permute.xlu0 %2610
        %2614 = vset.pattern.permute.xlu0 0
        %2615 = vperm.xlu0 %2614, %v2561
        %v2616 = vpop.permute.xlu0 %2615
        %2619 = vset.pattern.permute.xlu0 0
        %2620 = vperm.xlu0 %2619, %v2562
        %v2621 = vpop.permute.xlu0 %2620
        %2624 = vset.pattern.permute.xlu0 0
        %2625 = vperm.xlu0 %2624, %v2563
        %v2626 = vpop.permute.xlu0 %2625
        %2629 = vset.pattern.permute.xlu0 0
        %2630 = vperm.xlu0 %2629, %v2564
        %v2631 = vpop.permute.xlu0 %2630
        %2634 = vset.pattern.permute.xlu0 0
        %2635 = vperm.xlu0 %2634, %v2565
        %v2636 = vpop.permute.xlu0 %2635
        %2639 = vset.pattern.permute.xlu0 0
        %2640 = vperm.xlu0 %2639, %v2566
        %v2641 = vpop.permute.xlu0 %2640
        %2644 = vset.pattern.permute.xlu0 0
        %2645 = vperm.xlu0 %2644, %v2567
        %v2646 = vpop.permute.xlu0 %2645
        %vm2648 = vcmask 261120
        %v2650 = vsel %vm2648, %v2536, 0
        %v2653 = vsel %vm2648, %v2537, 0
        %v2656 = vsel %vm2648, %v2538, 0
        %v2659 = vsel %vm2648, %v2539, 0
        %v2662 = vsel %vm2648, %v2540, 0
        %v2665 = vsel %vm2648, %v2541, 0
        %v2668 = vsel %vm2648, %v2542, 0
        %v2671 = vsel %vm2648, %v2543, 0
        %v2674 = vsel %vm2648, %v2544, 0
        %v2677 = vsel %vm2648, %v2545, 0
        %v2680 = vsel %vm2648, %v2546, 0
        %v2683 = vsel %vm2648, %v2547, 0
        %v2686 = vsel %vm2648, %v2548, 0
        %v2689 = vsel %vm2648, %v2549, 0
        %v2692 = vsel %vm2648, %v2550, 0
        %v2695 = vsel %vm2648, %v2551, 0
        %2697 = vmatprep.subr.mxu0 0.0
        %2698 = vmatpush1.msra.mxu0 %v2532
        %2699 = vmatprep.subr.mxu0 0.0
        %2700 = vmatpush1.msra.mxu0 %v2533
        %2701 = vmatprep.subr.mxu0 0.0
        %2702 = vmatpush1.msra.mxu0 %v2534
        %2703 = vmatprep.subr.mxu0 0.0
        %2704 = vmatpush1.msra.mxu0 %v2535
        %2705 = vmatprep.subr.mxu0 0.0
        %2706 = vmatpush1.msra.mxu0 0.0
        %2707 = vmatprep.subr.mxu0 0.0
        %2708 = vmatpush1.msra.mxu0 0.0
        %2709 = vmatprep.subr.mxu0 0.0
        %2710 = vmatpush1.msra.mxu0 0.0
        %2711 = vmatprep.subr.mxu0 0.0
        %2712 = vmatpush1.msra.mxu0 0.0
        %2713 = vmatprep.subr.mxu0 0.0
        %2714 = vmatpush1.msra.mxu0 0.0
        %2715 = vmatprep.subr.mxu0 0.0
        %2716 = vmatpush1.msra.mxu0 0.0
        %2717 = vmatprep.subr.mxu0 0.0
        %2718 = vmatpush1.msra.mxu0 0.0
        %2719 = vmatprep.subr.mxu0 0.0
        %2720 = vmatpush1.msra.mxu0 0.0
        %2721 = vmatprep.subr.mxu0 0.0
        %2722 = vmatpush1.msra.mxu0 0.0
        %2723 = vmatprep.subr.mxu0 0.0
        %2724 = vmatpush1.msra.mxu0 0.0
        %2725 = vmatprep.subr.mxu0 0.0
        %2726 = vmatpush1.msra.mxu0 0.0
        %2727 = vmatprep.subr.mxu0 0.0
        %2728 = vmatpush1.msra.mxu0 0.0
        %2729 = vmatprep.subr.mxu0 0.0
        %2730 = vmatpush1.msra.mxu0 0.0
        %2731 = vmatprep.subr.mxu0 0.0
        %2732 = vmatpush1.msra.mxu0 0.0
        %2733 = vmatprep.subr.mxu0 0.0
        %2734 = vmatpush1.msra.mxu0 0.0
        %2735 = vmatprep.subr.mxu0 0.0
        %2736 = vmatpush1.msra.mxu0 0.0
        %2737 = vmatprep.subr.mxu0 0.0
        %2738 = vmatpush1.msra.mxu0 0.0
        %2739 = vmatprep.subr.mxu0 0.0
        %2740 = vmatpush1.msra.mxu0 0.0
        %2741 = vmatprep.subr.mxu0 0.0
        %2742 = vmatpush1.msra.mxu0 0.0
        %2743 = vmatprep.subr.mxu0 0.0
        %2744 = vmatpush1.msra.mxu0 0.0
        %2745 = vmatprep.subr.mxu0 0.0
        %2746 = vmatpush1.msra.mxu0 0.0
        %2747 = vmatprep.subr.mxu0 0.0
        %2748 = vmatpush1.msra.mxu0 0.0
        %2749 = vmatprep.subr.mxu0 0.0
        %2750 = vmatpush1.msra.mxu0 0.0
        %2751 = vmatprep.subr.mxu0 0.0
        %2752 = vmatpush1.msra.mxu0 0.0
        %2753 = vmatprep.subr.mxu0 0.0
        %2754 = vmatpush1.msra.mxu0 0.0
        %2755 = vmatprep.subr.mxu0 0.0
        %2756 = vmatpush1.msra.mxu0 0.0
        %2757 = vmatprep.subr.mxu0 0.0
        %2758 = vmatpush1.msra.mxu0 0.0
        %2759 = vmatprep.subr.mxu0 0.0
        %2760 = vmatpush1.msra.mxu0 0.0
        %2761 = vmatprep.mubr.f32.mxu0 0.0
        %2762 = vmatmul.mubr.f32.gmra.mrb[0].mxu0 %v2650
        %v2763 = vpop.f32.mrb[0].mxu0
        %v2764 = vadd.f32 %v2571, %v2763
        %v2765 = vpop.f32.mrb[0].mxu0
        %2766 = vmatprep.mubr.f32.mxu0 0.0
        %2767 = vmatmul.mubr.f32.gmra.mrb[0].mxu0 %v2653
        %v2768 = vpop.f32.mrb[0].mxu0
        %v2769 = vadd.f32 %v2576, %v2768
        %v2770 = vpop.f32.mrb[0].mxu0
        %2771 = vmatprep.mubr.f32.mxu0 0.0
        %2772 = vmatmul.mubr.f32.gmra.mrb[0].mxu0 %v2656
        %v2773 = vpop.f32.mrb[0].mxu0
        %v2774 = vadd.f32 %v2581, %v2773
        %v2775 = vpop.f32.mrb[0].mxu0
        %2776 = vmatprep.mubr.f32.mxu0 0.0
        %2777 = vmatmul.mubr.f32.gmra.mrb[0].mxu0 %v2659
        %v2778 = vpop.f32.mrb[0].mxu0
        %v2779 = vadd.f32 %v2586, %v2778
        %v2780 = vpop.f32.mrb[0].mxu0
        %2781 = vmatprep.mubr.f32.mxu0 0.0
        %2782 = vmatmul.mubr.f32.gmra.mrb[0].mxu0 %v2662
        %v2783 = vpop.f32.mrb[0].mxu0
        %v2784 = vadd.f32 %v2591, %v2783
        %v2785 = vpop.f32.mrb[0].mxu0
        %2786 = vmatprep.mubr.f32.mxu0 0.0
        %2787 = vmatmul.mubr.f32.gmra.mrb[0].mxu0 %v2665
        %v2788 = vpop.f32.mrb[0].mxu0
        %v2789 = vadd.f32 %v2596, %v2788
        %v2790 = vpop.f32.mrb[0].mxu0
        %2791 = vmatprep.mubr.f32.mxu0 0.0
        %2792 = vmatmul.mubr.f32.gmra.mrb[0].mxu0 %v2668
        %v2793 = vpop.f32.mrb[0].mxu0
        %v2794 = vadd.f32 %v2601, %v2793
        %v2795 = vpop.f32.mrb[0].mxu0
        %2796 = vmatprep.mubr.f32.mxu0 0.0
        %2797 = vmatmul.mubr.f32.gmra.mrb[0].mxu0 %v2671
        %v2798 = vpop.f32.mrb[0].mxu0
        %v2799 = vadd.f32 %v2606, %v2798
        %v2800 = vpop.f32.mrb[0].mxu0
        %2801 = vmatprep.mubr.f32.mxu0 0.0
        %2802 = vmatmul.mubr.f32.gmra.mrb[0].mxu0 %v2674
        %v2803 = vpop.f32.mrb[0].mxu0
        %v2804 = vadd.f32 %v2611, %v2803
        %v2805 = vpop.f32.mrb[0].mxu0
        %2806 = vmatprep.mubr.f32.mxu0 0.0
        %2807 = vmatmul.mubr.f32.gmra.mrb[0].mxu0 %v2677
        %v2808 = vpop.f32.mrb[0].mxu0
        %v2809 = vadd.f32 %v2616, %v2808
        %v2810 = vpop.f32.mrb[0].mxu0
        %2811 = vmatprep.mubr.f32.mxu0 0.0
        %2812 = vmatmul.mubr.f32.gmra.mrb[0].mxu0 %v2680
        %v2813 = vpop.f32.mrb[0].mxu0
        %v2814 = vadd.f32 %v2621, %v2813
        %v2815 = vpop.f32.mrb[0].mxu0
        %2816 = vmatprep.mubr.f32.mxu0 0.0
        %2817 = vmatmul.mubr.f32.gmra.mrb[0].mxu0 %v2683
        %v2818 = vpop.f32.mrb[0].mxu0
        %v2819 = vadd.f32 %v2626, %v2818
        %v2820 = vpop.f32.mrb[0].mxu0
        %2821 = vmatprep.mubr.f32.mxu0 0.0
        %2822 = vmatmul.mubr.f32.gmra.mrb[0].mxu0 %v2686
        %v2823 = vpop.f32.mrb[0].mxu0
        %v2824 = vadd.f32 %v2631, %v2823
        %v2825 = vpop.f32.mrb[0].mxu0
        %2826 = vmatprep.mubr.f32.mxu0 0.0
        %2827 = vmatmul.mubr.f32.gmra.mrb[0].mxu0 %v2689
        %v2828 = vpop.f32.mrb[0].mxu0
        %v2829 = vadd.f32 %v2636, %v2828
        %v2830 = vpop.f32.mrb[0].mxu0
        %2831 = vmatprep.mubr.f32.mxu0 0.0
        %2832 = vmatmul.mubr.f32.gmra.mrb[0].mxu0 %v2692
        %v2833 = vpop.f32.mrb[0].mxu0
        %v2834 = vadd.f32 %v2641, %v2833
        %v2835 = vpop.f32.mrb[0].mxu0
        %2836 = vmatprep.mubr.f32.mxu0 0.0
        %2837 = vmatmul.mubr.f32.gmra.mrb[0].mxu0 %v2695
        %v2838 = vpop.f32.mrb[0].mxu0
        %v2839 = vadd.f32 %v2646, %v2838
        %v2840 = vpop.f32.mrb[0].mxu0
        %2841 = vdwg.mxu0
        %v2906 = vsel %vm2348, %v1205, %v1198
        %v2907 = vsel %vm2350, %v1212, %v2906
        %v2908 = vsel %vm2352, %v1219, %v2907
        %v2909 = vsel %vm2354, %v1226, %v2908
        %v2910 = vsel %vm2356, %v1233, %v2909
        %v2911 = vsel %vm2358, %v1240, %v2910
        %v2912 = vsel %vm2360, %v1247, %v2911
        %v2913 = vsel %vm2348, %v1261, %v1254
        %v2914 = vsel %vm2350, %v1268, %v2913
        %v2915 = vsel %vm2352, %v1275, %v2914
        %v2916 = vsel %vm2354, %v1282, %v2915
        %v2917 = vsel %vm2356, %v1289, %v2916
        %v2918 = vsel %vm2358, %v1296, %v2917
        %v2919 = vsel %vm2360, %v1303, %v2918
        %v2920 = vsel %vm2348, %v1317, %v1310
        %v2921 = vsel %vm2350, %v1324, %v2920
        %v2922 = vsel %vm2352, %v1331, %v2921
        %v2923 = vsel %vm2354, %v1338, %v2922
        %v2924 = vsel %vm2356, %v1345, %v2923
        %v2925 = vsel %vm2358, %v1352, %v2924
        %v2926 = vsel %vm2360, %v1359, %v2925
        %v2927 = vsel %vm2348, %v1373, %v1366
        %v2928 = vsel %vm2350, %v1380, %v2927
        %v2929 = vsel %vm2352, %v1387, %v2928
        %v2930 = vsel %vm2354, %v1394, %v2929
        %v2931 = vsel %vm2356, %v1401, %v2930
        %v2932 = vsel %vm2358, %v1408, %v2931
        %v2933 = vsel %vm2360, %v1415, %v2932
        %v2934 = vsel %vm2348, %v1429, %v1422
        %v2935 = vsel %vm2350, %v1436, %v2934
        %v2936 = vsel %vm2352, %v1443, %v2935
        %v2937 = vsel %vm2354, %v1450, %v2936
        %v2938 = vsel %vm2356, %v1457, %v2937
        %v2939 = vsel %vm2358, %v1464, %v2938
        %v2940 = vsel %vm2360, %v1471, %v2939
        %v2941 = vsel %vm2348, %v1485, %v1478
        %v2942 = vsel %vm2350, %v1492, %v2941
        %v2943 = vsel %vm2352, %v1499, %v2942
        %v2944 = vsel %vm2354, %v1506, %v2943
        %v2945 = vsel %vm2356, %v1513, %v2944
        %v2946 = vsel %vm2358, %v1520, %v2945
        %v2947 = vsel %vm2360, %v1527, %v2946
        %v2948 = vsel %vm2348, %v1541, %v1534
        %v2949 = vsel %vm2350, %v1548, %v2948
        %v2950 = vsel %vm2352, %v1555, %v2949
        %v2951 = vsel %vm2354, %v1562, %v2950
        %v2952 = vsel %vm2356, %v1569, %v2951
        %v2953 = vsel %vm2358, %v1576, %v2952
        %v2954 = vsel %vm2360, %v1583, %v2953
        %v2955 = vsel %vm2348, %v1597, %v1590
        %v2956 = vsel %vm2350, %v1604, %v2955
        %v2957 = vsel %vm2352, %v1611, %v2956
        %v2958 = vsel %vm2354, %v1618, %v2957
        %v2959 = vsel %vm2356, %v1625, %v2958
        %v2960 = vsel %vm2358, %v1632, %v2959
        %v2961 = vsel %vm2360, %v1639, %v2960
        %2970 = vmatprep.subr.mxu0 0.0
        %2971 = vmatpush1.msra.mxu0 %v769
        %2972 = vmatprep.subr.mxu0 0.0
        %2973 = vmatpush1.msra.mxu0 %v774
        %2974 = vmatprep.subr.mxu0 0.0
        %2975 = vmatpush1.msra.mxu0 %v779
        %2976 = vmatprep.subr.mxu0 0.0
        %2977 = vmatpush1.msra.mxu0 %v784
        %2978 = vmatprep.subr.mxu0 0.0
        %2979 = vmatpush1.msra.mxu0 %v789
        %2980 = vmatprep.subr.mxu0 0.0
        %2981 = vmatpush1.msra.mxu0 %v794
        %2982 = vmatprep.subr.mxu0 0.0
        %2983 = vmatpush1.msra.mxu0 %v799
        %2984 = vmatprep.subr.mxu0 0.0
        %2985 = vmatpush1.msra.mxu0 %v804
        %2986 = vmatprep.subr.mxu0 0.0
        %2987 = vmatpush1.msra.mxu0 %v2912
        %2988 = vmatprep.subr.mxu0 0.0
        %2989 = vmatpush1.msra.mxu0 %v2919
        %2990 = vmatprep.subr.mxu0 0.0
        %2991 = vmatpush1.msra.mxu0 %v2926
        %2992 = vmatprep.subr.mxu0 0.0
        %2993 = vmatpush1.msra.mxu0 %v2933
        %2994 = vmatprep.subr.mxu0 0.0
        %2995 = vmatpush1.msra.mxu0 %v2940
        %2996 = vmatprep.subr.mxu0 0.0
        %2997 = vmatpush1.msra.mxu0 %v2947
        %2998 = vmatprep.subr.mxu0 0.0
        %2999 = vmatpush1.msra.mxu0 %v2954
        %3000 = vmatprep.subr.mxu0 0.0
        %3001 = vmatpush1.msra.mxu0 %v2961
        %3002 = vmatprep.subr.mxu0 0.0
        %3003 = vmatpush1.msra.mxu0 0.0
        %3004 = vmatprep.subr.mxu0 0.0
        %3005 = vmatpush1.msra.mxu0 0.0
        %3006 = vmatprep.subr.mxu0 0.0
        %3007 = vmatpush1.msra.mxu0 0.0
        %3008 = vmatprep.subr.mxu0 0.0
        %3009 = vmatpush1.msra.mxu0 0.0
        %3010 = vmatprep.subr.mxu0 0.0
        %3011 = vmatpush1.msra.mxu0 0.0
        %3012 = vmatprep.subr.mxu0 0.0
        %3013 = vmatpush1.msra.mxu0 0.0
        %3014 = vmatprep.subr.mxu0 0.0
        %3015 = vmatpush1.msra.mxu0 0.0
        %3016 = vmatprep.subr.mxu0 0.0
        %3017 = vmatpush1.msra.mxu0 0.0
        %3018 = vmatprep.subr.mxu0 0.0
        %3019 = vmatpush1.msra.mxu0 0.0
        %3020 = vmatprep.subr.mxu0 0.0
        %3021 = vmatpush1.msra.mxu0 0.0
        %3022 = vmatprep.subr.mxu0 0.0
        %3023 = vmatpush1.msra.mxu0 0.0
        %3024 = vmatprep.subr.mxu0 0.0
        %3025 = vmatpush1.msra.mxu0 0.0
        %3026 = vmatprep.subr.mxu0 0.0
        %3027 = vmatpush1.msra.mxu0 0.0
        %3028 = vmatprep.subr.mxu0 0.0
        %3029 = vmatpush1.msra.mxu0 0.0
        %3030 = vmatprep.subr.mxu0 0.0
        %3031 = vmatpush1.msra.mxu0 0.0
        %3032 = vmatprep.subr.mxu0 0.0
        %3033 = vmatpush1.msra.mxu0 0.0
        %3034 = vmatprep.mubr.f32.mxu0 0.0
        %3035 = vmatmul.mubr.f32.gmra.mrb[0].mxu0 %v2419
        %v3036 = vpop.f32.mrb[0].mxu0
        %v3037 = vadd.f32 %v2430, %v3036
        %v3038 = vpop.f32.mrb[0].mxu0
        %3039 = vmatprep.mubr.f32.mxu0 0.0
        %3040 = vmatmul.mubr.f32.gmra.mrb[0].mxu0 %v2420
        %v3041 = vpop.f32.mrb[0].mxu0
        %v3042 = vadd.f32 %v2435, %v3041
        %v3043 = vpop.f32.mrb[0].mxu0
        %3044 = vmatprep.mubr.f32.mxu0 0.0
        %3045 = vmatmul.mubr.f32.gmra.mrb[0].mxu0 %v2421
        %v3046 = vpop.f32.mrb[0].mxu0
        %v3047 = vadd.f32 %v2440, %v3046
        %v3048 = vpop.f32.mrb[0].mxu0
        %3049 = vmatprep.mubr.f32.mxu0 0.0
        %3050 = vmatmul.mubr.f32.gmra.mrb[0].mxu0 %v2422
        %v3051 = vpop.f32.mrb[0].mxu0
        %v3052 = vadd.f32 %v2445, %v3051
        %v3053 = vpop.f32.mrb[0].mxu0
        %3054 = vdwg.mxu0
        %v3055 = vmax.f32 %v3037, 0.0
        %v3056 = vmax.f32 %v3042, 0.0
        %v3057 = vmax.f32 %v3047, 0.0
        %v3058 = vmax.f32 %v3052, 0.0
        %3059 = vmatprep.subr.mxu0 0.0
        %3060 = vmatpush1.msra.mxu0 %v3055
        %3061 = vmatprep.subr.mxu0 0.0
        %3062 = vmatpush1.msra.mxu0 %v3056
        %3063 = vmatprep.subr.mxu0 0.0
        %3064 = vmatpush1.msra.mxu0 %v3057
        %3065 = vmatprep.subr.mxu0 0.0
        %3066 = vmatpush1.msra.mxu0 %v3058
        %3067 = vmatprep.subr.mxu0 0.0
        %3068 = vmatpush1.msra.mxu0 0.0
        %3069 = vmatprep.subr.mxu0 0.0
        %3070 = vmatpush1.msra.mxu0 0.0
        %3071 = vmatprep.subr.mxu0 0.0
        %3072 = vmatpush1.msra.mxu0 0.0
        %3073 = vmatprep.subr.mxu0 0.0
        %3074 = vmatpush1.msra.mxu0 0.0
        %3075 = vmatprep.subr.mxu0 0.0
        %3076 = vmatpush1.msra.mxu0 0.0
        %3077 = vmatprep.subr.mxu0 0.0
        %3078 = vmatpush1.msra.mxu0 0.0
        %3079 = vmatprep.subr.mxu0 0.0
        %3080 = vmatpush1.msra.mxu0 0.0
        %3081 = vmatprep.subr.mxu0 0.0
        %3082 = vmatpush1.msra.mxu0 0.0
        %3083 = vmatprep.subr.mxu0 0.0
        %3084 = vmatpush1.msra.mxu0 0.0
        %3085 = vmatprep.subr.mxu0 0.0
        %3086 = vmatpush1.msra.mxu0 0.0
        %3087 = vmatprep.subr.mxu0 0.0
        %3088 = vmatpush1.msra.mxu0 0.0
        %3089 = vmatprep.subr.mxu0 0.0
        %3090 = vmatpush1.msra.mxu0 0.0
        %3091 = vmatprep.subr.mxu0 0.0
        %3092 = vmatpush1.msra.mxu0 0.0
        %3093 = vmatprep.subr.mxu0 0.0
        %3094 = vmatpush1.msra.mxu0 0.0
        %3095 = vmatprep.subr.mxu0 0.0
        %3096 = vmatpush1.msra.mxu0 0.0
        %3097 = vmatprep.subr.mxu0 0.0
        %3098 = vmatpush1.msra.mxu0 0.0
        %3099 = vmatprep.subr.mxu0 0.0
        %3100 = vmatpush1.msra.mxu0 0.0
        %3101 = vmatprep.subr.mxu0 0.0
        %3102 = vmatpush1.msra.mxu0 0.0
        %3103 = vmatprep.subr.mxu0 0.0
        %3104 = vmatpush1.msra.mxu0 0.0
        %3105 = vmatprep.subr.mxu0 0.0
        %3106 = vmatpush1.msra.mxu0 0.0
        %3107 = vmatprep.subr.mxu0 0.0
        %3108 = vmatpush1.msra.mxu0 0.0
        %3109 = vmatprep.subr.mxu0 0.0
        %3110 = vmatpush1.msra.mxu0 0.0
        %3111 = vmatprep.subr.mxu0 0.0
        %3112 = vmatpush1.msra.mxu0 0.0
        %3113 = vmatprep.subr.mxu0 0.0
        %3114 = vmatpush1.msra.mxu0 0.0
        %3115 = vmatprep.subr.mxu0 0.0
        %3116 = vmatpush1.msra.mxu0 0.0
        %3117 = vmatprep.subr.mxu0 0.0
        %3118 = vmatpush1.msra.mxu0 0.0
        %3119 = vmatprep.subr.mxu0 0.0
        %3120 = vmatpush1.msra.mxu0 0.0
        %3121 = vmatprep.subr.mxu0 0.0
        %3122 = vmatpush1.msra.mxu0 0.0
        %3123 = vmatprep.mubr.f32.mxu0 0.0
        %3124 = vmatmul.mubr.f32.gmra.mrb[0].mxu0 %v2650
        %v3125 = vpop.f32.mrb[0].mxu0
        %v3126 = vadd.f32 %v2571, %v3125
        %v3127 = vpop.f32.mrb[0].mxu0
        %3128 = vmatprep.mubr.f32.mxu0 0.0
        %3129 = vmatmul.mubr.f32.gmra.mrb[0].mxu0 %v2653
        %v3130 = vpop.f32.mrb[0].mxu0
        %v3131 = vadd.f32 %v2576, %v3130
        %v3132 = vpop.f32.mrb[0].mxu0
        %3133 = vmatprep.mubr.f32.mxu0 0.0
        %3134 = vmatmul.mubr.f32.gmra.mrb[0].mxu0 %v2656
        %v3135 = vpop.f32.mrb[0].mxu0
        %v3136 = vadd.f32 %v2581, %v3135
        %v3137 = vpop.f32.mrb[0].mxu0
        %3138 = vmatprep.mubr.f32.mxu0 0.0
        %3139 = vmatmul.mubr.f32.gmra.mrb[0].mxu0 %v2659
        %v3140 = vpop.f32.mrb[0].mxu0
        %v3141 = vadd.f32 %v2586, %v3140
        %v3142 = vpop.f32.mrb[0].mxu0
        %3143 = vmatprep.mubr.f32.mxu0 0.0
        %3144 = vmatmul.mubr.f32.gmra.mrb[0].mxu0 %v2662
        %v3145 = vpop.f32.mrb[0].mxu0
        %v3146 = vadd.f32 %v2591, %v3145
        %v3147 = vpop.f32.mrb[0].mxu0
        %3148 = vmatprep.mubr.f32.mxu0 0.0
        %3149 = vmatmul.mubr.f32.gmra.mrb[0].mxu0 %v2665
        %v3150 = vpop.f32.mrb[0].mxu0
        %v3151 = vadd.f32 %v2596, %v3150
        %v3152 = vpop.f32.mrb[0].mxu0
        %3153 = vmatprep.mubr.f32.mxu0 0.0
        %3154 = vmatmul.mubr.f32.gmra.mrb[0].mxu0 %v2668
        %v3155 = vpop.f32.mrb[0].mxu0
        %v3156 = vadd.f32 %v2601, %v3155
        %v3157 = vpop.f32.mrb[0].mxu0
        %3158 = vmatprep.mubr.f32.mxu0 0.0
        %3159 = vmatmul.mubr.f32.gmra.mrb[0].mxu0 %v2671
        %v3160 = vpop.f32.mrb[0].mxu0
        %v3161 = vadd.f32 %v2606, %v3160
        %v3162 = vpop.f32.mrb[0].mxu0
        %3163 = vmatprep.mubr.f32.mxu0 0.0
        %3164 = vmatmul.mubr.f32.gmra.mrb[0].mxu0 %v2674
        %v3165 = vpop.f32.mrb[0].mxu0
        %v3166 = vadd.f32 %v2611, %v3165
        %v3167 = vpop.f32.mrb[0].mxu0
        %3168 = vmatprep.mubr.f32.mxu0 0.0
        %3169 = vmatmul.mubr.f32.gmra.mrb[0].mxu0 %v2677
        %v3170 = vpop.f32.mrb[0].mxu0
        %v3171 = vadd.f32 %v2616, %v3170
        %v3172 = vpop.f32.mrb[0].mxu0
        %3173 = vmatprep.mubr.f32.mxu0 0.0
        %3174 = vmatmul.mubr.f32.gmra.mrb[0].mxu0 %v2680
        %v3175 = vpop.f32.mrb[0].mxu0
        %v3176 = vadd.f32 %v2621, %v3175
        %v3177 = vpop.f32.mrb[0].mxu0
        %3178 = vmatprep.mubr.f32.mxu0 0.0
        %3179 = vmatmul.mubr.f32.gmra.mrb[0].mxu0 %v2683
        %v3180 = vpop.f32.mrb[0].mxu0
        %v3181 = vadd.f32 %v2626, %v3180
        %v3182 = vpop.f32.mrb[0].mxu0
        %3183 = vmatprep.mubr.f32.mxu0 0.0
        %3184 = vmatmul.mubr.f32.gmra.mrb[0].mxu0 %v2686
        %v3185 = vpop.f32.mrb[0].mxu0
        %v3186 = vadd.f32 %v2631, %v3185
        %v3187 = vpop.f32.mrb[0].mxu0
        %3188 = vmatprep.mubr.f32.mxu0 0.0
        %3189 = vmatmul.mubr.f32.gmra.mrb[0].mxu0 %v2689
        %v3190 = vpop.f32.mrb[0].mxu0
        %v3191 = vadd.f32 %v2636, %v3190
        %v3192 = vpop.f32.mrb[0].mxu0
        %3193 = vmatprep.mubr.f32.mxu0 0.0
        %3194 = vmatmul.mubr.f32.gmra.mrb[0].mxu0 %v2692
        %v3195 = vpop.f32.mrb[0].mxu0
        %v3196 = vadd.f32 %v2641, %v3195
        %v3197 = vpop.f32.mrb[0].mxu0
        %3198 = vmatprep.mubr.f32.mxu0 0.0
        %3199 = vmatmul.mubr.f32.gmra.mrb[0].mxu0 %v2695
        %v3200 = vpop.f32.mrb[0].mxu0
        %v3201 = vadd.f32 %v2646, %v3200
        %v3202 = vpop.f32.mrb[0].mxu0
        %3203 = vdwg.mxu0
        %v3204 = vadd.f32 %v2764, %v2804
        %v3205 = vadd.f32 %v2769, %v2809
        %v3206 = vadd.f32 %v2774, %v2814
        %v3207 = vadd.f32 %v2779, %v2819
        %v3208 = vadd.f32 %v2784, %v2824
        %v3209 = vadd.f32 %v2789, %v2829
        %v3210 = vadd.f32 %v2794, %v2834
        %v3211 = vadd.f32 %v2799, %v2839
        %v3212 = vxor.u32 %v3204, 2147483648
        %v3213 = vxor.u32 %v3205, 2147483648
        %v3214 = vxor.u32 %v3206, 2147483648
        %v3215 = vxor.u32 %v3207, 2147483648
        %v3216 = vxor.u32 %v3208, 2147483648
        %v3217 = vxor.u32 %v3209, 2147483648
        %v3218 = vxor.u32 %v3210, 2147483648
        %v3219 = vxor.u32 %v3211, 2147483648
        %v3220 = vmul.f32 %v3212, 1.442695
        %v3221 = vpow.pop %v3220
        %v3222 = vmul.f32 %v3213, 1.442695
        %v3223 = vpow.pop %v3222
        %v3224 = vmul.f32 %v3214, 1.442695
        %v3225 = vpow.pop %v3224
        %v3226 = vmul.f32 %v3215, 1.442695
        %v3227 = vpow.pop %v3226
        %v3228 = vmul.f32 %v3216, 1.442695
        %v3229 = vpow.pop %v3228
        %v3230 = vmul.f32 %v3217, 1.442695
        %v3231 = vpow.pop %v3230
        %v3232 = vmul.f32 %v3218, 1.442695
        %v3233 = vpow.pop %v3232
        %v3234 = vmul.f32 %v3219, 1.442695
        %v3235 = vpow.pop %v3234
        %v3236 = vadd.f32 %v3221, 1.0
        %v3237 = vadd.f32 %v3223, 1.0
        %v3238 = vadd.f32 %v3225, 1.0
        %v3239 = vadd.f32 %v3227, 1.0
        %v3240 = vadd.f32 %v3229, 1.0
        %v3241 = vadd.f32 %v3231, 1.0
        %v3242 = vadd.f32 %v3233, 1.0
        %v3243 = vadd.f32 %v3235, 1.0
        %v3244 = vrcp.pop %v3236
        %v3245 = vmul.f32 1.0, %v3244
        %v3246 = vrcp.pop %v3237
        %v3247 = vmul.f32 1.0, %v3246
        %v3248 = vrcp.pop %v3238
        %v3249 = vmul.f32 1.0, %v3248
        %v3250 = vrcp.pop %v3239
        %v3251 = vmul.f32 1.0, %v3250
        %v3252 = vrcp.pop %v3240
        %v3253 = vmul.f32 1.0, %v3252
        %v3254 = vrcp.pop %v3241
        %v3255 = vmul.f32 1.0, %v3254
        %v3256 = vrcp.pop %v3242
        %v3257 = vmul.f32 1.0, %v3256
        %v3258 = vrcp.pop %v3243
        %v3259 = vmul.f32 1.0, %v3258
        %v3260 = vadd.f32 %v3126, %v3166
        %v3261 = vadd.f32 %v3131, %v3171
        %v3262 = vadd.f32 %v3136, %v3176
        %v3263 = vadd.f32 %v3141, %v3181
        %v3264 = vadd.f32 %v3146, %v3186
        %v3265 = vadd.f32 %v3151, %v3191
        %v3266 = vadd.f32 %v3156, %v3196
        %v3267 = vadd.f32 %v3161, %v3201
        %v3268 = vxor.u32 %v3260, 2147483648
        %v3269 = vxor.u32 %v3261, 2147483648
        %v3270 = vxor.u32 %v3262, 2147483648
        %v3271 = vxor.u32 %v3263, 2147483648
        %v3272 = vxor.u32 %v3264, 2147483648
        %v3273 = vxor.u32 %v3265, 2147483648
        %v3274 = vxor.u32 %v3266, 2147483648
        %v3275 = vxor.u32 %v3267, 2147483648
        %v3276 = vmul.f32 %v3268, 1.442695
        %v3277 = vpow.pop %v3276
        %v3278 = vmul.f32 %v3269, 1.442695
        %v3279 = vpow.pop %v3278
        %v3280 = vmul.f32 %v3270, 1.442695
        %v3281 = vpow.pop %v3280
        %v3282 = vmul.f32 %v3271, 1.442695
        %v3283 = vpow.pop %v3282
        %v3284 = vmul.f32 %v3272, 1.442695
        %v3285 = vpow.pop %v3284
        %v3286 = vmul.f32 %v3273, 1.442695
        %v3287 = vpow.pop %v3286
        %v3288 = vmul.f32 %v3274, 1.442695
        %v3289 = vpow.pop %v3288
        %v3290 = vmul.f32 %v3275, 1.442695
        %v3291 = vpow.pop %v3290
        %v3292 = vadd.f32 %v3277, 1.0
        %v3293 = vadd.f32 %v3279, 1.0
        %v3294 = vadd.f32 %v3281, 1.0
        %v3295 = vadd.f32 %v3283, 1.0
        %v3296 = vadd.f32 %v3285, 1.0
        %v3297 = vadd.f32 %v3287, 1.0
        %v3298 = vadd.f32 %v3289, 1.0
        %v3299 = vadd.f32 %v3291, 1.0
        %v3300 = vrcp.pop %v3292
        %v3301 = vmul.f32 1.0, %v3300
        %v3302 = vrcp.pop %v3293
        %v3303 = vmul.f32 1.0, %v3302
        %v3304 = vrcp.pop %v3294
        %v3305 = vmul.f32 1.0, %v3304
        %v3306 = vrcp.pop %v3295
        %v3307 = vmul.f32 1.0, %v3306
        %v3308 = vrcp.pop %v3296
        %v3309 = vmul.f32 1.0, %v3308
        %v3310 = vrcp.pop %v3297
        %v3311 = vmul.f32 1.0, %v3310
        %v3312 = vrcp.pop %v3298
        %v3313 = vmul.f32 1.0, %v3312
        %v3314 = vrcp.pop %v3299
        %v3315 = vmul.f32 1.0, %v3314
        %v3316 = vld [vmem:[%s4] sm:$0xff]
        %v3317 = vld [vmem:[%s4 + $0x8] sm:$0xff]
        %v3318 = vld [vmem:[%s4 + $0x10] sm:$0xff]
        %v3319 = vld [vmem:[%s4 + $0x18] sm:$0xff]
        %v3321 = vsel %vm807, %v3245, 0
        %v3324 = vsel %vm807, %v3247, 0
        %v3327 = vsel %vm807, %v3249, 0
        %v3330 = vsel %vm807, %v3251, 0
        %v3333 = vsel %vm807, %v3253, 0
        %v3336 = vsel %vm807, %v3255, 0
        %v3339 = vsel %vm807, %v3257, 0
        %v3342 = vsel %vm807, %v3259, 0
        %3344 = vmatprep.subr.mxu0 %v3317
        %3345 = vmatpush1.msra.mxu0 %v3316
        %3346 = vmatprep.subr.mxu0 %v3319
        %3347 = vmatpush1.msra.mxu0 %v3318
        %3348 = vmatprep.subr.mxu0 0.0
        %3349 = vmatpush1.msra.mxu0 0.0
        %3350 = vmatprep.subr.mxu0 0.0
        %3351 = vmatpush1.msra.mxu0 0.0
        %3352 = vmatprep.subr.mxu0 0.0
        %3353 = vmatpush1.msra.mxu0 0.0
        %3354 = vmatprep.subr.mxu0 0.0
        %3355 = vmatpush1.msra.mxu0 0.0
        %3356 = vmatprep.subr.mxu0 0.0
        %3357 = vmatpush1.msra.mxu0 0.0
        %3358 = vmatprep.subr.mxu0 0.0
        %3359 = vmatpush1.msra.mxu0 0.0
        %3360 = vmatprep.subr.mxu0 0.0
        %3361 = vmatpush1.msra.mxu0 0.0
        %3362 = vmatprep.subr.mxu0 0.0
        %3363 = vmatpush1.msra.mxu0 0.0
        %3364 = vmatprep.subr.mxu0 0.0
        %3365 = vmatpush1.msra.mxu0 0.0
        %3366 = vmatprep.subr.mxu0 0.0
        %3367 = vmatpush1.msra.mxu0 0.0
        %3368 = vmatprep.subr.mxu0 0.0
        %3369 = vmatpush1.msra.mxu0 0.0
        %3370 = vmatprep.subr.mxu0 0.0
        %3371 = vmatpush1.msra.mxu0 0.0
        %3372 = vmatprep.subr.mxu0 0.0
        %3373 = vmatpush1.msra.mxu0 0.0
        %3374 = vmatprep.subr.mxu0 0.0
        %3375 = vmatpush1.msra.mxu0 0.0
        %3376 = vmatprep.subr.mxu0 0.0
        %3377 = vmatpush1.msra.mxu0 0.0
        %3378 = vmatprep.subr.mxu0 0.0
        %3379 = vmatpush1.msra.mxu0 0.0
        %3380 = vmatprep.subr.mxu0 0.0
        %3381 = vmatpush1.msra.mxu0 0.0
        %3382 = vmatprep.subr.mxu0 0.0
        %3383 = vmatpush1.msra.mxu0 0.0
        %3384 = vmatprep.subr.mxu0 0.0
        %3385 = vmatpush1.msra.mxu0 0.0
        %3386 = vmatprep.subr.mxu0 0.0
        %3387 = vmatpush1.msra.mxu0 0.0
        %3388 = vmatprep.subr.mxu0 0.0
        %3389 = vmatpush1.msra.mxu0 0.0
        %3390 = vmatprep.subr.mxu0 0.0
        %3391 = vmatpush1.msra.mxu0 0.0
        %3392 = vmatprep.subr.mxu0 0.0
        %3393 = vmatpush1.msra.mxu0 0.0
        %3394 = vmatprep.subr.mxu0 0.0
        %3395 = vmatpush1.msra.mxu0 0.0
        %3396 = vmatprep.subr.mxu0 0.0
        %3397 = vmatpush1.msra.mxu0 0.0
        %3398 = vmatprep.subr.mxu0 0.0
        %3399 = vmatpush1.msra.mxu0 0.0
        %3400 = vmatprep.subr.mxu0 0.0
        %3401 = vmatpush1.msra.mxu0 0.0
        %3402 = vmatprep.subr.mxu0 0.0
        %3403 = vmatpush1.msra.mxu0 0.0
        %3404 = vmatprep.subr.mxu0 0.0
        %3405 = vmatpush1.msra.mxu0 0.0
        %3406 = vmatprep.subr.mxu0 0.0
        %3407 = vmatpush1.msra.mxu0 0.0
        %3408 = vmatprep.mubr.f32.mxu0 0.0
        %3409 = vmatmul.mubr.f32.gmra.mrb[0].mxu0 %v3321
        %v3410 = vpop.f32.mrb[0].mxu0
        %v3411 = vadd.f32 0.0, %v3410
        %v3412 = vpop.f32.mrb[0].mxu0
        %v3413 = vadd.f32 0.0, %v3412
        %3414 = vmatprep.mubr.f32.mxu0 0.0
        %3415 = vmatmul.mubr.f32.gmra.mrb[0].mxu0 %v3324
        %v3416 = vpop.f32.mrb[0].mxu0
        %v3417 = vadd.f32 0.0, %v3416
        %v3418 = vpop.f32.mrb[0].mxu0
        %v3419 = vadd.f32 0.0, %v3418
        %3420 = vmatprep.mubr.f32.mxu0 0.0
        %3421 = vmatmul.mubr.f32.gmra.mrb[0].mxu0 %v3327
        %v3422 = vpop.f32.mrb[0].mxu0
        %v3423 = vadd.f32 0.0, %v3422
        %v3424 = vpop.f32.mrb[0].mxu0
        %v3425 = vadd.f32 0.0, %v3424
        %3426 = vmatprep.mubr.f32.mxu0 0.0
        %3427 = vmatmul.mubr.f32.gmra.mrb[0].mxu0 %v3330
        %v3428 = vpop.f32.mrb[0].mxu0
        %v3429 = vadd.f32 0.0, %v3428
        %v3430 = vpop.f32.mrb[0].mxu0
        %v3431 = vadd.f32 0.0, %v3430
        %3432 = vmatprep.mubr.f32.mxu0 0.0
        %3433 = vmatmul.mubr.f32.gmra.mrb[0].mxu0 %v3333
        %v3434 = vpop.f32.mrb[0].mxu0
        %v3435 = vadd.f32 0.0, %v3434
        %v3436 = vpop.f32.mrb[0].mxu0
        %v3437 = vadd.f32 0.0, %v3436
        %3438 = vmatprep.mubr.f32.mxu0 0.0
        %3439 = vmatmul.mubr.f32.gmra.mrb[0].mxu0 %v3336
        %v3440 = vpop.f32.mrb[0].mxu0
        %v3441 = vadd.f32 0.0, %v3440
        %v3442 = vpop.f32.mrb[0].mxu0
        %v3443 = vadd.f32 0.0, %v3442
        %3444 = vmatprep.mubr.f32.mxu0 0.0
        %3445 = vmatmul.mubr.f32.gmra.mrb[0].mxu0 %v3339
        %v3446 = vpop.f32.mrb[0].mxu0
        %v3447 = vadd.f32 0.0, %v3446
        %v3448 = vpop.f32.mrb[0].mxu0
        %v3449 = vadd.f32 0.0, %v3448
        %3450 = vmatprep.mubr.f32.mxu0 0.0
        %3451 = vmatmul.mubr.f32.gmra.mrb[0].mxu0 %v3342
        %v3452 = vpop.f32.mrb[0].mxu0
        %v3453 = vadd.f32 0.0, %v3452
        %v3454 = vpop.f32.mrb[0].mxu0
        %v3455 = vadd.f32 0.0, %v3454
        %3456 = vdwg.mxu0
        %v3457 = vld [vmem:[%s5] sm:$0xff]
        %v3458 = vld [vmem:[%s5 + $0x8] sm:$0xff]
        %v3459 = vld [vmem:[%s5 + $0x10] sm:$0xff]
        %v3460 = vld [vmem:[%s5 + $0x18] sm:$0xff]
        %v3462 = vsel %vm807, %v3301, 0
        %v3465 = vsel %vm807, %v3303, 0
        %v3468 = vsel %vm807, %v3305, 0
        %v3471 = vsel %vm807, %v3307, 0
        %v3474 = vsel %vm807, %v3309, 0
        %v3477 = vsel %vm807, %v3311, 0
        %v3480 = vsel %vm807, %v3313, 0
        %v3483 = vsel %vm807, %v3315, 0
        %3485 = vmatprep.subr.mxu0 %v3458
        %3486 = vmatpush1.msra.mxu0 %v3457
        %3487 = vmatprep.subr.mxu0 %v3460
        %3488 = vmatpush1.msra.mxu0 %v3459
        %3489 = vmatprep.subr.mxu0 0.0
        %3490 = vmatpush1.msra.mxu0 0.0
        %3491 = vmatprep.subr.mxu0 0.0
        %3492 = vmatpush1.msra.mxu0 0.0
        %3493 = vmatprep.subr.mxu0 0.0
        %3494 = vmatpush1.msra.mxu0 0.0
        %3495 = vmatprep.subr.mxu0 0.0
        %3496 = vmatpush1.msra.mxu0 0.0
        %3497 = vmatprep.subr.mxu0 0.0
        %3498 = vmatpush1.msra.mxu0 0.0
        %3499 = vmatprep.subr.mxu0 0.0
        %3500 = vmatpush1.msra.mxu0 0.0
        %3501 = vmatprep.subr.mxu0 0.0
        %3502 = vmatpush1.msra.mxu0 0.0
        %3503 = vmatprep.subr.mxu0 0.0
        %3504 = vmatpush1.msra.mxu0 0.0
        %3505 = vmatprep.subr.mxu0 0.0
        %3506 = vmatpush1.msra.mxu0 0.0
        %3507 = vmatprep.subr.mxu0 0.0
        %3508 = vmatpush1.msra.mxu0 0.0
        %3509 = vmatprep.subr.mxu0 0.0
        %3510 = vmatpush1.msra.mxu0 0.0
        %3511 = vmatprep.subr.mxu0 0.0
        %3512 = vmatpush1.msra.mxu0 0.0
        %3513 = vmatprep.subr.mxu0 0.0
        %3514 = vmatpush1.msra.mxu0 0.0
        %3515 = vmatprep.subr.mxu0 0.0
        %3516 = vmatpush1.msra.mxu0 0.0
        %3517 = vmatprep.subr.mxu0 0.0
        %3518 = vmatpush1.msra.mxu0 0.0
        %3519 = vmatprep.subr.mxu0 0.0
        %3520 = vmatpush1.msra.mxu0 0.0
        %3521 = vmatprep.subr.mxu0 0.0
        %3522 = vmatpush1.msra.mxu0 0.0
        %3523 = vmatprep.subr.mxu0 0.0
        %3524 = vmatpush1.msra.mxu0 0.0
        %3525 = vmatprep.subr.mxu0 0.0
        %3526 = vmatpush1.msra.mxu0 0.0
        %3527 = vmatprep.subr.mxu0 0.0
        %3528 = vmatpush1.msra.mxu0 0.0
        %3529 = vmatprep.subr.mxu0 0.0
        %3530 = vmatpush1.msra.mxu0 0.0
        %3531 = vmatprep.subr.mxu0 0.0
        %3532 = vmatpush1.msra.mxu0 0.0
        %3533 = vmatprep.subr.mxu0 0.0
        %3534 = vmatpush1.msra.mxu0 0.0
        %3535 = vmatprep.subr.mxu0 0.0
        %3536 = vmatpush1.msra.mxu0 0.0
        %3537 = vmatprep.subr.mxu0 0.0
        %3538 = vmatpush1.msra.mxu0 0.0
        %3539 = vmatprep.subr.mxu0 0.0
        %3540 = vmatpush1.msra.mxu0 0.0
        %3541 = vmatprep.subr.mxu0 0.0
        %3542 = vmatpush1.msra.mxu0 0.0
        %3543 = vmatprep.subr.mxu0 0.0
        %3544 = vmatpush1.msra.mxu0 0.0
        %3545 = vmatprep.subr.mxu0 0.0
        %3546 = vmatpush1.msra.mxu0 0.0
        %3547 = vmatprep.subr.mxu0 0.0
        %3548 = vmatpush1.msra.mxu0 0.0
        %3549 = vmatprep.mubr.f32.mxu0 0.0
        %3550 = vmatmul.mubr.f32.gmra.mrb[0].mxu0 %v3462
        %v3551 = vpop.f32.mrb[0].mxu0
        %v3552 = vadd.f32 0.0, %v3551
        %v3553 = vpop.f32.mrb[0].mxu0
        %v3554 = vadd.f32 0.0, %v3553
        %3555 = vmatprep.mubr.f32.mxu0 0.0
        %3556 = vmatmul.mubr.f32.gmra.mrb[0].mxu0 %v3465
        %v3557 = vpop.f32.mrb[0].mxu0
        %v3558 = vadd.f32 0.0, %v3557
        %v3559 = vpop.f32.mrb[0].mxu0
        %v3560 = vadd.f32 0.0, %v3559
        %3561 = vmatprep.mubr.f32.mxu0 0.0
        %3562 = vmatmul.mubr.f32.gmra.mrb[0].mxu0 %v3468
        %v3563 = vpop.f32.mrb[0].mxu0
        %v3564 = vadd.f32 0.0, %v3563
        %v3565 = vpop.f32.mrb[0].mxu0
        %v3566 = vadd.f32 0.0, %v3565
        %3567 = vmatprep.mubr.f32.mxu0 0.0
        %3568 = vmatmul.mubr.f32.gmra.mrb[0].mxu0 %v3471
        %v3569 = vpop.f32.mrb[0].mxu0
        %v3570 = vadd.f32 0.0, %v3569
        %v3571 = vpop.f32.mrb[0].mxu0
        %v3572 = vadd.f32 0.0, %v3571
        %3573 = vmatprep.mubr.f32.mxu0 0.0
        %3574 = vmatmul.mubr.f32.gmra.mrb[0].mxu0 %v3474
        %v3575 = vpop.f32.mrb[0].mxu0
        %v3576 = vadd.f32 0.0, %v3575
        %v3577 = vpop.f32.mrb[0].mxu0
        %v3578 = vadd.f32 0.0, %v3577
        %3579 = vmatprep.mubr.f32.mxu0 0.0
        %3580 = vmatmul.mubr.f32.gmra.mrb[0].mxu0 %v3477
        %v3581 = vpop.f32.mrb[0].mxu0
        %v3582 = vadd.f32 0.0, %v3581
        %v3583 = vpop.f32.mrb[0].mxu0
        %v3584 = vadd.f32 0.0, %v3583
        %3585 = vmatprep.mubr.f32.mxu0 0.0
        %3586 = vmatmul.mubr.f32.gmra.mrb[0].mxu0 %v3480
        %v3587 = vpop.f32.mrb[0].mxu0
        %v3588 = vadd.f32 0.0, %v3587
        %v3589 = vpop.f32.mrb[0].mxu0
        %v3590 = vadd.f32 0.0, %v3589
        %3591 = vmatprep.mubr.f32.mxu0 0.0
        %3592 = vmatmul.mubr.f32.gmra.mrb[0].mxu0 %v3483
        %v3593 = vpop.f32.mrb[0].mxu0
        %v3594 = vadd.f32 0.0, %v3593
        %v3595 = vpop.f32.mrb[0].mxu0
        %v3596 = vadd.f32 0.0, %v3595
        %3597 = vdwg.mxu0
        %v3598 = vmul.f32 %v517, %v3411
        %v3599 = vmul.f32 %v518, %v3413
        %v3600 = vmul.f32 %v519, %v3417
        %v3601 = vmul.f32 %v520, %v3419
        %v3602 = vmul.f32 %v521, %v3423
        %v3603 = vmul.f32 %v522, %v3425
        %v3604 = vmul.f32 %v523, %v3429
        %v3605 = vmul.f32 %v524, %v3431
        %v3606 = vmul.f32 %v525, %v3435
        %v3607 = vmul.f32 %v526, %v3437
        %v3608 = vmul.f32 %v527, %v3441
        %v3609 = vmul.f32 %v528, %v3443
        %v3610 = vmul.f32 %v529, %v3447
        %v3611 = vmul.f32 %v530, %v3449
        %v3612 = vmul.f32 %v531, %v3453
        %v3613 = vmul.f32 %v532, %v3455
        %v3614 = vmul.f32 %v3598, %v3552
        %v3615 = vmul.f32 %v3599, %v3554
        %v3616 = vmul.f32 %v3600, %v3558
        %v3617 = vmul.f32 %v3601, %v3560
        %v3618 = vmul.f32 %v3602, %v3564
        %v3619 = vmul.f32 %v3603, %v3566
        %v3620 = vmul.f32 %v3604, %v3570
        %v3621 = vmul.f32 %v3605, %v3572
        %v3622 = vmul.f32 %v3606, %v3576
        %v3623 = vmul.f32 %v3607, %v3578
        %v3624 = vmul.f32 %v3608, %v3582
        %v3625 = vmul.f32 %v3609, %v3584
        %v3626 = vmul.f32 %v3610, %v3588
        %v3627 = vmul.f32 %v3611, %v3590
        %v3628 = vmul.f32 %v3612, %v3594
        %v3629 = vmul.f32 %v3613, %v3596
        %3630 = vst [vmem:[%s373] sm:$0xff] %v3614
        %3631 = vst [vmem:[%s373 + $0x8] sm:$0xff] %v3615
        %3632 = vst [vmem:[%s373 + $0x10] sm:$0xff] %v3616
        %3633 = vst [vmem:[%s373 + $0x18] sm:$0xff] %v3617
        %3634 = vst [vmem:[%s373 + $0x20] sm:$0xff] %v3618
        %3635 = vst [vmem:[%s373 + $0x28] sm:$0xff] %v3619
        %3636 = vst [vmem:[%s373 + $0x30] sm:$0xff] %v3620
        %3637 = vst [vmem:[%s373 + $0x38] sm:$0xff] %v3621
        %3638 = vst [vmem:[%s373 + $0x40] sm:$0xff] %v3622
        %3639 = vst [vmem:[%s373 + $0x48] sm:$0xff] %v3623
        %3640 = vst [vmem:[%s373 + $0x50] sm:$0xff] %v3624
        %3641 = vst [vmem:[%s373 + $0x58] sm:$0xff] %v3625
        %3642 = vst [vmem:[%s373 + $0x60] sm:$0xff] %v3626
        %3643 = vst [vmem:[%s373 + $0x68] sm:$0xff] %v3627
        %3644 = vst [vmem:[%s373 + $0x70] sm:$0xff] %v3628
        %3645 = vst [vmem:[%s373 + $0x78] sm:$0xff] %v3629
        %s3646 = sand.u32 %s252, 1
        %s3647 = scalar_lea.sflag [#allocation3], %s3646
        %s3648 = sand.u32 %s252, 1
        %s3649 = smul.addr %s3648, 128
        %s3650 = scalar_lea.vmem [#allocation2], %s3649
        // Predicated region
        $region61: #{tpu_custom_call.1} parent=59 // pred_check
          %p3651 = pneg %p262
        $region62: #{tpu_custom_call.1} parent=59 // pred_check_branch
          %3653 = sbr.rel (%p3651) target = $region64
        $region63: #{tpu_custom_call.1} parent=59 // pred_region
          %s3654 = smul.u32 8, %s24
          %s3656 = ssub.s32 2048, 2048
          %3657 = vsyncadd %s3647, %s3656
          %s3658 = smul.addr %s3654, 2
          %s3659 = smul.addr %s3658, 128
          %s3660 = scalar_lea.hbm %s10, %s3659
          %s3661 = sshll.u32 %s3650, 4
          %s3662 = int_to_ptr.vmem [resolvable:$true] %s3661
          %3667 = dma.vmem_to_hbm [thread:$0]  %s3662, 2048, %s3660, %s3647, 256, 256, 16
        $region64: #{tpu_custom_call.1} parent=59 // pred_fallthru
          _
      $region60: #{tpu_custom_call.1} parent=5 // pred_fallthru
        _
      %p3668 = scmp.le.s32.totalorder 2, %s19
      // Predicated region
      $region65: #{tpu_custom_call.1} parent=5 // pred_check
        %p3669 = pneg %p3668
      $region66: #{tpu_custom_call.1} parent=5 // pred_check_branch
        %3671 = sbr.rel (%p3669) target = $region68
      $region67: #{tpu_custom_call.1} parent=5 // pred_region
        %s3672 = ssub.s32 %s19, 2
        // Predicated region
        $region69: #{tpu_custom_call.1} parent=67 // pred_check
          %p3673 = pneg %p268
        $region70: #{tpu_custom_call.1} parent=67 // pred_check_branch
          %3675 = sbr.rel (%p3673) target = $region72
        $region71: #{tpu_custom_call.1} parent=67 // pred_region
          %s3676 = sand.u32 %s253, 1
          %s3677 = scalar_lea.sflag [#allocation3], %s3676
          %s3678 = sand.u32 %s253, 1
          %s3679 = smul.addr %s3678, 128
          %s3680 = scalar_lea.vmem [#allocation2], %s3679
          %3681 = dma.done %s3677, 2048
        $region72: #{tpu_custom_call.1} parent=67 // pred_fallthru
          _
      $region68: #{tpu_custom_call.1} parent=5 // pred_fallthru
        _
    $region6: #{tpu_custom_call.1} parent=1 // loop_footer
      %s23 = sadd.s32 1, %s19
    $region7: #{tpu_custom_call.1} parent=1 // loop_footer_branch
      %18 = sbr.rel target = $region3
    $region8: #{tpu_custom_call.1} parent=1 // loop_exit
      _
    %3682 = vsyncpa [#allocation3], 1
    %s3683 = scalar_lea.sflag [#allocation3], 1
    %3684 = vsyncpa %s3683, 1

</llo_original>
